<compile_context>
chip_gen: v7x
topology: tpu7x:2x2x1
jax: 0.10.0
libtpu: 0.0.40
codegen_flags: <defaults>
</compile_context>

<pallas_src>
import jax
import jax.numpy as jnp
from jax import lax
from jax.experimental import pallas as pl
from jax.experimental.pallas import tpu as pltpu


# Keep <= v7x's 32 MiB scoped default so the same script runs on v5e/v6e/v7x;
# raise towards 64-96 MiB on v5e/v6e when using larger row tiles.
_VMEM_LIMIT = 32 * 1024 * 1024


def _cparams(sem):
    return pltpu.CompilerParams(dimension_semantics=sem,
                                vmem_limit_bytes=_VMEM_LIMIT)


# ----------------------------------------------------------------------------
# Kernel 1: GroupNorm statistics.
# Per (b, t) frame, accumulate per-channel sum and sum-of-squares over (H, W).
# Grid (B, T, H); reduction axis H is last and marked "arbitrary"; the output
# block index is constant along H so it stays resident (P3 accumulator).
# ----------------------------------------------------------------------------
def _gn_stats_kernel(x_ref, sum_ref, sq_ref):
    @pl.when(pl.program_id(2) == 0)
    def _():
        sum_ref[...] = jnp.zeros_like(sum_ref)
        sq_ref[...] = jnp.zeros_like(sq_ref)

    v = x_ref[0, 0, 0].astype(jnp.float32)           # (W, C)
    sum_ref[0, 0] += jnp.sum(v, axis=0, keepdims=True)
    sq_ref[0, 0] += jnp.sum(v * v, axis=0, keepdims=True)


def groupnorm_scale_shift(x, gamma, beta, num_groups=32, eps=1e-6):
    """GroupNorm(num_groups, C) -> per-(b,t) per-channel affine (scale, shift)."""
    B, T, H, W, C = x.shape
    sums, sqs = pl.pallas_call(
        _gn_stats_kernel,
        out_shape=(jax.ShapeDtypeStruct((B, T, 1, C), jnp.float32),
                   jax.ShapeDtypeStruct((B, T, 1, C), jnp.float32)),
        grid=(B, T, H),
        in_specs=[pl.BlockSpec((1, 1, 1, W, C), lambda b, t, h: (b, t, h, 0, 0))],
        out_specs=(pl.BlockSpec((1, 1, 1, C), lambda b, t, h: (b, t, 0, 0)),
                   pl.BlockSpec((1, 1, 1, C), lambda b, t, h: (b, t, 0, 0))),
        compiler_params=_cparams(("parallel", "parallel", "arbitrary")),
    )(x)

    # Tiny (B,T,C)-sized epilogue in plain JAX (negligible vs. activation traffic).
    cg = C // num_groups
    cnt = float(H * W * cg)
    s_g = sums.reshape(B, T, num_groups, cg).sum(-1)
    q_g = sqs.reshape(B, T, num_groups, cg).sum(-1)
    mean = s_g / cnt
    var = q_g / cnt - mean * mean
    rstd = lax.rsqrt(var + eps)
    mean_c = jnp.repeat(mean, cg, axis=-1)            # (B, T, C)
    rstd_c = jnp.repeat(rstd, cg, axis=-1)
    scale = gamma[None, None, :] * rstd_c
    shift = beta[None, None, :] - mean_c * scale
    return scale.reshape(B, T, 1, C), shift.reshape(B, T, 1, C)


# ----------------------------------------------------------------------------
# Kernel 2: fused GroupNorm-apply + swish + Conv2d 3x3 (zero pad 1) + bias.
# Grid (B, T, H): one output row per step.  The three input rows (h-1, h, h+1)
# come from three BlockSpecs on the *same* un-padded array with clamped
# index_maps; out-of-range rows are masked to zero AFTER the activation (so
# zero padding is applied to swish(GN(x)), matching PyTorch).  The 9 taps are
# concatenated along lanes into (W, 9C) and fed to one MXU contraction.
# ----------------------------------------------------------------------------
def _norm_swish_conv3x3_kernel(xm1_ref, x0_ref, xp1_ref, s_ref, t_ref,
                               w_ref, b_ref, o_ref):
    h = pl.program_id(2)
    n_h = pl.num_programs(2)
    scale = s_ref[0, 0]                               # (1, C) f32
    shift = t_ref[0, 0]
    cdt = w_ref.dtype                                 # bf16 MXU operand dtype

    def activated(ref, valid=None):
        v = ref[0, 0, 0].astype(jnp.float32) * scale + shift      # GN affine
        v = v * (1.0 / (1.0 + jnp.exp(-v)))                       # swish (EUP)
        if valid is not None:
            v = v * valid.astype(v.dtype)                         # zero-pad rows
        return v.astype(cdt)

    rows = [activated(xm1_ref, h > 0),
            activated(x0_ref),
            activated(xp1_ref, h < n_h - 1)]
    W, C = rows[0].shape
    zcol = jnp.zeros((1, C), cdt)

    taps = []
    for dh in range(3):
        rp = jnp.concatenate([zcol, rows[dh], zcol], axis=0)      # (W+2, C)
        for dw in range(3):
            taps.append(rp[dw:dw + W])                            # (W, C)
    patch = jnp.concatenate(taps, axis=1)                         # (W, 9*C)

    acc = jnp.dot(patch, w_ref[...], preferred_element_type=jnp.float32)
    o_ref[0, 0, 0] = (acc + b_ref[...]).astype(o_ref.dtype)


def norm_swish_conv3x3(x, scale, shift, w_flat, bias, out_dtype):
    B, T, H, W, C = x.shape
    cout = w_flat.shape[1]

    def row_spec(dh):
        return pl.BlockSpec(
            (1, 1, 1, W, C),
            lambda b, t, h, _dh=dh: (b, t, jnp.clip(h + _dh - 1, 0, H - 1), 0, 0))

    return pl.pallas_call(
        _norm_swish_conv3x3_kernel,
        out_shape=jax.ShapeDtypeStruct((B, T, H, W, cout), out_dtype),
        grid=(B, T, H),
        in_specs=[row_spec(0), row_spec(1), row_spec(2),
                  pl.BlockSpec((1, 1, 1, C), lambda b, t, h: (b, t, 0, 0)),
                  pl.BlockSpec((1, 1, 1, C), lambda b, t, h: (b, t, 0, 0)),
                  pl.BlockSpec(w_flat.shape, lambda b, t, h: (0, 0)),   # resident
                  pl.BlockSpec(bias.shape, lambda b, t, h: (0, 0))],
        out_specs=pl.BlockSpec((1, 1, 1, W, cout), lambda b, t, h: (b, t, h, 0, 0)),
        compiler_params=_cparams(("parallel", "parallel", "parallel")),
    )(x, x, x, scale, shift, w_flat, bias)


# ----------------------------------------------------------------------------
# Kernel 3: TemporalConv1d (k=3, ReplicationPad1d(1)) [+ fused residual add].
# Replication padding is implemented by CLAMPING the T index in the three tap
# index_maps — no padded copy of the activation is materialized.
# ----------------------------------------------------------------------------
def _temporal_conv3_kernel(ym1_ref, y0_ref, yp1_ref, w_ref, b_ref, o_ref):
    cdt = w_ref.dtype
    patch = jnp.concatenate([ym1_ref[0, 0, 0].astype(cdt),
                             y0_ref[0, 0, 0].astype(cdt),
                             yp1_ref[0, 0, 0].astype(cdt)], axis=1)   # (W, 3C)
    acc = jnp.dot(patch, w_ref[...], preferred_element_type=jnp.float32)
    o_ref[0, 0, 0] = (acc + b_ref[...]).astype(o_ref.dtype)


def _temporal_conv3_res_kernel(ym1_ref, y0_ref, yp1_ref, res_ref,
                               w_ref, b_ref, o_ref):
    cdt = w_ref.dtype
    patch = jnp.concatenate([ym1_ref[0, 0, 0].astype(cdt),
                             y0_ref[0, 0, 0].astype(cdt),
                             yp1_ref[0, 0, 0].astype(cdt)], axis=1)
    acc = jnp.dot(patch, w_ref[...], preferred_element_type=jnp.float32)
    acc = acc + b_ref[...] + res_ref[0, 0, 0].astype(jnp.float32)     # x + h
    o_ref[0, 0, 0] = acc.astype(o_ref.dtype)


def temporal_conv3(x, w_flat, bias, out_dtype, residual=None):
    B, T, H, W, C = x.shape
    cout = w_flat.shape[1]

    def tap_spec(dt):
        return pl.BlockSpec(
            (1, 1, 1, W, C),
            lambda b, t, h, _dt=dt: (b, jnp.clip(t + _dt - 1, 0, T - 1), h, 0, 0))

    in_specs = [tap_spec(0), tap_spec(1), tap_spec(2)]
    args = [x, x, x]
    kernel = _temporal_conv3_kernel
    if residual is not None:
        in_specs.append(pl.BlockSpec((1, 1, 1, W, residual.shape[-1]),
                                     lambda b, t, h: (b, t, h, 0, 0)))
        args.append(residual)
        kernel = _temporal_conv3_res_kernel
    in_specs += [pl.BlockSpec(w_flat.shape, lambda b, t, h: (0, 0)),
                 pl.BlockSpec(bias.shape, lambda b, t, h: (0, 0))]
    args += [w_flat, bias]

    return pl.pallas_call(
        kernel,
        out_shape=jax.ShapeDtypeStruct((B, T, H, W, cout), out_dtype),
        grid=(B, T, H),
        in_specs=in_specs,
        out_specs=pl.BlockSpec((1, 1, 1, W, cout), lambda b, t, h: (b, t, h, 0, 0)),
        compiler_params=_cparams(("parallel", "parallel", "parallel")),
    )(*args)


# ----------------------------------------------------------------------------
# Weight-layout converters (from real PyTorch checkpoint layouts).
# ----------------------------------------------------------------------------
def conv2d_weight_to_flat(w, dtype):
    # PyTorch Conv2d weight (Cout, Cin, kh, kw) -> (kh*kw*Cin, Cout)
    cout, cin, kh, kw = w.shape
    return jnp.transpose(w, (2, 3, 1, 0)).reshape(kh * kw * cin, cout).astype(dtype)


def conv1d_weight_to_flat(w, dtype):
    # PyTorch Conv1d weight (Cout, Cin, k) -> (k*Cin, Cout)
    cout, cin, k = w.shape
    return jnp.transpose(w, (2, 1, 0)).reshape(k * cin, cout).astype(dtype)


# ----------------------------------------------------------------------------
# Full forward pass (inference; in_channels == out_channels; temb optional).
# ----------------------------------------------------------------------------
def temporal_resnet_block(x, params, temb=None):
    """x: (B, T, C, H, W) float32 (PyTorch layout)."""
    cdt = jnp.bfloat16  # MXU operand / inter-stage activation dtype

    # single layout change at the I/O boundary; everything below stays (B,T,H,W,C)
    xc = jnp.transpose(x, (0, 1, 3, 4, 2))

    w1 = conv2d_weight_to_flat(params["conv1_w"], cdt)
    b1 = params["conv1_b"].reshape(1, -1).astype(jnp.float32)
    wt1 = conv1d_weight_to_flat(params["temp1_w"], cdt)
    bt1 = params["temp1_b"].reshape(1, -1).astype(jnp.float32)
    w2 = conv2d_weight_to_flat(params["conv2_w"], cdt)
    b2 = params["conv2_b"].reshape(1, -1).astype(jnp.float32)
    wt2 = conv1d_weight_to_flat(params["temp2_w"], cdt)
    bt2 = params["temp2_b"].reshape(1, -1).astype(jnp.float32)

    # ---- norm1 + swish + conv1 (fused) ----
    sc1, sh1 = groupnorm_scale_shift(xc, params["norm1_g"], params["norm1_b"])
    h = norm_swish_conv3x3(xc, sc1, sh1, w1, b1, out_dtype=cdt)
    # ---- temp_conv1 (replication pad via clamped T taps) ----
    h = temporal_conv3(h, wt1, bt1, out_dtype=cdt)

    if temb is not None:
        # TODO(synk): fuse this tiny projection-add into the temp_conv1 epilogue.
        e = temb * (1.0 / (1.0 + jnp.exp(-temb)))                    # nonlinearity
        proj = e @ params["temb_w"].T + params["temb_b"]             # Linear
        h = h + proj[None, :, None, None, :].astype(h.dtype)         # broadcast over (H, W)

    # ---- norm2 + swish + (dropout: eval-mode identity) + conv2 (fused) ----
    sc2, sh2 = groupnorm_scale_shift(h, params["norm2_g"], params["norm2_b"])
    h = norm_swish_conv3x3(h, sc2, sh2, w2, b2, out_dtype=cdt)
    # ---- temp_conv2 + residual add (fused; identity shortcut, in == out) ----
    out = temporal_conv3(h, wt2, bt2, out_dtype=jnp.float32, residual=xc)

    return jnp.transpose(out, (0, 1, 4, 2, 3))                       # (B, T, C, H, W)


if __name__ == "__main__":
    # GroupNorm(num_groups=32) requires C % 32 == 0; C = 128 keeps every matmul
    # and output store lane-dense on TPU.
    B, T, C, H, W = 2, 4, 128, 8, 8

    key = jax.random.PRNGKey(0)
    ks = jax.random.split(key, 16)

    def rn(k, shape, s=0.05):
        return jax.random.normal(k, shape, jnp.float32) * s

    x = jax.random.normal(ks[0], (B, T, C, H, W), jnp.float32)

    params = {
        "norm1_g": 1.0 + rn(ks[1], (C,)),
        "norm1_b": rn(ks[2], (C,)),
        "conv1_w": rn(ks[3], (C, C, 3, 3)),     # PyTorch Conv2d layout (Cout,Cin,kh,kw)
        "conv1_b": rn(ks[4], (C,)),
        "temp1_w": rn(ks[5], (C, C, 3)),        # PyTorch Conv1d layout (Cout,Cin,k)
        "temp1_b": rn(ks[6], (C,)),
        "norm2_g": 1.0 + rn(ks[7], (C,)),
        "norm2_b": rn(ks[8], (C,)),
        "conv2_w": rn(ks[9], (C, C, 3, 3)),
        "conv2_b": rn(ks[10], (C,)),
        "temp2_w": rn(ks[11], (C, C, 3)),
        "temp2_b": rn(ks[12], (C,)),
    }

    fwd = jax.jit(temporal_resnet_block)
    out = fwd(x, params)                         # temb=None (TAE default)
    out = jax.block_until_ready(out)

    assert out.shape == (B, T, C, H, W), out.shape
    assert out.dtype == jnp.float32
    assert bool(jnp.isfinite(out).all())
    print("KERNEL_OK")
</pallas_src>

<mosaic_0001>
module attributes {stable_mosaic.version = 11 : i64} {
  func.func @_gn_stats_kernel(%arg0: i32, %arg1: i32, %arg2: i32, %arg3: memref<1x1x1x8x128xf32, #tpu.memory_space<vmem>>, %arg4: memref<1x1x1x128xf32, #tpu.memory_space<vmem>>, %arg5: memref<1x1x1x128xf32, #tpu.memory_space<vmem>>) attributes {dimension_semantics = [#tpu.dimension_semantics<parallel>, #tpu.dimension_semantics<parallel>, #tpu.dimension_semantics<arbitrary>], iteration_bounds = array<i64: 2, 4, 8>, scalar_prefetch = 0 : i64, scratch_operands = 0 : i64, tpu.core_type = #tpu.core_type<tc>, window_params = [{transform_indices = @transform_0, window_bounds = array<i64: 1, 1, 1, 8, 128>}, {transform_indices = @transform_1, window_bounds = array<i64: 1, 1, 1, 128>}, {transform_indices = @transform_2, window_bounds = array<i64: 1, 1, 1, 128>}]} {
    %c0_i32 = arith.constant 0 : i32
    %0 = arith.cmpi eq, %arg2, %c0_i32 : i32
    %1 = arith.extui %0 : i1 to i32
    %c0_i32_0 = arith.constant 0 : i32
    %2 = arith.cmpi ne, %1, %c0_i32_0 : i32
    scf.if %2 {
      %cst_22 = arith.constant 0.000000e+00 : f32
      %22 = vector.broadcast %cst_22 : f32 to vector<1x1x1x128xf32>
      %c0_23 = arith.constant 0 : index
      %c0_24 = arith.constant 0 : index
      %c0_25 = arith.constant 0 : index
      %c0_26 = arith.constant 0 : index
      %23 = vector.load %arg4[%c0_23, %c0_24, %c0_25, %c0_26] : memref<1x1x1x128xf32, #tpu.memory_space<vmem>>, vector<1x1x1x128xf32>
      tpu.vector_store %arg4[%c0_23, %c0_24, %c0_25, %c0_26], %22 {strides = array<i32>} : memref<1x1x1x128xf32, #tpu.memory_space<vmem>>, vector<1x1x1x128xf32>,
      %cst_27 = arith.constant 0.000000e+00 : f32
      %24 = vector.broadcast %cst_27 : f32 to vector<1x1x1x128xf32>
      %c0_28 = arith.constant 0 : index
      %c0_29 = arith.constant 0 : index
      %c0_30 = arith.constant 0 : index
      %c0_31 = arith.constant 0 : index
      %25 = vector.load %arg5[%c0_28, %c0_29, %c0_30, %c0_31] : memref<1x1x1x128xf32, #tpu.memory_space<vmem>>, vector<1x1x1x128xf32>
      tpu.vector_store %arg5[%c0_28, %c0_29, %c0_30, %c0_31], %24 {strides = array<i32>} : memref<1x1x1x128xf32, #tpu.memory_space<vmem>>, vector<1x1x1x128xf32>,
    } else {
    }
    %c0 = arith.constant 0 : index
    %c0_1 = arith.constant 0 : index
    %c0_2 = arith.constant 0 : index
    %c0_3 = arith.constant 0 : index
    %c0_4 = arith.constant 0 : index
    %3 = vector.load %arg3[%c0, %c0_1, %c0_2, %c0_3, %c0_4] : memref<1x1x1x8x128xf32, #tpu.memory_space<vmem>>, vector<1x1x1x8x128xf32>
    %4 = vector.shape_cast %3 : vector<1x1x1x8x128xf32> to vector<8x128xf32>
    %c0_5 = arith.constant 0 : index
    %c0_6 = arith.constant 0 : index
    %c0_7 = arith.constant 0 : index
    %c0_8 = arith.constant 0 : index
    %5 = vector.load %arg4[%c0_5, %c0_6, %c0_7, %c0_8] : memref<1x1x1x128xf32, #tpu.memory_space<vmem>>, vector<1x1x1x128xf32>
    %6 = vector.shape_cast %5 : vector<1x1x1x128xf32> to vector<1x128xf32>
    %cst = arith.constant dense<0.000000e+00> : vector<128xf32>
    %7 = vector.multi_reduction <add>, %4, %cst [0] : vector<8x128xf32> to vector<128xf32>
    %8 = vector.shape_cast %7 : vector<128xf32> to vector<1x128xf32>
    %9 = arith.addf %6, %8 : vector<1x128xf32>
    %c0_9 = arith.constant 0 : index
    %c0_10 = arith.constant 0 : index
    %c0_11 = arith.constant 0 : index
    %c0_12 = arith.constant 0 : index
    %10 = vector.load %arg4[%c0_9, %c0_10, %c0_11, %c0_12] : memref<1x1x1x128xf32, #tpu.memory_space<vmem>>, vector<1x1x1x128xf32>
    %11 = vector.shape_cast %10 : vector<1x1x1x128xf32> to vector<1x128xf32>
    %12 = vector.shape_cast %9 : vector<1x128xf32> to vector<1x1x1x128xf32>
    tpu.vector_store %arg4[%c0_9, %c0_10, %c0_11, %c0_12], %12 {strides = array<i32>} : memref<1x1x1x128xf32, #tpu.memory_space<vmem>>, vector<1x1x1x128xf32>,
    %c0_13 = arith.constant 0 : index
    %c0_14 = arith.constant 0 : index
    %c0_15 = arith.constant 0 : index
    %c0_16 = arith.constant 0 : index
    %13 = vector.load %arg5[%c0_13, %c0_14, %c0_15, %c0_16] : memref<1x1x1x128xf32, #tpu.memory_space<vmem>>, vector<1x1x1x128xf32>
    %14 = vector.shape_cast %13 : vector<1x1x1x128xf32> to vector<1x128xf32>
    %15 = arith.mulf %4, %4 : vector<8x128xf32>
    %cst_17 = arith.constant dense<0.000000e+00> : vector<128xf32>
    %16 = vector.multi_reduction <add>, %15, %cst_17 [0] : vector<8x128xf32> to vector<128xf32>
    %17 = vector.shape_cast %16 : vector<128xf32> to vector<1x128xf32>
    %18 = arith.addf %14, %17 : vector<1x128xf32>
    %c0_18 = arith.constant 0 : index
    %c0_19 = arith.constant 0 : index
    %c0_20 = arith.constant 0 : index
    %c0_21 = arith.constant 0 : index
    %19 = vector.load %arg5[%c0_18, %c0_19, %c0_20, %c0_21] : memref<1x1x1x128xf32, #tpu.memory_space<vmem>>, vector<1x1x1x128xf32>
    %20 = vector.shape_cast %19 : vector<1x1x1x128xf32> to vector<1x128xf32>
    %21 = vector.shape_cast %18 : vector<1x128xf32> to vector<1x1x1x128xf32>
    tpu.vector_store %arg5[%c0_18, %c0_19, %c0_20, %c0_21], %21 {strides = array<i32>} : memref<1x1x1x128xf32, #tpu.memory_space<vmem>>, vector<1x1x1x128xf32>,
    return
  }
  func.func @transform_0(%arg0: i32, %arg1: i32, %arg2: i32) -> (i32, i32, i32, i32, i32) {
    %c0_i32 = arith.constant 0 : i32
    %c0_i32_0 = arith.constant 0 : i32
    %c0_i32_1 = arith.constant 0 : i32
    return %arg0, %arg1, %arg2, %c0_i32, %c0_i32_0 : i32, i32, i32, i32, i32
  }
  func.func @transform_1(%arg0: i32, %arg1: i32, %arg2: i32) -> (i32, i32, i32, i32) {
    %c0_i32 = arith.constant 0 : i32
    %c0_i32_0 = arith.constant 0 : i32
    %c0_i32_1 = arith.constant 0 : i32
    return %arg0, %arg1, %c0_i32, %c0_i32_0 : i32, i32, i32, i32
  }
  func.func @transform_2(%arg0: i32, %arg1: i32, %arg2: i32) -> (i32, i32, i32, i32) {
    %c0_i32 = arith.constant 0 : i32
    %c0_i32_0 = arith.constant 0 : i32
    %c0_i32_1 = arith.constant 0 : i32
    return %arg0, %arg1, %c0_i32, %c0_i32_0 : i32, i32, i32, i32
  }
}

module attributes {stable_mosaic.version = 11 : i64} {
  func.func @_norm_swish_conv3x3_kernel(%arg0: i32, %arg1: i32, %arg2: i32, %arg3: memref<1x1x1x8x128xf32, #tpu.memory_space<vmem>>, %arg4: memref<1x1x1x8x128xf32, #tpu.memory_space<vmem>>, %arg5: memref<1x1x1x8x128xf32, #tpu.memory_space<vmem>>, %arg6: memref<1x1x1x128xf32, #tpu.memory_space<vmem>>, %arg7: memref<1x1x1x128xf32, #tpu.memory_space<vmem>>, %arg8: memref<1152x128xbf16, #tpu.memory_space<vmem>>, %arg9: memref<1x128xf32, #tpu.memory_space<vmem>>, %arg10: memref<1x1x1x8x128xbf16, #tpu.memory_space<vmem>>) attributes {dimension_semantics = [#tpu.dimension_semantics<parallel>, #tpu.dimension_semantics<parallel>, #tpu.dimension_semantics<parallel>], iteration_bounds = array<i64: 2, 4, 8>, scalar_prefetch = 0 : i64, scratch_operands = 0 : i64, tpu.core_type = #tpu.core_type<tc>, window_params = [{transform_indices = @transform_0, window_bounds = array<i64: 1, 1, 1, 8, 128>}, {transform_indices = @transform_1, window_bounds = array<i64: 1, 1, 1, 8, 128>}, {transform_indices = @transform_2, window_bounds = array<i64: 1, 1, 1, 8, 128>}, {transform_indices = @transform_3, window_bounds = array<i64: 1, 1, 1, 128>}, {transform_indices = @transform_4, window_bounds = array<i64: 1, 1, 1, 128>}, {pipeline_mode = #tpu.pipeline_mode<synchronous>, transform_indices = @transform_5, window_bounds = array<i64: 1152, 128>}, {pipeline_mode = #tpu.pipeline_mode<synchronous>, transform_indices = @transform_6, window_bounds = array<i64: 1, 128>}, {transform_indices = @transform_7, window_bounds = array<i64: 1, 1, 1, 8, 128>}]} {
    %c0 = arith.constant 0 : index
    %c0_0 = arith.constant 0 : index
    %c0_1 = arith.constant 0 : index
    %c0_2 = arith.constant 0 : index
    %0 = vector.load %arg6[%c0, %c0_0, %c0_1, %c0_2] : memref<1x1x1x128xf32, #tpu.memory_space<vmem>>, vector<1x1x1x128xf32>
    %1 = vector.shape_cast %0 : vector<1x1x1x128xf32> to vector<1x128xf32>
    %c0_3 = arith.constant 0 : index
    %c0_4 = arith.constant 0 : index
    %c0_5 = arith.constant 0 : index
    %c0_6 = arith.constant 0 : index
    %2 = vector.load %arg7[%c0_3, %c0_4, %c0_5, %c0_6] : memref<1x1x1x128xf32, #tpu.memory_space<vmem>>, vector<1x1x1x128xf32>
    %3 = vector.shape_cast %2 : vector<1x1x1x128xf32> to vector<1x128xf32>
    %c0_i32 = arith.constant 0 : i32
    %4 = arith.cmpi sgt, %arg2, %c0_i32 : i32
    %c0_7 = arith.constant 0 : index
    %c0_8 = arith.constant 0 : index
    %c0_9 = arith.constant 0 : index
    %c0_10 = arith.constant 0 : index
    %c0_11 = arith.constant 0 : index
    %5 = vector.load %arg3[%c0_7, %c0_8, %c0_9, %c0_10, %c0_11] : memref<1x1x1x8x128xf32, #tpu.memory_space<vmem>>, vector<1x1x1x8x128xf32>
    %6 = vector.shape_cast %5 : vector<1x1x1x8x128xf32> to vector<8x128xf32>
    %7 = vector.broadcast %1 : vector<1x128xf32> to vector<8x128xf32>
    %8 = arith.mulf %6, %7 : vector<8x128xf32>
    %9 = vector.broadcast %3 : vector<1x128xf32> to vector<8x128xf32>
    %10 = arith.addf %8, %9 : vector<8x128xf32>
    %cst = arith.constant 0.000000e+00 : f32
    %11 = vector.broadcast %cst : f32 to vector<8x128xf32>
    %12 = arith.subf %11, %10 : vector<8x128xf32>
    %13 = math.exp %12 : vector<8x128xf32>
    %cst_12 = arith.constant 1.000000e+00 : f32
    %14 = vector.broadcast %cst_12 : f32 to vector<8x128xf32>
    %15 = arith.addf %14, %13 : vector<8x128xf32>
    %cst_13 = arith.constant 1.000000e+00 : f32
    %16 = vector.broadcast %cst_13 : f32 to vector<8x128xf32>
    %17 = arith.divf %16, %15 : vector<8x128xf32>
    %18 = arith.mulf %10, %17 : vector<8x128xf32>
    %19 = arith.extui %4 : i1 to i32
    %20 = arith.sitofp %19 : i32 to f32
    %21 = vector.broadcast %20 : f32 to vector<8x128xf32>
    %22 = arith.mulf %18, %21 : vector<8x128xf32>
    %23 = arith.truncf %22 : vector<8x128xf32> to vector<8x128xbf16>
    %c0_14 = arith.constant 0 : index
    %c0_15 = arith.constant 0 : index
    %c0_16 = arith.constant 0 : index
    %c0_17 = arith.constant 0 : index
    %c0_18 = arith.constant 0 : index
    %24 = vector.load %arg4[%c0_14, %c0_15, %c0_16, %c0_17, %c0_18] : memref<1x1x1x8x128xf32, #tpu.memory_space<vmem>>, vector<1x1x1x8x128xf32>
    %25 = vector.shape_cast %24 : vector<1x1x1x8x128xf32> to vector<8x128xf32>
    %26 = vector.broadcast %1 : vector<1x128xf32> to vector<8x128xf32>
    %27 = arith.mulf %25, %26 : vector<8x128xf32>
    %28 = vector.broadcast %3 : vector<1x128xf32> to vector<8x128xf32>
    %29 = arith.addf %27, %28 : vector<8x128xf32>
    %cst_19 = arith.constant 0.000000e+00 : f32
    %30 = vector.broadcast %cst_19 : f32 to vector<8x128xf32>
    %31 = arith.subf %30, %29 : vector<8x128xf32>
    %32 = math.exp %31 : vector<8x128xf32>
    %cst_20 = arith.constant 1.000000e+00 : f32
    %33 = vector.broadcast %cst_20 : f32 to vector<8x128xf32>
    %34 = arith.addf %33, %32 : vector<8x128xf32>
    %cst_21 = arith.constant 1.000000e+00 : f32
    %35 = vector.broadcast %cst_21 : f32 to vector<8x128xf32>
    %36 = arith.divf %35, %34 : vector<8x128xf32>
    %37 = arith.mulf %29, %36 : vector<8x128xf32>
    %38 = arith.truncf %37 : vector<8x128xf32> to vector<8x128xbf16>
    %c7_i32 = arith.constant 7 : i32
    %39 = arith.cmpi slt, %arg2, %c7_i32 : i32
    %c0_22 = arith.constant 0 : index
    %c0_23 = arith.constant 0 : index
    %c0_24 = arith.constant 0 : index
    %c0_25 = arith.constant 0 : index
    %c0_26 = arith.constant 0 : index
    %40 = vector.load %arg5[%c0_22, %c0_23, %c0_24, %c0_25, %c0_26] : memref<1x1x1x8x128xf32, #tpu.memory_space<vmem>>, vector<1x1x1x8x128xf32>
    %41 = vector.shape_cast %40 : vector<1x1x1x8x128xf32> to vector<8x128xf32>
    %42 = vector.broadcast %1 : vector<1x128xf32> to vector<8x128xf32>
    %43 = arith.mulf %41, %42 : vector<8x128xf32>
    %44 = vector.broadcast %3 : vector<1x128xf32> to vector<8x128xf32>
    %45 = arith.addf %43, %44 : vector<8x128xf32>
    %cst_27 = arith.constant 0.000000e+00 : f32
    %46 = vector.broadcast %cst_27 : f32 to vector<8x128xf32>
    %47 = arith.subf %46, %45 : vector<8x128xf32>
    %48 = math.exp %47 : vector<8x128xf32>
    %cst_28 = arith.constant 1.000000e+00 : f32
    %49 = vector.broadcast %cst_28 : f32 to vector<8x128xf32>
    %50 = arith.addf %49, %48 : vector<8x128xf32>
    %cst_29 = arith.constant 1.000000e+00 : f32
    %51 = vector.broadcast %cst_29 : f32 to vector<8x128xf32>
    %52 = arith.divf %51, %50 : vector<8x128xf32>
    %53 = arith.mulf %45, %52 : vector<8x128xf32>
    %54 = arith.extui %39 : i1 to i32
    %55 = arith.sitofp %54 : i32 to f32
    %56 = vector.broadcast %55 : f32 to vector<8x128xf32>
    %57 = arith.mulf %53, %56 : vector<8x128xf32>
    %58 = arith.truncf %57 : vector<8x128xf32> to vector<8x128xbf16>
    %cst_30 = arith.constant 0.000000e+00 : bf16
    %59 = vector.broadcast %cst_30 : bf16 to vector<1x128xbf16>
    %60 = tpu.concatenate %59, %23, %59 in 0 : vector<1x128xbf16>, vector<8x128xbf16>, vector<1x128xbf16> -> vector<10x128xbf16>
    %61 = vector.extract_strided_slice %60 {offsets = [0, 0], sizes = [8, 128], strides = [1, 1]} : vector<10x128xbf16> to vector<8x128xbf16>
    %62 = vector.extract_strided_slice %60 {offsets = [1, 0], sizes = [8, 128], strides = [1, 1]} : vector<10x128xbf16> to vector<8x128xbf16>
    %63 = vector.extract_strided_slice %60 {offsets = [2, 0], sizes = [8, 128], strides = [1, 1]} : vector<10x128xbf16> to vector<8x128xbf16>
    %64 = tpu.concatenate %59, %38, %59 in 0 : vector<1x128xbf16>, vector<8x128xbf16>, vector<1x128xbf16> -> vector<10x128xbf16>
    %65 = vector.extract_strided_slice %64 {offsets = [0, 0], sizes = [8, 128], strides = [1, 1]} : vector<10x128xbf16> to vector<8x128xbf16>
    %66 = vector.extract_strided_slice %64 {offsets = [1, 0], sizes = [8, 128], strides = [1, 1]} : vector<10x128xbf16> to vector<8x128xbf16>
    %67 = vector.extract_strided_slice %64 {offsets = [2, 0], sizes = [8, 128], strides = [1, 1]} : vector<10x128xbf16> to vector<8x128xbf16>
    %68 = tpu.concatenate %59, %58, %59 in 0 : vector<1x128xbf16>, vector<8x128xbf16>, vector<1x128xbf16> -> vector<10x128xbf16>
    %69 = vector.extract_strided_slice %68 {offsets = [0, 0], sizes = [8, 128], strides = [1, 1]} : vector<10x128xbf16> to vector<8x128xbf16>
    %70 = vector.extract_strided_slice %68 {offsets = [1, 0], sizes = [8, 128], strides = [1, 1]} : vector<10x128xbf16> to vector<8x128xbf16>
    %71 = vector.extract_strided_slice %68 {offsets = [2, 0], sizes = [8, 128], strides = [1, 1]} : vector<10x128xbf16> to vector<8x128xbf16>
    %72 = tpu.concatenate %61, %62, %63, %65, %66, %67, %69, %70, %71 in 1 : vector<8x128xbf16>, vector<8x128xbf16>, vector<8x128xbf16>, vector<8x128xbf16>, vector<8x128xbf16>, vector<8x128xbf16>, vector<8x128xbf16>, vector<8x128xbf16>, vector<8x128xbf16> -> vector<8x1152xbf16>
    %c0_31 = arith.constant 0 : index
    %c0_32 = arith.constant 0 : index
    %73 = vector.load %arg8[%c0_31, %c0_32] : memref<1152x128xbf16, #tpu.memory_space<vmem>>, vector<1152x128xbf16>
    %cst_33 = arith.constant dense<0.000000e+00> : vector<8x128xf32>
    %74 = tpu.matmul %72, %73, %cst_33 {dimension_numbers = #tpu.dot_dimension_numbers<[1], [0], [0], [1], [0, 0, 1, 1], [], []>} : vector<8x1152xbf16>, vector<1152x128xbf16>, vector<8x128xf32> -> vector<8x128xf32>
    %c0_34 = arith.constant 0 : index
    %c0_35 = arith.constant 0 : index
    %75 = vector.load %arg9[%c0_34, %c0_35] : memref<1x128xf32, #tpu.memory_space<vmem>>, vector<1x128xf32>
    %76 = vector.broadcast %75 : vector<1x128xf32> to vector<8x128xf32>
    %77 = arith.addf %74, %76 : vector<8x128xf32>
    %78 = arith.truncf %77 : vector<8x128xf32> to vector<8x128xbf16>
    %c0_36 = arith.constant 0 : index
    %c0_37 = arith.constant 0 : index
    %c0_38 = arith.constant 0 : index
    %c0_39 = arith.constant 0 : index
    %c0_40 = arith.constant 0 : index
    %79 = vector.load %arg10[%c0_36, %c0_37, %c0_38, %c0_39, %c0_40] : memref<1x1x1x8x128xbf16, #tpu.memory_space<vmem>>, vector<1x1x1x8x128xbf16>
    %80 = vector.shape_cast %79 : vector<1x1x1x8x128xbf16> to vector<8x128xbf16>
    %81 = vector.shape_cast %78 : vector<8x128xbf16> to vector<1x1x1x8x128xbf16>
    tpu.vector_store %arg10[%c0_36, %c0_37, %c0_38, %c0_39, %c0_40], %81 {strides = array<i32>} : memref<1x1x1x8x128xbf16, #tpu.memory_space<vmem>>, vector<1x1x1x8x128xbf16>,
    return
  }
  func.func @transform_0(%arg0: i32, %arg1: i32, %arg2: i32) -> (i32, i32, i32, i32, i32) {
    %c0_i32 = arith.constant 0 : i32
    %0 = arith.addi %arg2, %c0_i32 : i32
    %c1_i32 = arith.constant 1 : i32
    %1 = arith.subi %0, %c1_i32 : i32
    %c0_i32_0 = arith.constant 0 : i32
    %c7_i32 = arith.constant 7 : i32
    %2 = arith.maxsi %c0_i32_0, %1 : i32
    %3 = arith.minsi %c7_i32, %2 : i32
    %c0_i32_1 = arith.constant 0 : i32
    %c0_i32_2 = arith.constant 0 : i32
    %c0_i32_3 = arith.constant 0 : i32
    return %arg0, %arg1, %3, %c0_i32_1, %c0_i32_2 : i32, i32, i32, i32, i32
  }
  func.func @transform_1(%arg0: i32, %arg1: i32, %arg2: i32) -> (i32, i32, i32, i32, i32) {
    %c1_i32 = arith.constant 1 : i32
    %0 = arith.addi %arg2, %c1_i32 : i32
    %c1_i32_0 = arith.constant 1 : i32
    %1 = arith.subi %0, %c1_i32_0 : i32
    %c0_i32 = arith.constant 0 : i32
    %c7_i32 = arith.constant 7 : i32
    %2 = arith.maxsi %c0_i32, %1 : i32
    %3 = arith.minsi %c7_i32, %2 : i32
    %c0_i32_1 = arith.constant 0 : i32
    %c0_i32_2 = arith.constant 0 : i32
    %c0_i32_3 = arith.constant 0 : i32
    return %arg0, %arg1, %3, %c0_i32_1, %c0_i32_2 : i32, i32, i32, i32, i32
  }
  func.func @transform_2(%arg0: i32, %arg1: i32, %arg2: i32) -> (i32, i32, i32, i32, i32) {
    %c2_i32 = arith.constant 2 : i32
    %0 = arith.addi %arg2, %c2_i32 : i32
    %c1_i32 = arith.constant 1 : i32
    %1 = arith.subi %0, %c1_i32 : i32
    %c0_i32 = arith.constant 0 : i32
    %c7_i32 = arith.constant 7 : i32
    %2 = arith.maxsi %c0_i32, %1 : i32
    %3 = arith.minsi %c7_i32, %2 : i32
    %c0_i32_0 = arith.constant 0 : i32
    %c0_i32_1 = arith.constant 0 : i32
    %c0_i32_2 = arith.constant 0 : i32
    return %arg0, %arg1, %3, %c0_i32_0, %c0_i32_1 : i32, i32, i32, i32, i32
  }
  func.func @transform_3(%arg0: i32, %arg1: i32, %arg2: i32) -> (i32, i32, i32, i32) {
    %c0_i32 = arith.constant 0 : i32
    %c0_i32_0 = arith.constant 0 : i32
    %c0_i32_1 = arith.constant 0 : i32
    return %arg0, %arg1, %c0_i32, %c0_i32_0 : i32, i32, i32, i32
  }
  func.func @transform_4(%arg0: i32, %arg1: i32, %arg2: i32) -> (i32, i32, i32, i32) {
    %c0_i32 = arith.constant 0 : i32
    %c0_i32_0 = arith.constant 0 : i32
    %c0_i32_1 = arith.constant 0 : i32
    return %arg0, %arg1, %c0_i32, %c0_i32_0 : i32, i32, i32, i32
  }
  func.func @transform_5(%arg0: i32, %arg1: i32, %arg2: i32) -> (i32, i32) {
    %c0_i32 = arith.constant 0 : i32
    %c0_i32_0 = arith.constant 0 : i32
    %c0_i32_1 = arith.constant 0 : i32
    return %c0_i32, %c0_i32_0 : i32, i32
  }
  func.func @transform_6(%arg0: i32, %arg1: i32, %arg2: i32) -> (i32, i32) {
    %c0_i32 = arith.constant 0 : i32
    %c0_i32_0 = arith.constant 0 : i32
    %c0_i32_1 = arith.constant 0 : i32
    return %c0_i32, %c0_i32_0 : i32, i32
  }
  func.func @transform_7(%arg0: i32, %arg1: i32, %arg2: i32) -> (i32, i32, i32, i32, i32) {
    %c0_i32 = arith.constant 0 : i32
    %c0_i32_0 = arith.constant 0 : i32
    %c0_i32_1 = arith.constant 0 : i32
    return %arg0, %arg1, %arg2, %c0_i32, %c0_i32_0 : i32, i32, i32, i32, i32
  }
}

module attributes {stable_mosaic.version = 11 : i64} {
  func.func @_temporal_conv3_kernel(%arg0: i32, %arg1: i32, %arg2: i32, %arg3: memref<1x1x1x8x128xbf16, #tpu.memory_space<vmem>>, %arg4: memref<1x1x1x8x128xbf16, #tpu.memory_space<vmem>>, %arg5: memref<1x1x1x8x128xbf16, #tpu.memory_space<vmem>>, %arg6: memref<384x128xbf16, #tpu.memory_space<vmem>>, %arg7: memref<1x128xf32, #tpu.memory_space<vmem>>, %arg8: memref<1x1x1x8x128xbf16, #tpu.memory_space<vmem>>) attributes {dimension_semantics = [#tpu.dimension_semantics<parallel>, #tpu.dimension_semantics<parallel>, #tpu.dimension_semantics<parallel>], iteration_bounds = array<i64: 2, 4, 8>, scalar_prefetch = 0 : i64, scratch_operands = 0 : i64, tpu.core_type = #tpu.core_type<tc>, window_params = [{transform_indices = @transform_0, window_bounds = array<i64: 1, 1, 1, 8, 128>}, {transform_indices = @transform_1, window_bounds = array<i64: 1, 1, 1, 8, 128>}, {transform_indices = @transform_2, window_bounds = array<i64: 1, 1, 1, 8, 128>}, {pipeline_mode = #tpu.pipeline_mode<synchronous>, transform_indices = @transform_3, window_bounds = array<i64: 384, 128>}, {pipeline_mode = #tpu.pipeline_mode<synchronous>, transform_indices = @transform_4, window_bounds = array<i64: 1, 128>}, {transform_indices = @transform_5, window_bounds = array<i64: 1, 1, 1, 8, 128>}]} {
    %c0 = arith.constant 0 : index
    %c0_0 = arith.constant 0 : index
    %c0_1 = arith.constant 0 : index
    %c0_2 = arith.constant 0 : index
    %c0_3 = arith.constant 0 : index
    %0 = vector.load %arg3[%c0, %c0_0, %c0_1, %c0_2, %c0_3] : memref<1x1x1x8x128xbf16, #tpu.memory_space<vmem>>, vector<1x1x1x8x128xbf16>
    %1 = vector.shape_cast %0 : vector<1x1x1x8x128xbf16> to vector<8x128xbf16>
    %c0_4 = arith.constant 0 : index
    %c0_5 = arith.constant 0 : index
    %c0_6 = arith.constant 0 : index
    %c0_7 = arith.constant 0 : index
    %c0_8 = arith.constant 0 : index
    %2 = vector.load %arg4[%c0_4, %c0_5, %c0_6, %c0_7, %c0_8] : memref<1x1x1x8x128xbf16, #tpu.memory_space<vmem>>, vector<1x1x1x8x128xbf16>
    %3 = vector.shape_cast %2 : vector<1x1x1x8x128xbf16> to vector<8x128xbf16>
    %c0_9 = arith.constant 0 : index
    %c0_10 = arith.constant 0 : index
    %c0_11 = arith.constant 0 : index
    %c0_12 = arith.constant 0 : index
    %c0_13 = arith.constant 0 : index
    %4 = vector.load %arg5[%c0_9, %c0_10, %c0_11, %c0_12, %c0_13] : memref<1x1x1x8x128xbf16, #tpu.memory_space<vmem>>, vector<1x1x1x8x128xbf16>
    %5 = vector.shape_cast %4 : vector<1x1x1x8x128xbf16> to vector<8x128xbf16>
    %6 = tpu.concatenate %1, %3, %5 in 1 : vector<8x128xbf16>, vector<8x128xbf16>, vector<8x128xbf16> -> vector<8x384xbf16>
    %c0_14 = arith.constant 0 : index
    %c0_15 = arith.constant 0 : index
    %7 = vector.load %arg6[%c0_14, %c0_15] : memref<384x128xbf16, #tpu.memory_space<vmem>>, vector<384x128xbf16>
    %cst = arith.constant dense<0.000000e+00> : vector<8x128xf32>
    %8 = tpu.matmul %6, %7, %cst {dimension_numbers = #tpu.dot_dimension_numbers<[1], [0], [0], [1], [0, 0, 1, 1], [], []>} : vector<8x384xbf16>, vector<384x128xbf16>, vector<8x128xf32> -> vector<8x128xf32>
    %c0_16 = arith.constant 0 : index
    %c0_17 = arith.constant 0 : index
    %9 = vector.load %arg7[%c0_16, %c0_17] : memref<1x128xf32, #tpu.memory_space<vmem>>, vector<1x128xf32>
    %10 = vector.broadcast %9 : vector<1x128xf32> to vector<8x128xf32>
    %11 = arith.addf %8, %10 : vector<8x128xf32>
    %12 = arith.truncf %11 : vector<8x128xf32> to vector<8x128xbf16>
    %c0_18 = arith.constant 0 : index
    %c0_19 = arith.constant 0 : index
    %c0_20 = arith.constant 0 : index
    %c0_21 = arith.constant 0 : index
    %c0_22 = arith.constant 0 : index
    %13 = vector.load %arg8[%c0_18, %c0_19, %c0_20, %c0_21, %c0_22] : memref<1x1x1x8x128xbf16, #tpu.memory_space<vmem>>, vector<1x1x1x8x128xbf16>
    %14 = vector.shape_cast %13 : vector<1x1x1x8x128xbf16> to vector<8x128xbf16>
    %15 = vector.shape_cast %12 : vector<8x128xbf16> to vector<1x1x1x8x128xbf16>
    tpu.vector_store %arg8[%c0_18, %c0_19, %c0_20, %c0_21, %c0_22], %15 {strides = array<i32>} : memref<1x1x1x8x128xbf16, #tpu.memory_space<vmem>>, vector<1x1x1x8x128xbf16>,
    return
  }
  func.func @transform_0(%arg0: i32, %arg1: i32, %arg2: i32) -> (i32, i32, i32, i32, i32) {
    %c0_i32 = arith.constant 0 : i32
    %0 = arith.addi %arg1, %c0_i32 : i32
    %c1_i32 = arith.constant 1 : i32
    %1 = arith.subi %0, %c1_i32 : i32
    %c0_i32_0 = arith.constant 0 : i32
    %c3_i32 = arith.constant 3 : i32
    %2 = arith.maxsi %c0_i32_0, %1 : i32
    %3 = arith.minsi %c3_i32, %2 : i32
    %c0_i32_1 = arith.constant 0 : i32
    %c0_i32_2 = arith.constant 0 : i32
    %c0_i32_3 = arith.constant 0 : i32
    return %arg0, %3, %arg2, %c0_i32_1, %c0_i32_2 : i32, i32, i32, i32, i32
  }
  func.func @transform_1(%arg0: i32, %arg1: i32, %arg2: i32) -> (i32, i32, i32, i32, i32) {
    %c1_i32 = arith.constant 1 : i32
    %0 = arith.addi %arg1, %c1_i32 : i32
    %c1_i32_0 = arith.constant 1 : i32
    %1 = arith.subi %0, %c1_i32_0 : i32
    %c0_i32 = arith.constant 0 : i32
    %c3_i32 = arith.constant 3 : i32
    %2 = arith.maxsi %c0_i32, %1 : i32
    %3 = arith.minsi %c3_i32, %2 : i32
    %c0_i32_1 = arith.constant 0 : i32
    %c0_i32_2 = arith.constant 0 : i32
    %c0_i32_3 = arith.constant 0 : i32
    return %arg0, %3, %arg2, %c0_i32_1, %c0_i32_2 : i32, i32, i32, i32, i32
  }
  func.func @transform_2(%arg0: i32, %arg1: i32, %arg2: i32) -> (i32, i32, i32, i32, i32) {
    %c2_i32 = arith.constant 2 : i32
    %0 = arith.addi %arg1, %c2_i32 : i32
    %c1_i32 = arith.constant 1 : i32
    %1 = arith.subi %0, %c1_i32 : i32
    %c0_i32 = arith.constant 0 : i32
    %c3_i32 = arith.constant 3 : i32
    %2 = arith.maxsi %c0_i32, %1 : i32
    %3 = arith.minsi %c3_i32, %2 : i32
    %c0_i32_0 = arith.constant 0 : i32
    %c0_i32_1 = arith.constant 0 : i32
    %c0_i32_2 = arith.constant 0 : i32
    return %arg0, %3, %arg2, %c0_i32_0, %c0_i32_1 : i32, i32, i32, i32, i32
  }
  func.func @transform_3(%arg0: i32, %arg1: i32, %arg2: i32) -> (i32, i32) {
    %c0_i32 = arith.constant 0 : i32
    %c0_i32_0 = arith.constant 0 : i32
    %c0_i32_1 = arith.constant 0 : i32
    return %c0_i32, %c0_i32_0 : i32, i32
  }
  func.func @transform_4(%arg0: i32, %arg1: i32, %arg2: i32) -> (i32, i32) {
    %c0_i32 = arith.constant 0 : i32
    %c0_i32_0 = arith.constant 0 : i32
    %c0_i32_1 = arith.constant 0 : i32
    return %c0_i32, %c0_i32_0 : i32, i32
  }
  func.func @transform_5(%arg0: i32, %arg1: i32, %arg2: i32) -> (i32, i32, i32, i32, i32) {
    %c0_i32 = arith.constant 0 : i32
    %c0_i32_0 = arith.constant 0 : i32
    %c0_i32_1 = arith.constant 0 : i32
    return %arg0, %arg1, %arg2, %c0_i32, %c0_i32_0 : i32, i32, i32, i32, i32
  }
}

module attributes {stable_mosaic.version = 11 : i64} {
  func.func @_gn_stats_kernel(%arg0: i32, %arg1: i32, %arg2: i32, %arg3: memref<1x1x1x8x128xbf16, #tpu.memory_space<vmem>>, %arg4: memref<1x1x1x128xf32, #tpu.memory_space<vmem>>, %arg5: memref<1x1x1x128xf32, #tpu.memory_space<vmem>>) attributes {dimension_semantics = [#tpu.dimension_semantics<parallel>, #tpu.dimension_semantics<parallel>, #tpu.dimension_semantics<arbitrary>], iteration_bounds = array<i64: 2, 4, 8>, scalar_prefetch = 0 : i64, scratch_operands = 0 : i64, tpu.core_type = #tpu.core_type<tc>, window_params = [{transform_indices = @transform_0, window_bounds = array<i64: 1, 1, 1, 8, 128>}, {transform_indices = @transform_1, window_bounds = array<i64: 1, 1, 1, 128>}, {transform_indices = @transform_2, window_bounds = array<i64: 1, 1, 1, 128>}]} {
    %c0_i32 = arith.constant 0 : i32
    %0 = arith.cmpi eq, %arg2, %c0_i32 : i32
    %1 = arith.extui %0 : i1 to i32
    %c0_i32_0 = arith.constant 0 : i32
    %2 = arith.cmpi ne, %1, %c0_i32_0 : i32
    scf.if %2 {
      %cst_22 = arith.constant 0.000000e+00 : f32
      %23 = vector.broadcast %cst_22 : f32 to vector<1x1x1x128xf32>
      %c0_23 = arith.constant 0 : index
      %c0_24 = arith.constant 0 : index
      %c0_25 = arith.constant 0 : index
      %c0_26 = arith.constant 0 : index
      %24 = vector.load %arg4[%c0_23, %c0_24, %c0_25, %c0_26] : memref<1x1x1x128xf32, #tpu.memory_space<vmem>>, vector<1x1x1x128xf32>
      tpu.vector_store %arg4[%c0_23, %c0_24, %c0_25, %c0_26], %23 {strides = array<i32>} : memref<1x1x1x128xf32, #tpu.memory_space<vmem>>, vector<1x1x1x128xf32>,
      %cst_27 = arith.constant 0.000000e+00 : f32
      %25 = vector.broadcast %cst_27 : f32 to vector<1x1x1x128xf32>
      %c0_28 = arith.constant 0 : index
      %c0_29 = arith.constant 0 : index
      %c0_30 = arith.constant 0 : index
      %c0_31 = arith.constant 0 : index
      %26 = vector.load %arg5[%c0_28, %c0_29, %c0_30, %c0_31] : memref<1x1x1x128xf32, #tpu.memory_space<vmem>>, vector<1x1x1x128xf32>
      tpu.vector_store %arg5[%c0_28, %c0_29, %c0_30, %c0_31], %25 {strides = array<i32>} : memref<1x1x1x128xf32, #tpu.memory_space<vmem>>, vector<1x1x1x128xf32>,
    } else {
    }
    %c0 = arith.constant 0 : index
    %c0_1 = arith.constant 0 : index
    %c0_2 = arith.constant 0 : index
    %c0_3 = arith.constant 0 : index
    %c0_4 = arith.constant 0 : index
    %3 = vector.load %arg3[%c0, %c0_1, %c0_2, %c0_3, %c0_4] : memref<1x1x1x8x128xbf16, #tpu.memory_space<vmem>>, vector<1x1x1x8x128xbf16>
    %4 = vector.shape_cast %3 : vector<1x1x1x8x128xbf16> to vector<8x128xbf16>
    %5 = arith.extf %4 : vector<8x128xbf16> to vector<8x128xf32>
    %c0_5 = arith.constant 0 : index
    %c0_6 = arith.constant 0 : index
    %c0_7 = arith.constant 0 : index
    %c0_8 = arith.constant 0 : index
    %6 = vector.load %arg4[%c0_5, %c0_6, %c0_7, %c0_8] : memref<1x1x1x128xf32, #tpu.memory_space<vmem>>, vector<1x1x1x128xf32>
    %7 = vector.shape_cast %6 : vector<1x1x1x128xf32> to vector<1x128xf32>
    %cst = arith.constant dense<0.000000e+00> : vector<128xf32>
    %8 = vector.multi_reduction <add>, %5, %cst [0] : vector<8x128xf32> to vector<128xf32>
    %9 = vector.shape_cast %8 : vector<128xf32> to vector<1x128xf32>
    %10 = arith.addf %7, %9 : vector<1x128xf32>
    %c0_9 = arith.constant 0 : index
    %c0_10 = arith.constant 0 : index
    %c0_11 = arith.constant 0 : index
    %c0_12 = arith.constant 0 : index
    %11 = vector.load %arg4[%c0_9, %c0_10, %c0_11, %c0_12] : memref<1x1x1x128xf32, #tpu.memory_space<vmem>>, vector<1x1x1x128xf32>
    %12 = vector.shape_cast %11 : vector<1x1x1x128xf32> to vector<1x128xf32>
    %13 = vector.shape_cast %10 : vector<1x128xf32> to vector<1x1x1x128xf32>
    tpu.vector_store %arg4[%c0_9, %c0_10, %c0_11, %c0_12], %13 {strides = array<i32>} : memref<1x1x1x128xf32, #tpu.memory_space<vmem>>, vector<1x1x1x128xf32>,
    %c0_13 = arith.constant 0 : index
    %c0_14 = arith.constant 0 : index
    %c0_15 = arith.constant 0 : index
    %c0_16 = arith.constant 0 : index
    %14 = vector.load %arg5[%c0_13, %c0_14, %c0_15, %c0_16] : memref<1x1x1x128xf32, #tpu.memory_space<vmem>>, vector<1x1x1x128xf32>
    %15 = vector.shape_cast %14 : vector<1x1x1x128xf32> to vector<1x128xf32>
    %16 = arith.mulf %5, %5 : vector<8x128xf32>
    %cst_17 = arith.constant dense<0.000000e+00> : vector<128xf32>
    %17 = vector.multi_reduction <add>, %16, %cst_17 [0] : vector<8x128xf32> to vector<128xf32>
    %18 = vector.shape_cast %17 : vector<128xf32> to vector<1x128xf32>
    %19 = arith.addf %15, %18 : vector<1x128xf32>
    %c0_18 = arith.constant 0 : index
    %c0_19 = arith.constant 0 : index
    %c0_20 = arith.constant 0 : index
    %c0_21 = arith.constant 0 : index
    %20 = vector.load %arg5[%c0_18, %c0_19, %c0_20, %c0_21] : memref<1x1x1x128xf32, #tpu.memory_space<vmem>>, vector<1x1x1x128xf32>
    %21 = vector.shape_cast %20 : vector<1x1x1x128xf32> to vector<1x128xf32>
    %22 = vector.shape_cast %19 : vector<1x128xf32> to vector<1x1x1x128xf32>
    tpu.vector_store %arg5[%c0_18, %c0_19, %c0_20, %c0_21], %22 {strides = array<i32>} : memref<1x1x1x128xf32, #tpu.memory_space<vmem>>, vector<1x1x1x128xf32>,
    return
  }
  func.func @transform_0(%arg0: i32, %arg1: i32, %arg2: i32) -> (i32, i32, i32, i32, i32) {
    %c0_i32 = arith.constant 0 : i32
    %c0_i32_0 = arith.constant 0 : i32
    %c0_i32_1 = arith.constant 0 : i32
    return %arg0, %arg1, %arg2, %c0_i32, %c0_i32_0 : i32, i32, i32, i32, i32
  }
  func.func @transform_1(%arg0: i32, %arg1: i32, %arg2: i32) -> (i32, i32, i32, i32) {
    %c0_i32 = arith.constant 0 : i32
    %c0_i32_0 = arith.constant 0 : i32
    %c0_i32_1 = arith.constant 0 : i32
    return %arg0, %arg1, %c0_i32, %c0_i32_0 : i32, i32, i32, i32
  }
  func.func @transform_2(%arg0: i32, %arg1: i32, %arg2: i32) -> (i32, i32, i32, i32) {
    %c0_i32 = arith.constant 0 : i32
    %c0_i32_0 = arith.constant 0 : i32
    %c0_i32_1 = arith.constant 0 : i32
    return %arg0, %arg1, %c0_i32, %c0_i32_0 : i32, i32, i32, i32
  }
}

module attributes {stable_mosaic.version = 11 : i64} {
  func.func @_norm_swish_conv3x3_kernel(%arg0: i32, %arg1: i32, %arg2: i32, %arg3: memref<1x1x1x8x128xbf16, #tpu.memory_space<vmem>>, %arg4: memref<1x1x1x8x128xbf16, #tpu.memory_space<vmem>>, %arg5: memref<1x1x1x8x128xbf16, #tpu.memory_space<vmem>>, %arg6: memref<1x1x1x128xf32, #tpu.memory_space<vmem>>, %arg7: memref<1x1x1x128xf32, #tpu.memory_space<vmem>>, %arg8: memref<1152x128xbf16, #tpu.memory_space<vmem>>, %arg9: memref<1x128xf32, #tpu.memory_space<vmem>>, %arg10: memref<1x1x1x8x128xbf16, #tpu.memory_space<vmem>>) attributes {dimension_semantics = [#tpu.dimension_semantics<parallel>, #tpu.dimension_semantics<parallel>, #tpu.dimension_semantics<parallel>], iteration_bounds = array<i64: 2, 4, 8>, scalar_prefetch = 0 : i64, scratch_operands = 0 : i64, tpu.core_type = #tpu.core_type<tc>, window_params = [{transform_indices = @transform_0, window_bounds = array<i64: 1, 1, 1, 8, 128>}, {transform_indices = @transform_1, window_bounds = array<i64: 1, 1, 1, 8, 128>}, {transform_indices = @transform_2, window_bounds = array<i64: 1, 1, 1, 8, 128>}, {transform_indices = @transform_3, window_bounds = array<i64: 1, 1, 1, 128>}, {transform_indices = @transform_4, window_bounds = array<i64: 1, 1, 1, 128>}, {pipeline_mode = #tpu.pipeline_mode<synchronous>, transform_indices = @transform_5, window_bounds = array<i64: 1152, 128>}, {pipeline_mode = #tpu.pipeline_mode<synchronous>, transform_indices = @transform_6, window_bounds = array<i64: 1, 128>}, {transform_indices = @transform_7, window_bounds = array<i64: 1, 1, 1, 8, 128>}]} {
    %c0 = arith.constant 0 : index
    %c0_0 = arith.constant 0 : index
    %c0_1 = arith.constant 0 : index
    %c0_2 = arith.constant 0 : index
    %0 = vector.load %arg6[%c0, %c0_0, %c0_1, %c0_2] : memref<1x1x1x128xf32, #tpu.memory_space<vmem>>, vector<1x1x1x128xf32>
    %1 = vector.shape_cast %0 : vector<1x1x1x128xf32> to vector<1x128xf32>
    %c0_3 = arith.constant 0 : index
    %c0_4 = arith.constant 0 : index
    %c0_5 = arith.constant 0 : index
    %c0_6 = arith.constant 0 : index
    %2 = vector.load %arg7[%c0_3, %c0_4, %c0_5, %c0_6] : memref<1x1x1x128xf32, #tpu.memory_space<vmem>>, vector<1x1x1x128xf32>
    %3 = vector.shape_cast %2 : vector<1x1x1x128xf32> to vector<1x128xf32>
    %c0_i32 = arith.constant 0 : i32
    %4 = arith.cmpi sgt, %arg2, %c0_i32 : i32
    %c0_7 = arith.constant 0 : index
    %c0_8 = arith.constant 0 : index
    %c0_9 = arith.constant 0 : index
    %c0_10 = arith.constant 0 : index
    %c0_11 = arith.constant 0 : index
    %5 = vector.load %arg3[%c0_7, %c0_8, %c0_9, %c0_10, %c0_11] : memref<1x1x1x8x128xbf16, #tpu.memory_space<vmem>>, vector<1x1x1x8x128xbf16>
    %6 = vector.shape_cast %5 : vector<1x1x1x8x128xbf16> to vector<8x128xbf16>
    %7 = arith.extf %6 : vector<8x128xbf16> to vector<8x128xf32>
    %8 = vector.broadcast %1 : vector<1x128xf32> to vector<8x128xf32>
    %9 = arith.mulf %7, %8 : vector<8x128xf32>
    %10 = vector.broadcast %3 : vector<1x128xf32> to vector<8x128xf32>
    %11 = arith.addf %9, %10 : vector<8x128xf32>
    %cst = arith.constant 0.000000e+00 : f32
    %12 = vector.broadcast %cst : f32 to vector<8x128xf32>
    %13 = arith.subf %12, %11 : vector<8x128xf32>
    %14 = math.exp %13 : vector<8x128xf32>
    %cst_12 = arith.constant 1.000000e+00 : f32
    %15 = vector.broadcast %cst_12 : f32 to vector<8x128xf32>
    %16 = arith.addf %15, %14 : vector<8x128xf32>
    %cst_13 = arith.constant 1.000000e+00 : f32
    %17 = vector.broadcast %cst_13 : f32 to vector<8x128xf32>
    %18 = arith.divf %17, %16 : vector<8x128xf32>
    %19 = arith.mulf %11, %18 : vector<8x128xf32>
    %20 = arith.extui %4 : i1 to i32
    %21 = arith.sitofp %20 : i32 to f32
    %22 = vector.broadcast %21 : f32 to vector<8x128xf32>
    %23 = arith.mulf %19, %22 : vector<8x128xf32>
    %24 = arith.truncf %23 : vector<8x128xf32> to vector<8x128xbf16>
    %c0_14 = arith.constant 0 : index
    %c0_15 = arith.constant 0 : index
    %c0_16 = arith.constant 0 : index
    %c0_17 = arith.constant 0 : index
    %c0_18 = arith.constant 0 : index
    %25 = vector.load %arg4[%c0_14, %c0_15, %c0_16, %c0_17, %c0_18] : memref<1x1x1x8x128xbf16, #tpu.memory_space<vmem>>, vector<1x1x1x8x128xbf16>
    %26 = vector.shape_cast %25 : vector<1x1x1x8x128xbf16> to vector<8x128xbf16>
    %27 = arith.extf %26 : vector<8x128xbf16> to vector<8x128xf32>
    %28 = vector.broadcast %1 : vector<1x128xf32> to vector<8x128xf32>
    %29 = arith.mulf %27, %28 : vector<8x128xf32>
    %30 = vector.broadcast %3 : vector<1x128xf32> to vector<8x128xf32>
    %31 = arith.addf %29, %30 : vector<8x128xf32>
    %cst_19 = arith.constant 0.000000e+00 : f32
    %32 = vector.broadcast %cst_19 : f32 to vector<8x128xf32>
    %33 = arith.subf %32, %31 : vector<8x128xf32>
    %34 = math.exp %33 : vector<8x128xf32>
    %cst_20 = arith.constant 1.000000e+00 : f32
    %35 = vector.broadcast %cst_20 : f32 to vector<8x128xf32>
    %36 = arith.addf %35, %34 : vector<8x128xf32>
    %cst_21 = arith.constant 1.000000e+00 : f32
    %37 = vector.broadcast %cst_21 : f32 to vector<8x128xf32>
    %38 = arith.divf %37, %36 : vector<8x128xf32>
    %39 = arith.mulf %31, %38 : vector<8x128xf32>
    %40 = arith.truncf %39 : vector<8x128xf32> to vector<8x128xbf16>
    %c7_i32 = arith.constant 7 : i32
    %41 = arith.cmpi slt, %arg2, %c7_i32 : i32
    %c0_22 = arith.constant 0 : index
    %c0_23 = arith.constant 0 : index
    %c0_24 = arith.constant 0 : index
    %c0_25 = arith.constant 0 : index
    %c0_26 = arith.constant 0 : index
    %42 = vector.load %arg5[%c0_22, %c0_23, %c0_24, %c0_25, %c0_26] : memref<1x1x1x8x128xbf16, #tpu.memory_space<vmem>>, vector<1x1x1x8x128xbf16>
    %43 = vector.shape_cast %42 : vector<1x1x1x8x128xbf16> to vector<8x128xbf16>
    %44 = arith.extf %43 : vector<8x128xbf16> to vector<8x128xf32>
    %45 = vector.broadcast %1 : vector<1x128xf32> to vector<8x128xf32>
    %46 = arith.mulf %44, %45 : vector<8x128xf32>
    %47 = vector.broadcast %3 : vector<1x128xf32> to vector<8x128xf32>
    %48 = arith.addf %46, %47 : vector<8x128xf32>
    %cst_27 = arith.constant 0.000000e+00 : f32
    %49 = vector.broadcast %cst_27 : f32 to vector<8x128xf32>
    %50 = arith.subf %49, %48 : vector<8x128xf32>
    %51 = math.exp %50 : vector<8x128xf32>
    %cst_28 = arith.constant 1.000000e+00 : f32
    %52 = vector.broadcast %cst_28 : f32 to vector<8x128xf32>
    %53 = arith.addf %52, %51 : vector<8x128xf32>
    %cst_29 = arith.constant 1.000000e+00 : f32
    %54 = vector.broadcast %cst_29 : f32 to vector<8x128xf32>
    %55 = arith.divf %54, %53 : vector<8x128xf32>
    %56 = arith.mulf %48, %55 : vector<8x128xf32>
    %57 = arith.extui %41 : i1 to i32
    %58 = arith.sitofp %57 : i32 to f32
    %59 = vector.broadcast %58 : f32 to vector<8x128xf32>
    %60 = arith.mulf %56, %59 : vector<8x128xf32>
    %61 = arith.truncf %60 : vector<8x128xf32> to vector<8x128xbf16>
    %cst_30 = arith.constant 0.000000e+00 : bf16
    %62 = vector.broadcast %cst_30 : bf16 to vector<1x128xbf16>
    %63 = tpu.concatenate %62, %24, %62 in 0 : vector<1x128xbf16>, vector<8x128xbf16>, vector<1x128xbf16> -> vector<10x128xbf16>
    %64 = vector.extract_strided_slice %63 {offsets = [0, 0], sizes = [8, 128], strides = [1, 1]} : vector<10x128xbf16> to vector<8x128xbf16>
    %65 = vector.extract_strided_slice %63 {offsets = [1, 0], sizes = [8, 128], strides = [1, 1]} : vector<10x128xbf16> to vector<8x128xbf16>
    %66 = vector.extract_strided_slice %63 {offsets = [2, 0], sizes = [8, 128], strides = [1, 1]} : vector<10x128xbf16> to vector<8x128xbf16>
    %67 = tpu.concatenate %62, %40, %62 in 0 : vector<1x128xbf16>, vector<8x128xbf16>, vector<1x128xbf16> -> vector<10x128xbf16>
    %68 = vector.extract_strided_slice %67 {offsets = [0, 0], sizes = [8, 128], strides = [1, 1]} : vector<10x128xbf16> to vector<8x128xbf16>
    %69 = vector.extract_strided_slice %67 {offsets = [1, 0], sizes = [8, 128], strides = [1, 1]} : vector<10x128xbf16> to vector<8x128xbf16>
    %70 = vector.extract_strided_slice %67 {offsets = [2, 0], sizes = [8, 128], strides = [1, 1]} : vector<10x128xbf16> to vector<8x128xbf16>
    %71 = tpu.concatenate %62, %61, %62 in 0 : vector<1x128xbf16>, vector<8x128xbf16>, vector<1x128xbf16> -> vector<10x128xbf16>
    %72 = vector.extract_strided_slice %71 {offsets = [0, 0], sizes = [8, 128], strides = [1, 1]} : vector<10x128xbf16> to vector<8x128xbf16>
    %73 = vector.extract_strided_slice %71 {offsets = [1, 0], sizes = [8, 128], strides = [1, 1]} : vector<10x128xbf16> to vector<8x128xbf16>
    %74 = vector.extract_strided_slice %71 {offsets = [2, 0], sizes = [8, 128], strides = [1, 1]} : vector<10x128xbf16> to vector<8x128xbf16>
    %75 = tpu.concatenate %64, %65, %66, %68, %69, %70, %72, %73, %74 in 1 : vector<8x128xbf16>, vector<8x128xbf16>, vector<8x128xbf16>, vector<8x128xbf16>, vector<8x128xbf16>, vector<8x128xbf16>, vector<8x128xbf16>, vector<8x128xbf16>, vector<8x128xbf16> -> vector<8x1152xbf16>
    %c0_31 = arith.constant 0 : index
    %c0_32 = arith.constant 0 : index
    %76 = vector.load %arg8[%c0_31, %c0_32] : memref<1152x128xbf16, #tpu.memory_space<vmem>>, vector<1152x128xbf16>
    %cst_33 = arith.constant dense<0.000000e+00> : vector<8x128xf32>
    %77 = tpu.matmul %75, %76, %cst_33 {dimension_numbers = #tpu.dot_dimension_numbers<[1], [0], [0], [1], [0, 0, 1, 1], [], []>} : vector<8x1152xbf16>, vector<1152x128xbf16>, vector<8x128xf32> -> vector<8x128xf32>
    %c0_34 = arith.constant 0 : index
    %c0_35 = arith.constant 0 : index
    %78 = vector.load %arg9[%c0_34, %c0_35] : memref<1x128xf32, #tpu.memory_space<vmem>>, vector<1x128xf32>
    %79 = vector.broadcast %78 : vector<1x128xf32> to vector<8x128xf32>
    %80 = arith.addf %77, %79 : vector<8x128xf32>
    %81 = arith.truncf %80 : vector<8x128xf32> to vector<8x128xbf16>
    %c0_36 = arith.constant 0 : index
    %c0_37 = arith.constant 0 : index
    %c0_38 = arith.constant 0 : index
    %c0_39 = arith.constant 0 : index
    %c0_40 = arith.constant 0 : index
    %82 = vector.load %arg10[%c0_36, %c0_37, %c0_38, %c0_39, %c0_40] : memref<1x1x1x8x128xbf16, #tpu.memory_space<vmem>>, vector<1x1x1x8x128xbf16>
    %83 = vector.shape_cast %82 : vector<1x1x1x8x128xbf16> to vector<8x128xbf16>
    %84 = vector.shape_cast %81 : vector<8x128xbf16> to vector<1x1x1x8x128xbf16>
    tpu.vector_store %arg10[%c0_36, %c0_37, %c0_38, %c0_39, %c0_40], %84 {strides = array<i32>} : memref<1x1x1x8x128xbf16, #tpu.memory_space<vmem>>, vector<1x1x1x8x128xbf16>,
    return
  }
  func.func @transform_0(%arg0: i32, %arg1: i32, %arg2: i32) -> (i32, i32, i32, i32, i32) {
    %c0_i32 = arith.constant 0 : i32
    %0 = arith.addi %arg2, %c0_i32 : i32
    %c1_i32 = arith.constant 1 : i32
    %1 = arith.subi %0, %c1_i32 : i32
    %c0_i32_0 = arith.constant 0 : i32
    %c7_i32 = arith.constant 7 : i32
    %2 = arith.maxsi %c0_i32_0, %1 : i32
    %3 = arith.minsi %c7_i32, %2 : i32
    %c0_i32_1 = arith.constant 0 : i32
    %c0_i32_2 = arith.constant 0 : i32
    %c0_i32_3 = arith.constant 0 : i32
    return %arg0, %arg1, %3, %c0_i32_1, %c0_i32_2 : i32, i32, i32, i32, i32
  }
  func.func @transform_1(%arg0: i32, %arg1: i32, %arg2: i32) -> (i32, i32, i32, i32, i32) {
    %c1_i32 = arith.constant 1 : i32
    %0 = arith.addi %arg2, %c1_i32 : i32
    %c1_i32_0 = arith.constant 1 : i32
    %1 = arith.subi %0, %c1_i32_0 : i32
    %c0_i32 = arith.constant 0 : i32
    %c7_i32 = arith.constant 7 : i32
    %2 = arith.maxsi %c0_i32, %1 : i32
    %3 = arith.minsi %c7_i32, %2 : i32
    %c0_i32_1 = arith.constant 0 : i32
    %c0_i32_2 = arith.constant 0 : i32
    %c0_i32_3 = arith.constant 0 : i32
    return %arg0, %arg1, %3, %c0_i32_1, %c0_i32_2 : i32, i32, i32, i32, i32
  }
  func.func @transform_2(%arg0: i32, %arg1: i32, %arg2: i32) -> (i32, i32, i32, i32, i32) {
    %c2_i32 = arith.constant 2 : i32
    %0 = arith.addi %arg2, %c2_i32 : i32
    %c1_i32 = arith.constant 1 : i32
    %1 = arith.subi %0, %c1_i32 : i32
    %c0_i32 = arith.constant 0 : i32
    %c7_i32 = arith.constant 7 : i32
    %2 = arith.maxsi %c0_i32, %1 : i32
    %3 = arith.minsi %c7_i32, %2 : i32
    %c0_i32_0 = arith.constant 0 : i32
    %c0_i32_1 = arith.constant 0 : i32
    %c0_i32_2 = arith.constant 0 : i32
    return %arg0, %arg1, %3, %c0_i32_0, %c0_i32_1 : i32, i32, i32, i32, i32
  }
  func.func @transform_3(%arg0: i32, %arg1: i32, %arg2: i32) -> (i32, i32, i32, i32) {
    %c0_i32 = arith.constant 0 : i32
    %c0_i32_0 = arith.constant 0 : i32
    %c0_i32_1 = arith.constant 0 : i32
    return %arg0, %arg1, %c0_i32, %c0_i32_0 : i32, i32, i32, i32
  }
  func.func @transform_4(%arg0: i32, %arg1: i32, %arg2: i32) -> (i32, i32, i32, i32) {
    %c0_i32 = arith.constant 0 : i32
    %c0_i32_0 = arith.constant 0 : i32
    %c0_i32_1 = arith.constant 0 : i32
    return %arg0, %arg1, %c0_i32, %c0_i32_0 : i32, i32, i32, i32
  }
  func.func @transform_5(%arg0: i32, %arg1: i32, %arg2: i32) -> (i32, i32) {
    %c0_i32 = arith.constant 0 : i32
    %c0_i32_0 = arith.constant 0 : i32
    %c0_i32_1 = arith.constant 0 : i32
    return %c0_i32, %c0_i32_0 : i32, i32
  }
  func.func @transform_6(%arg0: i32, %arg1: i32, %arg2: i32) -> (i32, i32) {
    %c0_i32 = arith.constant 0 : i32
    %c0_i32_0 = arith.constant 0 : i32
    %c0_i32_1 = arith.constant 0 : i32
    return %c0_i32, %c0_i32_0 : i32, i32
  }
  func.func @transform_7(%arg0: i32, %arg1: i32, %arg2: i32) -> (i32, i32, i32, i32, i32) {
    %c0_i32 = arith.constant 0 : i32
    %c0_i32_0 = arith.constant 0 : i32
    %c0_i32_1 = arith.constant 0 : i32
    return %arg0, %arg1, %arg2, %c0_i32, %c0_i32_0 : i32, i32, i32, i32, i32
  }
}

module attributes {stable_mosaic.version = 11 : i64} {
  func.func @_temporal_conv3_res_kernel(%arg0: i32, %arg1: i32, %arg2: i32, %arg3: memref<1x1x1x8x128xbf16, #tpu.memory_space<vmem>>, %arg4: memref<1x1x1x8x128xbf16, #tpu.memory_space<vmem>>, %arg5: memref<1x1x1x8x128xbf16, #tpu.memory_space<vmem>>, %arg6: memref<1x1x1x8x128xf32, #tpu.memory_space<vmem>>, %arg7: memref<384x128xbf16, #tpu.memory_space<vmem>>, %arg8: memref<1x128xf32, #tpu.memory_space<vmem>>, %arg9: memref<1x1x1x8x128xf32, #tpu.memory_space<vmem>>) attributes {dimension_semantics = [#tpu.dimension_semantics<parallel>, #tpu.dimension_semantics<parallel>, #tpu.dimension_semantics<parallel>], iteration_bounds = array<i64: 2, 4, 8>, scalar_prefetch = 0 : i64, scratch_operands = 0 : i64, tpu.core_type = #tpu.core_type<tc>, window_params = [{transform_indices = @transform_0, window_bounds = array<i64: 1, 1, 1, 8, 128>}, {transform_indices = @transform_1, window_bounds = array<i64: 1, 1, 1, 8, 128>}, {transform_indices = @transform_2, window_bounds = array<i64: 1, 1, 1, 8, 128>}, {transform_indices = @transform_3, window_bounds = array<i64: 1, 1, 1, 8, 128>}, {pipeline_mode = #tpu.pipeline_mode<synchronous>, transform_indices = @transform_4, window_bounds = array<i64: 384, 128>}, {pipeline_mode = #tpu.pipeline_mode<synchronous>, transform_indices = @transform_5, window_bounds = array<i64: 1, 128>}, {transform_indices = @transform_6, window_bounds = array<i64: 1, 1, 1, 8, 128>}]} {
    %c0 = arith.constant 0 : index
    %c0_0 = arith.constant 0 : index
    %c0_1 = arith.constant 0 : index
    %c0_2 = arith.constant 0 : index
    %c0_3 = arith.constant 0 : index
    %0 = vector.load %arg3[%c0, %c0_0, %c0_1, %c0_2, %c0_3] : memref<1x1x1x8x128xbf16, #tpu.memory_space<vmem>>, vector<1x1x1x8x128xbf16>
    %1 = vector.shape_cast %0 : vector<1x1x1x8x128xbf16> to vector<8x128xbf16>
    %c0_4 = arith.constant 0 : index
    %c0_5 = arith.constant 0 : index
    %c0_6 = arith.constant 0 : index
    %c0_7 = arith.constant 0 : index
    %c0_8 = arith.constant 0 : index
    %2 = vector.load %arg4[%c0_4, %c0_5, %c0_6, %c0_7, %c0_8] : memref<1x1x1x8x128xbf16, #tpu.memory_space<vmem>>, vector<1x1x1x8x128xbf16>
    %3 = vector.shape_cast %2 : vector<1x1x1x8x128xbf16> to vector<8x128xbf16>
    %c0_9 = arith.constant 0 : index
    %c0_10 = arith.constant 0 : index
    %c0_11 = arith.constant 0 : index
    %c0_12 = arith.constant 0 : index
    %c0_13 = arith.constant 0 : index
    %4 = vector.load %arg5[%c0_9, %c0_10, %c0_11, %c0_12, %c0_13] : memref<1x1x1x8x128xbf16, #tpu.memory_space<vmem>>, vector<1x1x1x8x128xbf16>
    %5 = vector.shape_cast %4 : vector<1x1x1x8x128xbf16> to vector<8x128xbf16>
    %6 = tpu.concatenate %1, %3, %5 in 1 : vector<8x128xbf16>, vector<8x128xbf16>, vector<8x128xbf16> -> vector<8x384xbf16>
    %c0_14 = arith.constant 0 : index
    %c0_15 = arith.constant 0 : index
    %7 = vector.load %arg7[%c0_14, %c0_15] : memref<384x128xbf16, #tpu.memory_space<vmem>>, vector<384x128xbf16>
    %cst = arith.constant dense<0.000000e+00> : vector<8x128xf32>
    %8 = tpu.matmul %6, %7, %cst {dimension_numbers = #tpu.dot_dimension_numbers<[1], [0], [0], [1], [0, 0, 1, 1], [], []>} : vector<8x384xbf16>, vector<384x128xbf16>, vector<8x128xf32> -> vector<8x128xf32>
    %c0_16 = arith.constant 0 : index
    %c0_17 = arith.constant 0 : index
    %9 = vector.load %arg8[%c0_16, %c0_17] : memref<1x128xf32, #tpu.memory_space<vmem>>, vector<1x128xf32>
    %10 = vector.broadcast %9 : vector<1x128xf32> to vector<8x128xf32>
    %11 = arith.addf %8, %10 : vector<8x128xf32>
    %c0_18 = arith.constant 0 : index
    %c0_19 = arith.constant 0 : index
    %c0_20 = arith.constant 0 : index
    %c0_21 = arith.constant 0 : index
    %c0_22 = arith.constant 0 : index
    %12 = vector.load %arg6[%c0_18, %c0_19, %c0_20, %c0_21, %c0_22] : memref<1x1x1x8x128xf32, #tpu.memory_space<vmem>>, vector<1x1x1x8x128xf32>
    %13 = vector.shape_cast %12 : vector<1x1x1x8x128xf32> to vector<8x128xf32>
    %14 = arith.addf %11, %13 : vector<8x128xf32>
    %c0_23 = arith.constant 0 : index
    %c0_24 = arith.constant 0 : index
    %c0_25 = arith.constant 0 : index
    %c0_26 = arith.constant 0 : index
    %c0_27 = arith.constant 0 : index
    %15 = vector.load %arg9[%c0_23, %c0_24, %c0_25, %c0_26, %c0_27] : memref<1x1x1x8x128xf32, #tpu.memory_space<vmem>>, vector<1x1x1x8x128xf32>
    %16 = vector.shape_cast %15 : vector<1x1x1x8x128xf32> to vector<8x128xf32>
    %17 = vector.shape_cast %14 : vector<8x128xf32> to vector<1x1x1x8x128xf32>
    tpu.vector_store %arg9[%c0_23, %c0_24, %c0_25, %c0_26, %c0_27], %17 {strides = array<i32>} : memref<1x1x1x8x128xf32, #tpu.memory_space<vmem>>, vector<1x1x1x8x128xf32>,
    return
  }
  func.func @transform_0(%arg0: i32, %arg1: i32, %arg2: i32) -> (i32, i32, i32, i32, i32) {
    %c0_i32 = arith.constant 0 : i32
    %0 = arith.addi %arg1, %c0_i32 : i32
    %c1_i32 = arith.constant 1 : i32
    %1 = arith.subi %0, %c1_i32 : i32
    %c0_i32_0 = arith.constant 0 : i32
    %c3_i32 = arith.constant 3 : i32
    %2 = arith.maxsi %c0_i32_0, %1 : i32
    %3 = arith.minsi %c3_i32, %2 : i32
    %c0_i32_1 = arith.constant 0 : i32
    %c0_i32_2 = arith.constant 0 : i32
    %c0_i32_3 = arith.constant 0 : i32
    return %arg0, %3, %arg2, %c0_i32_1, %c0_i32_2 : i32, i32, i32, i32, i32
  }
  func.func @transform_1(%arg0: i32, %arg1: i32, %arg2: i32) -> (i32, i32, i32, i32, i32) {
    %c1_i32 = arith.constant 1 : i32
    %0 = arith.addi %arg1, %c1_i32 : i32
    %c1_i32_0 = arith.constant 1 : i32
    %1 = arith.subi %0, %c1_i32_0 : i32
    %c0_i32 = arith.constant 0 : i32
    %c3_i32 = arith.constant 3 : i32
    %2 = arith.maxsi %c0_i32, %1 : i32
    %3 = arith.minsi %c3_i32, %2 : i32
    %c0_i32_1 = arith.constant 0 : i32
    %c0_i32_2 = arith.constant 0 : i32
    %c0_i32_3 = arith.constant 0 : i32
    return %arg0, %3, %arg2, %c0_i32_1, %c0_i32_2 : i32, i32, i32, i32, i32
  }
  func.func @transform_2(%arg0: i32, %arg1: i32, %arg2: i32) -> (i32, i32, i32, i32, i32) {
    %c2_i32 = arith.constant 2 : i32
    %0 = arith.addi %arg1, %c2_i32 : i32
    %c1_i32 = arith.constant 1 : i32
    %1 = arith.subi %0, %c1_i32 : i32
    %c0_i32 = arith.constant 0 : i32
    %c3_i32 = arith.constant 3 : i32
    %2 = arith.maxsi %c0_i32, %1 : i32
    %3 = arith.minsi %c3_i32, %2 : i32
    %c0_i32_0 = arith.constant 0 : i32
    %c0_i32_1 = arith.constant 0 : i32
    %c0_i32_2 = arith.constant 0 : i32
    return %arg0, %3, %arg2, %c0_i32_0, %c0_i32_1 : i32, i32, i32, i32, i32
  }
  func.func @transform_3(%arg0: i32, %arg1: i32, %arg2: i32) -> (i32, i32, i32, i32, i32) {
    %c0_i32 = arith.constant 0 : i32
    %c0_i32_0 = arith.constant 0 : i32
    %c0_i32_1 = arith.constant 0 : i32
    return %arg0, %arg1, %arg2, %c0_i32, %c0_i32_0 : i32, i32, i32, i32, i32
  }
  func.func @transform_4(%arg0: i32, %arg1: i32, %arg2: i32) -> (i32, i32) {
    %c0_i32 = arith.constant 0 : i32
    %c0_i32_0 = arith.constant 0 : i32
    %c0_i32_1 = arith.constant 0 : i32
    return %c0_i32, %c0_i32_0 : i32, i32
  }
  func.func @transform_5(%arg0: i32, %arg1: i32, %arg2: i32) -> (i32, i32) {
    %c0_i32 = arith.constant 0 : i32
    %c0_i32_0 = arith.constant 0 : i32
    %c0_i32_1 = arith.constant 0 : i32
    return %c0_i32, %c0_i32_0 : i32, i32
  }
  func.func @transform_6(%arg0: i32, %arg1: i32, %arg2: i32) -> (i32, i32, i32, i32, i32) {
    %c0_i32 = arith.constant 0 : i32
    %c0_i32_0 = arith.constant 0 : i32
    %c0_i32_1 = arith.constant 0 : i32
    return %arg0, %arg1, %arg2, %c0_i32, %c0_i32_0 : i32, i32, i32, i32, i32
  }
}

</mosaic_0001>

<llo_original>
// kernel: temporal_resnet_block.6
$region0: #{temporal_resnet_block.6}
  #allocation0 [shape = 'u32[]', space=smem, size = 0x4, offset = 0x4, fixed_abs, tag = 'smem constant byte address 0x4 - core index']
  #allocation1 [shape = 'u32[144,128]{1,0:T(1,128)}', space=vmem, size = 0x12000, scoped, tag = 'internal scratch']
  %s0 = inlined_call_operand.hbm [shape: f32[2,4,8,8,128], index: 0, kind: input, shape index: {}]
  %s1 = inlined_call_operand.vmem [shape: f32[2,4,1,128], index: 1, kind: output, shape index: {0}]
  %s2 = inlined_call_operand.vmem [shape: f32[2,4,1,128], index: 2, kind: output, shape index: {1}]
  %3 = xla_tuple %s1, %s2
  %s4 = sld [smem:[#allocation0]]
  $region53: #{temporal_resnet_block.6} parent=0
    _
  %s6 = ssub.s32 1, %s4
  %s7 = scalar_select 0, %s6, %s4
  $region1: #{temporal_resnet_block.6} parent=0
    #allocation2 [shape = 'u8[8192]{0}', space=vmem, size = 0x2000, scoped, tag = 'input window, operand 0']
    #allocation3 [shape = 's32[2]{0}', space=sflag, size = 0x8, scoped, tag = 'scoped memory for temporal_resnet_block.6']
    %8 = vsyncpa [#allocation3], 0
    %s9 = scalar_lea.sflag [#allocation3], 1
    %10 = vsyncpa %s9, 0
    loop: start=0, step=1, limit=66
    $region2: #{temporal_resnet_block.6} parent=1 // loop_pre_header
      _
    $region3: #{temporal_resnet_block.6} parent=1 // loop_header
      %s12 = sphi 0, %s16
      %p13 = scmp.ge.s32.totalorder %s12, 66
      %s19 = sphi 0, %s38
      %s20 = sphi 0, %s34
      %s21 = sphi 0, %s30
      %s22 = sphi 0, %s19
      %s23 = sphi 0, %s20
      %s24 = sphi 0, %s21
      %s25 = sphi 0, %s22
      %s26 = sphi 0, %s23
      %s27 = sphi 0, %s24
      %s45 = sphi 0, %s47
      %s48 = sphi 0, %s45
      %s49 = sphi 0, %s48
      %s65 = sphi 0, %s49
      %s73 = sphi 0, %s75
      %s76 = sphi 0, %s73
      %s77 = sphi 0, %s76
      %s93 = sphi 0, %s77
      %s101 = sphi 0, %s103
      %s104 = sphi 0, %s101
      %s105 = sphi 0, %s104
      %s121 = sphi 0, %s105
    $region4: #{temporal_resnet_block.6} parent=1 // loop_header_branch
      %15 = sbr.rel (%p13) target = $region8
    $region5: #{temporal_resnet_block.6} parent=1 // loop_body
      %s17 = ssub.s32 %s12, 1
      %s18 = ssub.s32 %s12, 2
      %s28 = sadd.s32 1, %s21
      %p29 = scmp.ge.s32.totalorder %s28, 8
      %s30 = scalar_select %p29, 0, %s28
      %s31 = sadd.s32 1, %s20
      %s32 = scalar_select %p29, %s31, %s20
      %p33 = scmp.ge.s32.totalorder %s32, 4
      %s34 = scalar_select %p33, 0, %s32
      %s35 = sadd.s32 1, %s19
      %s36 = scalar_select %p33, %s35, %s19
      %p37 = scmp.ge.s32.totalorder %s36, 2
      %s38 = scalar_select %p37, 0, %s36
      %s39 = ssub.s32 %s19, %s38
      %s40 = ssub.s32 %s20, %s34
      %s41 = sor.u32 %s39, %s40
      %s42 = ssub.s32 %s21, %s30
      %s43 = sor.u32 %s41, %s42
      %p44 = scmp.eq.s32.totalorder %s43, 0
      %s46 = sadd.s32 %s45, 1
      %s47 = scalar_select %p44, %s45, %s46
      %p50 = pneg %p44
      %p51 = scmp.eq.s32.totalorder %s12, 63
      %p52 = por %p50, %p51
      %p53 = scmp.ne.s32.totalorder %s45, %s48
      %p54 = scmp.eq.s32.totalorder %s12, 0
      %p55 = por %p53, %p54
      %p56 = scmp.ne.s32.totalorder %s45, %s48
      %p57 = scmp.eq.s32.totalorder %s17, 63
      %p58 = por %p56, %p57
      %p59 = scmp.ne.s32.totalorder %s48, %s49
      %p60 = scmp.eq.s32.totalorder %s17, 0
      %p61 = por %p59, %p60
      %p62 = scmp.ne.s32.totalorder %s48, %s49
      %p63 = scmp.eq.s32.totalorder %s18, 63
      %p64 = por %p62, %p63
      %p66 = scmp.ne.s32.totalorder %s49, %s65
      %p67 = scmp.eq.s32.totalorder %s18, 0
      %p68 = por %p66, %p67
      %s69 = ssub.s32 %s19, %s38
      %s70 = ssub.s32 %s20, %s34
      %s71 = sor.u32 %s69, %s70
      %p72 = scmp.eq.s32.totalorder %s71, 0
      %s74 = sadd.s32 %s73, 1
      %s75 = scalar_select %p72, %s73, %s74
      %p78 = pneg %p72
      %p79 = scmp.eq.s32.totalorder %s12, 63
      %p80 = por %p78, %p79
      %p81 = scmp.ne.s32.totalorder %s73, %s76
      %p82 = scmp.eq.s32.totalorder %s12, 0
      %p83 = por %p81, %p82
      %p84 = scmp.ne.s32.totalorder %s73, %s76
      %p85 = scmp.eq.s32.totalorder %s17, 63
      %p86 = por %p84, %p85
      %p87 = scmp.ne.s32.totalorder %s76, %s77
      %p88 = scmp.eq.s32.totalorder %s17, 0
      %p89 = por %p87, %p88
      %p90 = scmp.ne.s32.totalorder %s76, %s77
      %p91 = scmp.eq.s32.totalorder %s18, 63
      %p92 = por %p90, %p91
      %p94 = scmp.ne.s32.totalorder %s77, %s93
      %p95 = scmp.eq.s32.totalorder %s18, 0
      %p96 = por %p94, %p95
      %s97 = ssub.s32 %s19, %s38
      %s98 = ssub.s32 %s20, %s34
      %s99 = sor.u32 %s97, %s98
      %p100 = scmp.eq.s32.totalorder %s99, 0
      %s102 = sadd.s32 %s101, 1
      %s103 = scalar_select %p100, %s101, %s102
      %p106 = pneg %p100
      %p107 = scmp.eq.s32.totalorder %s12, 63
      %p108 = por %p106, %p107
      %p109 = scmp.ne.s32.totalorder %s101, %s104
      %p110 = scmp.eq.s32.totalorder %s12, 0
      %p111 = por %p109, %p110
      %p112 = scmp.ne.s32.totalorder %s101, %s104
      %p113 = scmp.eq.s32.totalorder %s17, 63
      %p114 = por %p112, %p113
      %p115 = scmp.ne.s32.totalorder %s104, %s105
      %p116 = scmp.eq.s32.totalorder %s17, 0
      %p117 = por %p115, %p116
      %p118 = scmp.ne.s32.totalorder %s104, %s105
      %p119 = scmp.eq.s32.totalorder %s18, 63
      %p120 = por %p118, %p119
      %p122 = scmp.ne.s32.totalorder %s105, %s121
      %p123 = scmp.eq.s32.totalorder %s18, 0
      %p124 = por %p122, %p123
      %p125 = scmp.le.s32.totalorder 1, %s12
      %p126 = scmp.lt.s32.totalorder %s12, 65
      %p127 = pnand %p125, %p126
      %p128 = pneg %p127
      // Predicated region
      $region9: #{temporal_resnet_block.6} parent=5 // pred_check
        _
      $region10: #{temporal_resnet_block.6} parent=5 // pred_check_branch
        %130 = sbr.rel (%p127) target = $region12
      $region11: #{temporal_resnet_block.6} parent=5 // pred_region
        %s131 = ssub.s32 %s12, 1
      $region12: #{temporal_resnet_block.6} parent=5 // pred_fallthru
        _
      %p132 = scmp.lt.s32.totalorder %s12, 64
      // Predicated region
      $region13: #{temporal_resnet_block.6} parent=5 // pred_check
        %p133 = pneg %p132
      $region14: #{temporal_resnet_block.6} parent=5 // pred_check_branch
        %135 = sbr.rel (%p133) target = $region16
      $region15: #{temporal_resnet_block.6} parent=5 // pred_region
        // Predicated region
        $region17: #{temporal_resnet_block.6} parent=15 // pred_check
          %p136 = pneg %p55
        $region18: #{temporal_resnet_block.6} parent=15 // pred_check_branch
          %138 = sbr.rel (%p136) target = $region20
        $region19: #{temporal_resnet_block.6} parent=15 // pred_region
          %s139 = sand.u32 %s45, 1
          %s140 = scalar_lea.sflag [#allocation3], %s139
          %s141 = sand.u32 %s45, 1
          %s142 = smul.addr %s141, 8
          %s143 = scalar_lea.vmem [#allocation2], %s142
          %s145 = ssub.s32 128, 128
          %146 = vsyncadd %s140, %s145
          %s147 = smul.addr %s20, 8
          %s148 = sadd.s32 %s21, %s147
          %s149 = smul.addr %s19, 32
          %s150 = sadd.s32 %s148, %s149
          %s151 = smul.addr %s150, 128
          %s152 = scalar_lea.hbm %s0, %s151
          %s154 = sshll.u32 %s143, 4
          %s155 = int_to_ptr.vmem [resolvable:$true] %s154
          %157 = dma.hbm_to_vmem [thread:$0]  %s152, 128, %s155, %s140
        $region20: #{temporal_resnet_block.6} parent=15 // pred_fallthru
          _
      $region16: #{temporal_resnet_block.6} parent=5 // pred_fallthru
        _
      %p158 = scmp.le.s32.totalorder 1, %s12
      %p159 = scmp.lt.s32.totalorder %s12, 65
      %p160 = pnand %p158, %p159
      %p161 = pneg %p160
      // Predicated region
      $region21: #{temporal_resnet_block.6} parent=5 // pred_check
        _
      $region22: #{temporal_resnet_block.6} parent=5 // pred_check_branch
        %163 = sbr.rel (%p160) target = $region24
      $region23: #{temporal_resnet_block.6} parent=5 // pred_region
        %s164 = ssub.s32 %s12, 1
        %s165 = sand.u32 %s48, 1
        %s166 = scalar_lea.sflag [#allocation3], %s165
        %s167 = sand.u32 %s48, 1
        %s168 = smul.addr %s167, 8
        %s169 = scalar_lea.vmem [#allocation2], %s168
        // Predicated region
        $region25: #{temporal_resnet_block.6} parent=23 // pred_check
          %p170 = pneg %p61
        $region26: #{temporal_resnet_block.6} parent=23 // pred_check_branch
          %172 = sbr.rel (%p170) target = $region28
        $region27: #{temporal_resnet_block.6} parent=23 // pred_region
          %173 = dma.done %s166, 128
        $region28: #{temporal_resnet_block.6} parent=23 // pred_fallthru
          _
        %s174 = sand.u32 %s48, 1
        %s175 = scalar_lea.sflag [#allocation3], %s174
        %s176 = sand.u32 %s48, 1
        %s177 = smul.addr %s176, 8
        %s178 = scalar_lea.vmem [#allocation2], %s177
        %p179 = pneg %p61
        %p180 = pneg %p58
        %p181 = pneg %p89
        %p182 = pneg %p86
        %p183 = scmp.lt.s32.totalorder %s22, 1
        %s184 = scalar_select %p183, %s22, 1
        %p185 = scmp.lt.s32.totalorder %s23, 3
        %s186 = scalar_select %p185, %s23, 3
        %s187 = smul.addr %s184, 4
        %s188 = sadd.s32 %s186, %s187
        %s189 = scalar_lea.vmem %s1, %s188
        %p190 = pneg %p117
        %p191 = pneg %p114
        %p192 = scmp.lt.s32.totalorder %s22, 1
        %s193 = scalar_select %p192, %s22, 1
        %p194 = scmp.lt.s32.totalorder %s23, 3
        %s195 = scalar_select %p194, %s23, 3
        %s196 = smul.addr %s193, 4
        %s197 = sadd.s32 %s195, %s196
        %s198 = scalar_lea.vmem %s2, %s197
        %p199 = scmp.lt.s32.totalorder %s22, 1
        %s200 = scalar_select %p199, %s22, 1
        %p201 = scmp.lt.s32.totalorder %s23, 3
        %s202 = scalar_select %p201, %s23, 3
        %s203 = smul.addr %s200, 4
        %s204 = sadd.s32 %s202, %s203
        %s205 = scalar_lea.vmem %s1, %s204
        %p206 = scmp.lt.s32.totalorder %s22, 1
        %s207 = scalar_select %p206, %s22, 1
        %p208 = scmp.lt.s32.totalorder %s23, 3
        %s209 = scalar_select %p208, %s23, 3
        %s210 = smul.addr %s207, 4
        %s211 = sadd.s32 %s209, %s210
        %s212 = scalar_lea.vmem %s2, %s211
        %p213 = scmp.eq.s32.totalorder %s24, 0
        // Predicated region
        $region29: #{temporal_resnet_block.6} parent=23 // pred_check
          %p214 = pneg %p213
        $region30: #{temporal_resnet_block.6} parent=23 // pred_check_branch
          %216 = sbr.rel (%p214) target = $region32
        $region31: #{temporal_resnet_block.6} parent=23 // pred_region
          %217 = vst [vmem:[%s205] sm:$0x1] 0.0
          %218 = vst [vmem:[%s212] sm:$0x1] 0.0
        $region32: #{temporal_resnet_block.6} parent=23 // pred_fallthru
          _
        %v219 = vld [vmem:[%s169] sm:$0xff]
        %v220 = vld [vmem:[%s205] sm:$0x1]
        %v221 = vrot.slane %v219, 4
        %v222 = vadd.f32 %v219, %v221
        %v223 = vrot.slane %v222, 2
        %v224 = vadd.f32 %v222, %v223
        %v225 = vrot.slane %v224, 1
        %v226 = vadd.f32 %v224, %v225
        %v227 = vadd.f32 %v220, %v226
        %228 = vst [vmem:[%s205] sm:$0x1] %v227
        %v229 = vld [vmem:[%s212] sm:$0x1]
        %v230 = vmul.f32 %v219, %v219
        %v231 = vrot.slane %v230, 4
        %v232 = vadd.f32 %v230, %v231
        %v233 = vrot.slane %v232, 2
        %v234 = vadd.f32 %v232, %v233
        %v235 = vrot.slane %v234, 1
        %v236 = vadd.f32 %v234, %v235
        %v237 = vadd.f32 %v229, %v236
        %238 = vst [vmem:[%s212] sm:$0x1] %v237
        %p239 = scmp.lt.s32.totalorder %s22, 1
        %s240 = scalar_select %p239, %s22, 1
        %p241 = scmp.lt.s32.totalorder %s23, 3
        %s242 = scalar_select %p241, %s23, 3
        %s243 = smul.addr %s240, 4
        %s244 = sadd.s32 %s242, %s243
        %s245 = scalar_lea.vmem %s1, %s244
        %p246 = scmp.lt.s32.totalorder %s22, 1
        %s247 = scalar_select %p246, %s22, 1
        %p248 = scmp.lt.s32.totalorder %s23, 3
        %s249 = scalar_select %p248, %s23, 3
        %s250 = smul.addr %s247, 4
        %s251 = sadd.s32 %s249, %s250
        %s252 = scalar_lea.vmem %s2, %s251
        // Predicated region
        $region33: #{temporal_resnet_block.6} parent=23 // pred_check
          %p253 = pneg %p86
        $region34: #{temporal_resnet_block.6} parent=23 // pred_check_branch
          %255 = sbr.rel (%p253) target = $region36
        $region35: #{temporal_resnet_block.6} parent=23 // pred_region
          _
        $region36: #{temporal_resnet_block.6} parent=23 // pred_fallthru
          _
        // Predicated region
        $region37: #{temporal_resnet_block.6} parent=23 // pred_check
          %p256 = pneg %p114
        $region38: #{temporal_resnet_block.6} parent=23 // pred_check_branch
          %258 = sbr.rel (%p256) target = $region40
        $region39: #{temporal_resnet_block.6} parent=23 // pred_region
          _
        $region40: #{temporal_resnet_block.6} parent=23 // pred_fallthru
          _
      $region24: #{temporal_resnet_block.6} parent=5 // pred_fallthru
        _
      %p259 = scmp.le.s32.totalorder 2, %s12
      // Predicated region
      $region41: #{temporal_resnet_block.6} parent=5 // pred_check
        %p260 = pneg %p259
      $region42: #{temporal_resnet_block.6} parent=5 // pred_check_branch
        %262 = sbr.rel (%p260) target = $region44
      $region43: #{temporal_resnet_block.6} parent=5 // pred_region
        %s263 = ssub.s32 %s12, 2
        // Predicated region
        $region45: #{temporal_resnet_block.6} parent=43 // pred_check
          %p264 = pneg %p92
        $region46: #{temporal_resnet_block.6} parent=43 // pred_check_branch
          %266 = sbr.rel (%p264) target = $region48
        $region47: #{temporal_resnet_block.6} parent=43 // pred_region
          %p267 = scmp.lt.s32.totalorder %s25, 1
          %s268 = scalar_select %p267, %s25, 1
          %p269 = scmp.lt.s32.totalorder %s26, 3
          %s270 = scalar_select %p269, %s26, 3
          %s271 = smul.addr %s268, 4
          %s272 = sadd.s32 %s270, %s271
          %s273 = scalar_lea.vmem %s1, %s272
        $region48: #{temporal_resnet_block.6} parent=43 // pred_fallthru
          _
        // Predicated region
        $region49: #{temporal_resnet_block.6} parent=43 // pred_check
          %p274 = pneg %p120
        $region50: #{temporal_resnet_block.6} parent=43 // pred_check_branch
          %276 = sbr.rel (%p274) target = $region52
        $region51: #{temporal_resnet_block.6} parent=43 // pred_region
          %p277 = scmp.lt.s32.totalorder %s25, 1
          %s278 = scalar_select %p277, %s25, 1
          %p279 = scmp.lt.s32.totalorder %s26, 3
          %s280 = scalar_select %p279, %s26, 3
          %s281 = smul.addr %s278, 4
          %s282 = sadd.s32 %s280, %s281
          %s283 = scalar_lea.vmem %s2, %s282
        $region52: #{temporal_resnet_block.6} parent=43 // pred_fallthru
          _
      $region44: #{temporal_resnet_block.6} parent=5 // pred_fallthru
        _
    $region6: #{temporal_resnet_block.6} parent=1 // loop_footer
      %s16 = sadd.s32 1, %s12
    $region7: #{temporal_resnet_block.6} parent=1 // loop_footer_branch
      %11 = sbr.rel target = $region3
    $region8: #{temporal_resnet_block.6} parent=1 // loop_exit
      _
    %284 = vsyncpa [#allocation3], 1
    %s285 = scalar_lea.sflag [#allocation3], 1
    %286 = vsyncpa %s285, 1

// kernel: temporal_resnet_block.8
$region0: #{temporal_resnet_block.8}
  #allocation0 [shape = 'u32[]', space=smem, size = 0x4, offset = 0x4, fixed_abs, tag = 'smem constant byte address 0x4 - core index']
  #allocation1 [shape = 'u32[144,128]{1,0:T(1,128)}', space=vmem, size = 0x12000, scoped, tag = 'internal scratch']
  %s0 = inlined_call_operand.vmem [shape: bf16[2,4,8,8,128], index: 0, kind: input, shape index: {}, may-alias: {0,1,2}]
  %s1 = inlined_call_operand.vmem [shape: bf16[2,4,8,8,128], index: 1, kind: input, shape index: {}, may-alias: {0,1,2}]
  %s2 = inlined_call_operand.vmem [shape: bf16[2,4,8,8,128], index: 2, kind: input, shape index: {}, may-alias: {0,1,2}]
  %s3 = inlined_call_operand.vmem [shape: bf16[384,128], index: 3, kind: input, shape index: {}]
  %s4 = inlined_call_operand.vmem [shape: f32[1,128], index: 4, kind: input, shape index: {}]
  %s5 = inlined_call_operand.vmem [shape: bf16[2,4,8,8,128], index: 5, kind: output, shape index: {}]
  %s6 = sld [smem:[#allocation0]]
  $region53: #{temporal_resnet_block.8} parent=0
    _
  %s8 = ssub.s32 1, %s6
  %s9 = scalar_select 0, %s8, %s6
  loop: start=0, step=1, limit=66
  $region2: #{temporal_resnet_block.8} parent=0 // loop_pre_header
    _
  $region3: #{temporal_resnet_block.8} parent=0 // loop_header
    %s11 = sphi 0, %s15
    %p12 = scmp.ge.s32.totalorder %s11, 66
    %s18 = sphi 0, %s37
    %s19 = sphi 0, %s33
    %s20 = sphi 0, %s29
    %s21 = sphi 0, %s18
    %s22 = sphi 0, %s19
    %s23 = sphi 0, %s20
    %s24 = sphi 0, %s21
    %s25 = sphi 0, %s22
    %s26 = sphi 0, %s23
    %s54 = sphi 0, %s56
    %s57 = sphi 0, %s54
    %s58 = sphi 0, %s57
    %s74 = sphi 0, %s58
    %s92 = sphi 0, %s94
    %s95 = sphi 0, %s92
    %s96 = sphi 0, %s95
    %s112 = sphi 0, %s96
    %s132 = sphi 0, %s134
    %s135 = sphi 0, %s132
    %s136 = sphi 0, %s135
    %s152 = sphi 0, %s136
    %s156 = sphi 0, %s156
    %s158 = sphi 0, %s156
    %s159 = sphi 0, %s158
    %s173 = sphi 0, %s159
    %s177 = sphi 0, %s177
    %s179 = sphi 0, %s177
    %s180 = sphi 0, %s179
    %s194 = sphi 0, %s180
    %s204 = sphi 0, %s206
    %s207 = sphi 0, %s204
    %s208 = sphi 0, %s207
    %s224 = sphi 0, %s208
  $region4: #{temporal_resnet_block.8} parent=0 // loop_header_branch
    %14 = sbr.rel (%p12) target = $region8
  $region5: #{temporal_resnet_block.8} parent=0 // loop_body
    %s16 = ssub.s32 %s11, 1
    %s17 = ssub.s32 %s11, 2
    %s27 = sadd.s32 1, %s20
    %p28 = scmp.ge.s32.totalorder %s27, 8
    %s29 = scalar_select %p28, 0, %s27
    %s30 = sadd.s32 1, %s19
    %s31 = scalar_select %p28, %s30, %s19
    %p32 = scmp.ge.s32.totalorder %s31, 4
    %s33 = scalar_select %p32, 0, %s31
    %s34 = sadd.s32 1, %s18
    %s35 = scalar_select %p32, %s34, %s18
    %p36 = scmp.ge.s32.totalorder %s35, 2
    %s37 = scalar_select %p36, 0, %s35
    %s38 = sadd.s32 %s19, 4294967295
    %p39 = scmp.gt.s32.totalorder %s38, 0
    %s40 = scalar_select %p39, %s38, 0
    %p41 = scmp.lt.s32.totalorder %s40, 3
    %s42 = scalar_select %p41, %s40, 3
    %s43 = sadd.s32 %s33, 4294967295
    %p44 = scmp.gt.s32.totalorder %s43, 0
    %s45 = scalar_select %p44, %s43, 0
    %p46 = scmp.lt.s32.totalorder %s45, 3
    %s47 = scalar_select %p46, %s45, 3
    %s48 = ssub.s32 %s18, %s37
    %s49 = ssub.s32 %s42, %s47
    %s50 = sor.u32 %s48, %s49
    %s51 = ssub.s32 %s20, %s29
    %s52 = sor.u32 %s50, %s51
    %p53 = scmp.eq.s32.totalorder %s52, 0
    %s55 = sadd.s32 %s54, 1
    %s56 = scalar_select %p53, %s54, %s55
    %p59 = pneg %p53
    %p60 = scmp.eq.s32.totalorder %s11, 63
    %p61 = por %p59, %p60
    %p62 = scmp.ne.s32.totalorder %s54, %s57
    %p63 = scmp.eq.s32.totalorder %s11, 0
    %p64 = por %p62, %p63
    %p65 = scmp.ne.s32.totalorder %s54, %s57
    %p66 = scmp.eq.s32.totalorder %s16, 63
    %p67 = por %p65, %p66
    %p68 = scmp.ne.s32.totalorder %s57, %s58
    %p69 = scmp.eq.s32.totalorder %s16, 0
    %p70 = por %p68, %p69
    %p71 = scmp.ne.s32.totalorder %s57, %s58
    %p72 = scmp.eq.s32.totalorder %s17, 63
    %p73 = por %p71, %p72
    %p75 = scmp.ne.s32.totalorder %s58, %s74
    %p76 = scmp.eq.s32.totalorder %s17, 0
    %p77 = por %p75, %p76
    %p78 = scmp.gt.s32.totalorder %s19, 0
    %s79 = scalar_select %p78, %s19, 0
    %p80 = scmp.lt.s32.totalorder %s79, 3
    %s81 = scalar_select %p80, %s79, 3
    %p82 = scmp.gt.s32.totalorder %s33, 0
    %s83 = scalar_select %p82, %s33, 0
    %p84 = scmp.lt.s32.totalorder %s83, 3
    %s85 = scalar_select %p84, %s83, 3
    %s86 = ssub.s32 %s18, %s37
    %s87 = ssub.s32 %s81, %s85
    %s88 = sor.u32 %s86, %s87
    %s89 = ssub.s32 %s20, %s29
    %s90 = sor.u32 %s88, %s89
    %p91 = scmp.eq.s32.totalorder %s90, 0
    %s93 = sadd.s32 %s92, 1
    %s94 = scalar_select %p91, %s92, %s93
    %p97 = pneg %p91
    %p98 = scmp.eq.s32.totalorder %s11, 63
    %p99 = por %p97, %p98
    %p100 = scmp.ne.s32.totalorder %s92, %s95
    %p101 = scmp.eq.s32.totalorder %s11, 0
    %p102 = por %p100, %p101
    %p103 = scmp.ne.s32.totalorder %s92, %s95
    %p104 = scmp.eq.s32.totalorder %s16, 63
    %p105 = por %p103, %p104
    %p106 = scmp.ne.s32.totalorder %s95, %s96
    %p107 = scmp.eq.s32.totalorder %s16, 0
    %p108 = por %p106, %p107
    %p109 = scmp.ne.s32.totalorder %s95, %s96
    %p110 = scmp.eq.s32.totalorder %s17, 63
    %p111 = por %p109, %p110
    %p113 = scmp.ne.s32.totalorder %s96, %s112
    %p114 = scmp.eq.s32.totalorder %s17, 0
    %p115 = por %p113, %p114
    %s116 = sadd.s32 %s19, 1
    %p117 = scmp.gt.s32.totalorder %s116, 0
    %s118 = scalar_select %p117, %s116, 0
    %p119 = scmp.lt.s32.totalorder %s118, 3
    %s120 = scalar_select %p119, %s118, 3
    %s121 = sadd.s32 %s33, 1
    %p122 = scmp.gt.s32.totalorder %s121, 0
    %s123 = scalar_select %p122, %s121, 0
    %p124 = scmp.lt.s32.totalorder %s123, 3
    %s125 = scalar_select %p124, %s123, 3
    %s126 = ssub.s32 %s18, %s37
    %s127 = ssub.s32 %s120, %s125
    %s128 = sor.u32 %s126, %s127
    %s129 = ssub.s32 %s20, %s29
    %s130 = sor.u32 %s128, %s129
    %p131 = scmp.eq.s32.totalorder %s130, 0
    %s133 = sadd.s32 %s132, 1
    %s134 = scalar_select %p131, %s132, %s133
    %p137 = pneg %p131
    %p138 = scmp.eq.s32.totalorder %s11, 63
    %p139 = por %p137, %p138
    %p140 = scmp.ne.s32.totalorder %s132, %s135
    %p141 = scmp.eq.s32.totalorder %s11, 0
    %p142 = por %p140, %p141
    %p143 = scmp.ne.s32.totalorder %s132, %s135
    %p144 = scmp.eq.s32.totalorder %s16, 63
    %p145 = por %p143, %p144
    %p146 = scmp.ne.s32.totalorder %s135, %s136
    %p147 = scmp.eq.s32.totalorder %s16, 0
    %p148 = por %p146, %p147
    %p149 = scmp.ne.s32.totalorder %s135, %s136
    %p150 = scmp.eq.s32.totalorder %s17, 63
    %p151 = por %p149, %p150
    %p153 = scmp.ne.s32.totalorder %s136, %s152
    %p154 = scmp.eq.s32.totalorder %s17, 0
    %p155 = por %p153, %p154
    %s157 = sadd.s32 %s156, 1
    %p160 = scmp.eq.s32.totalorder %s11, 63
    %p161 = scmp.ne.s32.totalorder %s156, %s158
    %p162 = scmp.eq.s32.totalorder %s11, 0
    %p163 = por %p161, %p162
    %p164 = scmp.ne.s32.totalorder %s156, %s158
    %p165 = scmp.eq.s32.totalorder %s16, 63
    %p166 = por %p164, %p165
    %p167 = scmp.ne.s32.totalorder %s158, %s159
    %p168 = scmp.eq.s32.totalorder %s16, 0
    %p169 = por %p167, %p168
    %p170 = scmp.ne.s32.totalorder %s158, %s159
    %p171 = scmp.eq.s32.totalorder %s17, 63
    %p172 = por %p170, %p171
    %p174 = scmp.ne.s32.totalorder %s159, %s173
    %p175 = scmp.eq.s32.totalorder %s17, 0
    %p176 = por %p174, %p175
    %s178 = sadd.s32 %s177, 1
    %p181 = scmp.eq.s32.totalorder %s11, 63
    %p182 = scmp.ne.s32.totalorder %s177, %s179
    %p183 = scmp.eq.s32.totalorder %s11, 0
    %p184 = por %p182, %p183
    %p185 = scmp.ne.s32.totalorder %s177, %s179
    %p186 = scmp.eq.s32.totalorder %s16, 63
    %p187 = por %p185, %p186
    %p188 = scmp.ne.s32.totalorder %s179, %s180
    %p189 = scmp.eq.s32.totalorder %s16, 0
    %p190 = por %p188, %p189
    %p191 = scmp.ne.s32.totalorder %s179, %s180
    %p192 = scmp.eq.s32.totalorder %s17, 63
    %p193 = por %p191, %p192
    %p195 = scmp.ne.s32.totalorder %s180, %s194
    %p196 = scmp.eq.s32.totalorder %s17, 0
    %p197 = por %p195, %p196
    %s198 = ssub.s32 %s18, %s37
    %s199 = ssub.s32 %s19, %s33
    %s200 = sor.u32 %s198, %s199
    %s201 = ssub.s32 %s20, %s29
    %s202 = sor.u32 %s200, %s201
    %p203 = scmp.eq.s32.totalorder %s202, 0
    %s205 = sadd.s32 %s204, 1
    %s206 = scalar_select %p203, %s204, %s205
    %p209 = pneg %p203
    %p210 = scmp.eq.s32.totalorder %s11, 63
    %p211 = por %p209, %p210
    %p212 = scmp.ne.s32.totalorder %s204, %s207
    %p213 = scmp.eq.s32.totalorder %s11, 0
    %p214 = por %p212, %p213
    %p215 = scmp.ne.s32.totalorder %s204, %s207
    %p216 = scmp.eq.s32.totalorder %s16, 63
    %p217 = por %p215, %p216
    %p218 = scmp.ne.s32.totalorder %s207, %s208
    %p219 = scmp.eq.s32.totalorder %s16, 0
    %p220 = por %p218, %p219
    %p221 = scmp.ne.s32.totalorder %s207, %s208
    %p222 = scmp.eq.s32.totalorder %s17, 63
    %p223 = por %p221, %p222
    %p225 = scmp.ne.s32.totalorder %s208, %s224
    %p226 = scmp.eq.s32.totalorder %s17, 0
    %p227 = por %p225, %p226
    %p228 = scmp.le.s32.totalorder 1, %s11
    %p229 = scmp.lt.s32.totalorder %s11, 65
    %p230 = pnand %p228, %p229
    %p231 = pneg %p230
    // Predicated region
    $region9: #{temporal_resnet_block.8} parent=5 // pred_check
      _
    $region10: #{temporal_resnet_block.8} parent=5 // pred_check_branch
      %233 = sbr.rel (%p230) target = $region12
    $region11: #{temporal_resnet_block.8} parent=5 // pred_region
      %s234 = ssub.s32 %s11, 1
      // Predicated region
      $region13: #{temporal_resnet_block.8} parent=11 // pred_check
        %p235 = pneg %p169
      $region14: #{temporal_resnet_block.8} parent=11 // pred_check_branch
        %237 = sbr.rel (%p235) target = $region16
      $region15: #{temporal_resnet_block.8} parent=11 // pred_region
        _
      $region16: #{temporal_resnet_block.8} parent=11 // pred_fallthru
        _
      // Predicated region
      $region17: #{temporal_resnet_block.8} parent=11 // pred_check
        %p238 = pneg %p190
      $region18: #{temporal_resnet_block.8} parent=11 // pred_check_branch
        %240 = sbr.rel (%p238) target = $region20
      $region19: #{temporal_resnet_block.8} parent=11 // pred_region
        _
      $region20: #{temporal_resnet_block.8} parent=11 // pred_fallthru
        _
    $region12: #{temporal_resnet_block.8} parent=5 // pred_fallthru
      _
    %p241 = scmp.lt.s32.totalorder %s11, 64
    // Predicated region
    $region21: #{temporal_resnet_block.8} parent=5 // pred_check
      %p242 = pneg %p241
    $region22: #{temporal_resnet_block.8} parent=5 // pred_check_branch
      %244 = sbr.rel (%p242) target = $region24
    $region23: #{temporal_resnet_block.8} parent=5 // pred_region
      // Predicated region
      $region25: #{temporal_resnet_block.8} parent=23 // pred_check
        %p245 = pneg %p64
      $region26: #{temporal_resnet_block.8} parent=23 // pred_check_branch
        %247 = sbr.rel (%p245) target = $region28
      $region27: #{temporal_resnet_block.8} parent=23 // pred_region
        %s248 = sadd.s32 %s19, 4294967295
        %p249 = scmp.gt.s32.totalorder %s248, 0
        %s250 = scalar_select %p249, %s248, 0
        %p251 = scmp.lt.s32.totalorder %s250, 3
        %s252 = scalar_select %p251, %s250, 3
        %p253 = scmp.lt.s32.totalorder %s18, 1
        %s254 = scalar_select %p253, %s18, 1
        %p255 = scmp.lt.s32.totalorder %s252, 3
        %s256 = scalar_select %p255, %s252, 3
        %p257 = scmp.lt.s32.totalorder %s20, 7
        %s258 = scalar_select %p257, %s20, 7
        %s259 = smul.addr %s256, 8
        %s260 = sadd.s32 %s258, %s259
        %s261 = smul.addr %s254, 32
        %s262 = sadd.s32 %s260, %s261
        %s263 = smul.addr %s262, 4
        %s264 = scalar_lea.vmem %s0, %s263
        %s265 = sadd.s32 %s19, 4294967295
        %p266 = scmp.gt.s32.totalorder %s265, 0
        %s267 = scalar_select %p266, %s265, 0
        %p268 = scmp.lt.s32.totalorder %s267, 3
        %s269 = scalar_select %p268, %s267, 3
      $region28: #{temporal_resnet_block.8} parent=23 // pred_fallthru
        _
      // Predicated region
      $region29: #{temporal_resnet_block.8} parent=23 // pred_check
        %p270 = pneg %p102
      $region30: #{temporal_resnet_block.8} parent=23 // pred_check_branch
        %272 = sbr.rel (%p270) target = $region32
      $region31: #{temporal_resnet_block.8} parent=23 // pred_region
        %p273 = scmp.gt.s32.totalorder %s19, 0
        %s274 = scalar_select %p273, %s19, 0
        %p275 = scmp.lt.s32.totalorder %s274, 3
        %s276 = scalar_select %p275, %s274, 3
        %p277 = scmp.lt.s32.totalorder %s18, 1
        %s278 = scalar_select %p277, %s18, 1
        %p279 = scmp.lt.s32.totalorder %s276, 3
        %s280 = scalar_select %p279, %s276, 3
        %p281 = scmp.lt.s32.totalorder %s20, 7
        %s282 = scalar_select %p281, %s20, 7
        %s283 = smul.addr %s280, 8
        %s284 = sadd.s32 %s282, %s283
        %s285 = smul.addr %s278, 32
        %s286 = sadd.s32 %s284, %s285
        %s287 = smul.addr %s286, 4
        %s288 = scalar_lea.vmem %s1, %s287
        %p289 = scmp.gt.s32.totalorder %s19, 0
        %s290 = scalar_select %p289, %s19, 0
        %p291 = scmp.lt.s32.totalorder %s290, 3
        %s292 = scalar_select %p291, %s290, 3
      $region32: #{temporal_resnet_block.8} parent=23 // pred_fallthru
        _
      // Predicated region
      $region33: #{temporal_resnet_block.8} parent=23 // pred_check
        %p293 = pneg %p142
      $region34: #{temporal_resnet_block.8} parent=23 // pred_check_branch
        %295 = sbr.rel (%p293) target = $region36
      $region35: #{temporal_resnet_block.8} parent=23 // pred_region
        %s296 = sadd.s32 %s19, 1
        %p297 = scmp.gt.s32.totalorder %s296, 0
        %s298 = scalar_select %p297, %s296, 0
        %p299 = scmp.lt.s32.totalorder %s298, 3
        %s300 = scalar_select %p299, %s298, 3
        %p301 = scmp.lt.s32.totalorder %s18, 1
        %s302 = scalar_select %p301, %s18, 1
        %p303 = scmp.lt.s32.totalorder %s300, 3
        %s304 = scalar_select %p303, %s300, 3
        %p305 = scmp.lt.s32.totalorder %s20, 7
        %s306 = scalar_select %p305, %s20, 7
        %s307 = smul.addr %s304, 8
        %s308 = sadd.s32 %s306, %s307
        %s309 = smul.addr %s302, 32
        %s310 = sadd.s32 %s308, %s309
        %s311 = smul.addr %s310, 4
        %s312 = scalar_lea.vmem %s2, %s311
        %s313 = sadd.s32 %s19, 1
        %p314 = scmp.gt.s32.totalorder %s313, 0
        %s315 = scalar_select %p314, %s313, 0
        %p316 = scmp.lt.s32.totalorder %s315, 3
        %s317 = scalar_select %p316, %s315, 3
      $region36: #{temporal_resnet_block.8} parent=23 // pred_fallthru
        _
    $region24: #{temporal_resnet_block.8} parent=5 // pred_fallthru
      _
    %p318 = scmp.le.s32.totalorder 1, %s11
    %p319 = scmp.lt.s32.totalorder %s11, 65
    %p320 = pnand %p318, %p319
    %p321 = pneg %p320
    // Predicated region
    $region37: #{temporal_resnet_block.8} parent=5 // pred_check
      _
    $region38: #{temporal_resnet_block.8} parent=5 // pred_check_branch
      %323 = sbr.rel (%p320) target = $region40
    $region39: #{temporal_resnet_block.8} parent=5 // pred_region
      %s324 = ssub.s32 %s11, 1
      %s325 = sadd.s32 %s22, 4294967295
      %p326 = scmp.gt.s32.totalorder %s325, 0
      %s327 = scalar_select %p326, %s325, 0
      %p328 = scmp.lt.s32.totalorder %s327, 3
      %s329 = scalar_select %p328, %s327, 3
      %p330 = scmp.lt.s32.totalorder %s21, 1
      %s331 = scalar_select %p330, %s21, 1
      %p332 = scmp.lt.s32.totalorder %s329, 3
      %s333 = scalar_select %p332, %s329, 3
      %p334 = scmp.lt.s32.totalorder %s23, 7
      %s335 = scalar_select %p334, %s23, 7
      %s336 = smul.addr %s333, 8
      %s337 = sadd.s32 %s335, %s336
      %s338 = smul.addr %s331, 32
      %s339 = sadd.s32 %s337, %s338
      %s340 = smul.addr %s339, 4
      %s341 = scalar_lea.vmem %s0, %s340
      %p342 = pneg %p70
      %p343 = pneg %p67
      %p344 = scmp.gt.s32.totalorder %s22, 0
      %s345 = scalar_select %p344, %s22, 0
      %p346 = scmp.lt.s32.totalorder %s345, 3
      %s347 = scalar_select %p346, %s345, 3
      %p348 = scmp.lt.s32.totalorder %s21, 1
      %s349 = scalar_select %p348, %s21, 1
      %p350 = scmp.lt.s32.totalorder %s347, 3
      %s351 = scalar_select %p350, %s347, 3
      %p352 = scmp.lt.s32.totalorder %s23, 7
      %s353 = scalar_select %p352, %s23, 7
      %s354 = smul.addr %s351, 8
      %s355 = sadd.s32 %s353, %s354
      %s356 = smul.addr %s349, 32
      %s357 = sadd.s32 %s355, %s356
      %s358 = smul.addr %s357, 4
      %s359 = scalar_lea.vmem %s1, %s358
      %p360 = pneg %p108
      %p361 = pneg %p105
      %s362 = sadd.s32 %s22, 1
      %p363 = scmp.gt.s32.totalorder %s362, 0
      %s364 = scalar_select %p363, %s362, 0
      %p365 = scmp.lt.s32.totalorder %s364, 3
      %s366 = scalar_select %p365, %s364, 3
      %p367 = scmp.lt.s32.totalorder %s21, 1
      %s368 = scalar_select %p367, %s21, 1
      %p369 = scmp.lt.s32.totalorder %s366, 3
      %s370 = scalar_select %p369, %s366, 3
      %p371 = scmp.lt.s32.totalorder %s23, 7
      %s372 = scalar_select %p371, %s23, 7
      %s373 = smul.addr %s370, 8
      %s374 = sadd.s32 %s372, %s373
      %s375 = smul.addr %s368, 32
      %s376 = sadd.s32 %s374, %s375
      %s377 = smul.addr %s376, 4
      %s378 = scalar_lea.vmem %s2, %s377
      %p379 = pneg %p148
      %p380 = pneg %p145
      %p381 = pneg %p169
      %p382 = pneg %p166
      %p383 = pneg %p190
      %p384 = pneg %p187
      %p385 = pneg %p220
      %p386 = pneg %p217
      %p387 = scmp.lt.s32.totalorder %s21, 1
      %s388 = scalar_select %p387, %s21, 1
      %p389 = scmp.lt.s32.totalorder %s22, 3
      %s390 = scalar_select %p389, %s22, 3
      %p391 = scmp.lt.s32.totalorder %s23, 7
      %s392 = scalar_select %p391, %s23, 7
      %s393 = smul.addr %s390, 8
      %s394 = sadd.s32 %s392, %s393
      %s395 = smul.addr %s388, 32
      %s396 = sadd.s32 %s394, %s395
      %s397 = smul.addr %s396, 4
      %s398 = scalar_lea.vmem %s5, %s397
      %s399 = sadd.s32 %s22, 4294967295
      %p400 = scmp.gt.s32.totalorder %s399, 0
      %s401 = scalar_select %p400, %s399, 0
      %p402 = scmp.lt.s32.totalorder %s401, 3
      %s403 = scalar_select %p402, %s401, 3
      %p404 = scmp.lt.s32.totalorder %s21, 1
      %s405 = scalar_select %p404, %s21, 1
      %p406 = scmp.lt.s32.totalorder %s403, 3
      %s407 = scalar_select %p406, %s403, 3
      %p408 = scmp.lt.s32.totalorder %s23, 7
      %s409 = scalar_select %p408, %s23, 7
      %s410 = smul.addr %s407, 8
      %s411 = sadd.s32 %s409, %s410
      %s412 = smul.addr %s405, 32
      %s413 = sadd.s32 %s411, %s412
      %s414 = smul.addr %s413, 4
      %s415 = scalar_lea.vmem %s0, %s414
      %s416 = sadd.s32 %s22, 4294967295
      %p417 = scmp.gt.s32.totalorder %s416, 0
      %s418 = scalar_select %p417, %s416, 0
      %p419 = scmp.lt.s32.totalorder %s418, 3
      %s420 = scalar_select %p419, %s418, 3
      %p421 = scmp.gt.s32.totalorder %s22, 0
      %s422 = scalar_select %p421, %s22, 0
      %p423 = scmp.lt.s32.totalorder %s422, 3
      %s424 = scalar_select %p423, %s422, 3
      %p425 = scmp.lt.s32.totalorder %s21, 1
      %s426 = scalar_select %p425, %s21, 1
      %p427 = scmp.lt.s32.totalorder %s424, 3
      %s428 = scalar_select %p427, %s424, 3
      %p429 = scmp.lt.s32.totalorder %s23, 7
      %s430 = scalar_select %p429, %s23, 7
      %s431 = smul.addr %s428, 8
      %s432 = sadd.s32 %s430, %s431
      %s433 = smul.addr %s426, 32
      %s434 = sadd.s32 %s432, %s433
      %s435 = smul.addr %s434, 4
      %s436 = scalar_lea.vmem %s1, %s435
      %p437 = scmp.gt.s32.totalorder %s22, 0
      %s438 = scalar_select %p437, %s22, 0
      %p439 = scmp.lt.s32.totalorder %s438, 3
      %s440 = scalar_select %p439, %s438, 3
      %s441 = sadd.s32 %s22, 1
      %p442 = scmp.gt.s32.totalorder %s441, 0
      %s443 = scalar_select %p442, %s441, 0
      %p444 = scmp.lt.s32.totalorder %s443, 3
      %s445 = scalar_select %p444, %s443, 3
      %p446 = scmp.lt.s32.totalorder %s21, 1
      %s447 = scalar_select %p446, %s21, 1
      %p448 = scmp.lt.s32.totalorder %s445, 3
      %s449 = scalar_select %p448, %s445, 3
      %p450 = scmp.lt.s32.totalorder %s23, 7
      %s451 = scalar_select %p450, %s23, 7
      %s452 = smul.addr %s449, 8
      %s453 = sadd.s32 %s451, %s452
      %s454 = smul.addr %s447, 32
      %s455 = sadd.s32 %s453, %s454
      %s456 = smul.addr %s455, 4
      %s457 = scalar_lea.vmem %s2, %s456
      %s458 = sadd.s32 %s22, 1
      %p459 = scmp.gt.s32.totalorder %s458, 0
      %s460 = scalar_select %p459, %s458, 0
      %p461 = scmp.lt.s32.totalorder %s460, 3
      %s462 = scalar_select %p461, %s460, 3
      %p463 = scmp.lt.s32.totalorder %s21, 1
      %s464 = scalar_select %p463, %s21, 1
      %p465 = scmp.lt.s32.totalorder %s22, 3
      %s466 = scalar_select %p465, %s22, 3
      %p467 = scmp.lt.s32.totalorder %s23, 7
      %s468 = scalar_select %p467, %s23, 7
      %s469 = smul.addr %s466, 8
      %s470 = sadd.s32 %s468, %s469
      %s471 = smul.addr %s464, 32
      %s472 = sadd.s32 %s470, %s471
      %s473 = smul.addr %s472, 4
      %s474 = scalar_lea.vmem %s5, %s473
      %v476 = vld [vmem:[%s415] sm:$0xf]
      %v477 = vld [vmem:[%s436] sm:$0xf]
      %v478 = vld [vmem:[%s457] sm:$0xf]
      %v479 = vld [vmem:[%s3] sm:$0xf]
      %v480 = vld [vmem:[%s3 + $0x4] sm:$0xf]
      %v481 = vld [vmem:[%s3 + $0x8] sm:$0xf]
      %v482 = vld [vmem:[%s3 + $0xc] sm:$0xf]
      %v483 = vld [vmem:[%s3 + $0x10] sm:$0xf]
      %v484 = vld [vmem:[%s3 + $0x14] sm:$0xf]
      %v485 = vld [vmem:[%s3 + $0x18] sm:$0xf]
      %v486 = vld [vmem:[%s3 + $0x1c] sm:$0xf]
      %v487 = vld [vmem:[%s3 + $0x20] sm:$0xf]
      %v488 = vld [vmem:[%s3 + $0x24] sm:$0xf]
      %v489 = vld [vmem:[%s3 + $0x28] sm:$0xf]
      %v490 = vld [vmem:[%s3 + $0x2c] sm:$0xf]
      %v491 = vld [vmem:[%s3 + $0x30] sm:$0xf]
      %v492 = vld [vmem:[%s3 + $0x34] sm:$0xf]
      %v493 = vld [vmem:[%s3 + $0x38] sm:$0xf]
      %v494 = vld [vmem:[%s3 + $0x3c] sm:$0xf]
      %v495 = vld [vmem:[%s3 + $0x40] sm:$0xf]
      %v496 = vld [vmem:[%s3 + $0x44] sm:$0xf]
      %v497 = vld [vmem:[%s3 + $0x48] sm:$0xf]
      %v498 = vld [vmem:[%s3 + $0x4c] sm:$0xf]
      %v499 = vld [vmem:[%s3 + $0x50] sm:$0xf]
      %v500 = vld [vmem:[%s3 + $0x54] sm:$0xf]
      %v501 = vld [vmem:[%s3 + $0x58] sm:$0xf]
      %v502 = vld [vmem:[%s3 + $0x5c] sm:$0xf]
      %v503 = vld [vmem:[%s3 + $0x60] sm:$0xf]
      %v504 = vld [vmem:[%s3 + $0x64] sm:$0xf]
      %v505 = vld [vmem:[%s3 + $0x68] sm:$0xf]
      %v506 = vld [vmem:[%s3 + $0x6c] sm:$0xf]
      %v507 = vld [vmem:[%s3 + $0x70] sm:$0xf]
      %v508 = vld [vmem:[%s3 + $0x74] sm:$0xf]
      %v509 = vld [vmem:[%s3 + $0x78] sm:$0xf]
      %v510 = vld [vmem:[%s3 + $0x7c] sm:$0xf]
      %v511 = vld [vmem:[%s3 + $0x80] sm:$0xf]
      %v512 = vld [vmem:[%s3 + $0x84] sm:$0xf]
      %v513 = vld [vmem:[%s3 + $0x88] sm:$0xf]
      %v514 = vld [vmem:[%s3 + $0x8c] sm:$0xf]
      %v515 = vld [vmem:[%s3 + $0x90] sm:$0xf]
      %v516 = vld [vmem:[%s3 + $0x94] sm:$0xf]
      %v517 = vld [vmem:[%s3 + $0x98] sm:$0xf]
      %v518 = vld [vmem:[%s3 + $0x9c] sm:$0xf]
      %v519 = vld [vmem:[%s3 + $0xa0] sm:$0xf]
      %v520 = vld [vmem:[%s3 + $0xa4] sm:$0xf]
      %v521 = vld [vmem:[%s3 + $0xa8] sm:$0xf]
      %v522 = vld [vmem:[%s3 + $0xac] sm:$0xf]
      %v523 = vld [vmem:[%s3 + $0xb0] sm:$0xf]
      %v524 = vld [vmem:[%s3 + $0xb4] sm:$0xf]
      %v525 = vld [vmem:[%s3 + $0xb8] sm:$0xf]
      %v526 = vld [vmem:[%s3 + $0xbc] sm:$0xf]
      %v527 = vld [vmem:[%s4] sm:$0x1]
      %v529 = vlaneseq
      %v530 = vshrl.u32 %v529, 7
      %v531 = vsub.s32 0, %v530
      %v532 = vrot.slane %v527, %v531
      %v582 = vunpack.c.l.b16 %v479
      %v583 = vunpack.c.l.b16 %v480
      %v584 = vunpack.c.l.b16 %v481
      %v585 = vunpack.c.l.b16 %v482
      %v586 = vunpack.c.l.b16 %v483
      %v587 = vunpack.c.l.b16 %v484
      %v588 = vunpack.c.l.b16 %v485
      %v589 = vunpack.c.l.b16 %v486
      %v590 = vunpack.c.l.b16 %v487
      %v591 = vunpack.c.l.b16 %v488
      %v592 = vunpack.c.l.b16 %v489
      %v593 = vunpack.c.l.b16 %v490
      %v594 = vunpack.c.l.b16 %v491
      %v595 = vunpack.c.l.b16 %v492
      %v596 = vunpack.c.l.b16 %v493
      %v597 = vunpack.c.l.b16 %v494
      %v598 = vunpack.c.l.b16 %v495
      %v599 = vunpack.c.l.b16 %v496
      %v600 = vunpack.c.l.b16 %v497
      %v601 = vunpack.c.l.b16 %v498
      %v602 = vunpack.c.l.b16 %v499
      %v603 = vunpack.c.l.b16 %v500
      %v604 = vunpack.c.l.b16 %v501
      %v605 = vunpack.c.l.b16 %v502
      %v606 = vunpack.c.l.b16 %v503
      %v607 = vunpack.c.l.b16 %v504
      %v608 = vunpack.c.l.b16 %v505
      %v609 = vunpack.c.l.b16 %v506
      %v610 = vunpack.c.l.b16 %v507
      %v611 = vunpack.c.l.b16 %v508
      %v612 = vunpack.c.l.b16 %v509
      %v613 = vunpack.c.l.b16 %v510
      %v614 = vunpack.c.l.b16 %v511
      %v615 = vunpack.c.l.b16 %v512
      %v616 = vunpack.c.l.b16 %v513
      %v617 = vunpack.c.l.b16 %v514
      %v618 = vunpack.c.l.b16 %v515
      %v619 = vunpack.c.l.b16 %v516
      %v620 = vunpack.c.l.b16 %v517
      %v621 = vunpack.c.l.b16 %v518
      %v622 = vunpack.c.l.b16 %v519
      %v623 = vunpack.c.l.b16 %v520
      %v624 = vunpack.c.l.b16 %v521
      %v625 = vunpack.c.l.b16 %v522
      %v626 = vunpack.c.l.b16 %v523
      %v627 = vunpack.c.l.b16 %v524
      %v628 = vunpack.c.l.b16 %v525
      %v629 = vunpack.c.l.b16 %v526
      %v630 = vpack.c.b16 %v583, %v582
      %v631 = vpack.c.b16 %v585, %v584
      %v632 = vpack.c.b16 %v587, %v586
      %v633 = vpack.c.b16 %v589, %v588
      %v634 = vpack.c.b16 %v591, %v590
      %v635 = vpack.c.b16 %v593, %v592
      %v636 = vpack.c.b16 %v595, %v594
      %v637 = vpack.c.b16 %v597, %v596
      %v638 = vpack.c.b16 %v599, %v598
      %v639 = vpack.c.b16 %v601, %v600
      %v640 = vpack.c.b16 %v603, %v602
      %v641 = vpack.c.b16 %v605, %v604
      %v642 = vpack.c.b16 %v607, %v606
      %v643 = vpack.c.b16 %v609, %v608
      %v644 = vpack.c.b16 %v611, %v610
      %v645 = vpack.c.b16 %v613, %v612
      %v646 = vpack.c.b16 %v615, %v614
      %v647 = vpack.c.b16 %v617, %v616
      %v648 = vpack.c.b16 %v619, %v618
      %v649 = vpack.c.b16 %v621, %v620
      %v650 = vpack.c.b16 %v623, %v622
      %v651 = vpack.c.b16 %v625, %v624
      %v652 = vpack.c.b16 %v627, %v626
      %v653 = vpack.c.b16 %v629, %v628
      %678 = vmatprep.subr.bf16.mxu0 0
      %679 = vmatpush1.bf16.msra.mxu0 %v630
      %680 = vmatprep.subr.bf16.mxu0 0
      %681 = vmatpush1.bf16.msra.mxu0 %v631
      %682 = vmatprep.subr.bf16.mxu0 0
      %683 = vmatpush1.bf16.msra.mxu0 %v632
      %684 = vmatprep.subr.bf16.mxu0 0
      %685 = vmatpush1.bf16.msra.mxu0 %v633
      %686 = vmatprep.subr.bf16.mxu0 0
      %687 = vmatpush1.bf16.msra.mxu0 %v634
      %688 = vmatprep.subr.bf16.mxu0 0
      %689 = vmatpush1.bf16.msra.mxu0 %v635
      %690 = vmatprep.subr.bf16.mxu0 0
      %691 = vmatpush1.bf16.msra.mxu0 %v636
      %692 = vmatprep.subr.bf16.mxu0 0
      %693 = vmatpush1.bf16.msra.mxu0 %v637
      %694 = vmatprep.subr.bf16.mxu0 0
      %695 = vmatpush1.bf16.msra.mxu0 %v638
      %696 = vmatprep.subr.bf16.mxu0 0
      %697 = vmatpush1.bf16.msra.mxu0 %v639
      %698 = vmatprep.subr.bf16.mxu0 0
      %699 = vmatpush1.bf16.msra.mxu0 %v640
      %700 = vmatprep.subr.bf16.mxu0 0
      %701 = vmatpush1.bf16.msra.mxu0 %v641
      %702 = vmatprep.subr.bf16.mxu0 0
      %703 = vmatpush1.bf16.msra.mxu0 %v642
      %704 = vmatprep.subr.bf16.mxu0 0
      %705 = vmatpush1.bf16.msra.mxu0 %v643
      %706 = vmatprep.subr.bf16.mxu0 0
      %707 = vmatpush1.bf16.msra.mxu0 %v644
      %708 = vmatprep.subr.bf16.mxu0 0
      %709 = vmatpush1.bf16.msra.mxu0 %v645
      %710 = vmatprep.mubr.bf16.mxu0 %v477
      %711 = vmatmul.mubr.bf16.gmra.mrb[0].mxu0 %v476
      %v712 = vpop.f32.mrb[0].mxu0
      %v713 = vadd.f32 %v532, %v712
      %v714 = vpop.f32.mrb[0].mxu0
      %v715 = vpop.f32.mrb[0].mxu0
      %v716 = vpop.f32.mrb[0].mxu0
      %717 = vdwg.mxu0
      %718 = vmatprep.subr.bf16.mxu0 0
      %719 = vmatpush1.bf16.msra.mxu0 %v646
      %720 = vmatprep.subr.bf16.mxu0 0
      %721 = vmatpush1.bf16.msra.mxu0 %v647
      %722 = vmatprep.subr.bf16.mxu0 0
      %723 = vmatpush1.bf16.msra.mxu0 %v648
      %724 = vmatprep.subr.bf16.mxu0 0
      %725 = vmatpush1.bf16.msra.mxu0 %v649
      %726 = vmatprep.subr.bf16.mxu0 0
      %727 = vmatpush1.bf16.msra.mxu0 %v650
      %728 = vmatprep.subr.bf16.mxu0 0
      %729 = vmatpush1.bf16.msra.mxu0 %v651
      %730 = vmatprep.subr.bf16.mxu0 0
      %731 = vmatpush1.bf16.msra.mxu0 %v652
      %732 = vmatprep.subr.bf16.mxu0 0
      %733 = vmatpush1.bf16.msra.mxu0 %v653
      %734 = vmatprep.subr.bf16.mxu0 0
      %735 = vmatpush1.bf16.msra.mxu0 0
      %736 = vmatprep.subr.bf16.mxu0 0
      %737 = vmatpush1.bf16.msra.mxu0 0
      %738 = vmatprep.subr.bf16.mxu0 0
      %739 = vmatpush1.bf16.msra.mxu0 0
      %740 = vmatprep.subr.bf16.mxu0 0
      %741 = vmatpush1.bf16.msra.mxu0 0
      %742 = vmatprep.subr.bf16.mxu0 0
      %743 = vmatpush1.bf16.msra.mxu0 0
      %744 = vmatprep.subr.bf16.mxu0 0
      %745 = vmatpush1.bf16.msra.mxu0 0
      %746 = vmatprep.subr.bf16.mxu0 0
      %747 = vmatpush1.bf16.msra.mxu0 0
      %748 = vmatprep.subr.bf16.mxu0 0
      %749 = vmatpush1.bf16.msra.mxu0 0
      %750 = vmatprep.mubr.bf16.mxu0 0
      %751 = vmatmul.mubr.bf16.gmra.mrb[0].mxu0 %v478
      %v752 = vpop.f32.mrb[0].mxu0
      %v753 = vadd.f32 %v713, %v752
      %v754 = vpop.f32.mrb[0].mxu0
      %v755 = vpop.f32.mrb[0].mxu0
      %v756 = vpop.f32.mrb[0].mxu0
      %757 = vdwg.mxu0
      %v758 = vpack.c.bf16 %v753, %v753
      %759 = vst [vmem:[%s474] sm:$0xf] %v758
      %p760 = scmp.lt.s32.totalorder %s21, 1
      %s761 = scalar_select %p760, %s21, 1
      %p762 = scmp.lt.s32.totalorder %s22, 3
      %s763 = scalar_select %p762, %s22, 3
      %p764 = scmp.lt.s32.totalorder %s23, 7
      %s765 = scalar_select %p764, %s23, 7
      %s766 = smul.addr %s763, 8
      %s767 = sadd.s32 %s765, %s766
      %s768 = smul.addr %s761, 32
      %s769 = sadd.s32 %s767, %s768
      %s770 = smul.addr %s769, 4
      %s771 = scalar_lea.vmem %s5, %s770
      // Predicated region
      $region41: #{temporal_resnet_block.8} parent=39 // pred_check
        %p772 = pneg %p217
      $region42: #{temporal_resnet_block.8} parent=39 // pred_check_branch
        %774 = sbr.rel (%p772) target = $region44
      $region43: #{temporal_resnet_block.8} parent=39 // pred_region
        _
      $region44: #{temporal_resnet_block.8} parent=39 // pred_fallthru
        _
    $region40: #{temporal_resnet_block.8} parent=5 // pred_fallthru
      _
    %p775 = scmp.le.s32.totalorder 2, %s11
    // Predicated region
    $region45: #{temporal_resnet_block.8} parent=5 // pred_check
      %p776 = pneg %p775
    $region46: #{temporal_resnet_block.8} parent=5 // pred_check_branch
      %778 = sbr.rel (%p776) target = $region48
    $region47: #{temporal_resnet_block.8} parent=5 // pred_region
      %s779 = ssub.s32 %s11, 2
      // Predicated region
      $region49: #{temporal_resnet_block.8} parent=47 // pred_check
        %p780 = pneg %p223
      $region50: #{temporal_resnet_block.8} parent=47 // pred_check_branch
        %782 = sbr.rel (%p780) target = $region52
      $region51: #{temporal_resnet_block.8} parent=47 // pred_region
        %p783 = scmp.lt.s32.totalorder %s24, 1
        %s784 = scalar_select %p783, %s24, 1
        %p785 = scmp.lt.s32.totalorder %s25, 3
        %s786 = scalar_select %p785, %s25, 3
        %p787 = scmp.lt.s32.totalorder %s26, 7
        %s788 = scalar_select %p787, %s26, 7
        %s789 = smul.addr %s786, 8
        %s790 = sadd.s32 %s788, %s789
        %s791 = smul.addr %s784, 32
        %s792 = sadd.s32 %s790, %s791
        %s793 = smul.addr %s792, 4
        %s794 = scalar_lea.vmem %s5, %s793
      $region52: #{temporal_resnet_block.8} parent=47 // pred_fallthru
        _
    $region48: #{temporal_resnet_block.8} parent=5 // pred_fallthru
      _
  $region6: #{temporal_resnet_block.8} parent=0 // loop_footer
    %s15 = sadd.s32 1, %s11
  $region7: #{temporal_resnet_block.8} parent=0 // loop_footer_branch
    %10 = sbr.rel target = $region3
  $region8: #{temporal_resnet_block.8} parent=0 // loop_exit
    _

// kernel: temporal_resnet_block.9
$region0: #{temporal_resnet_block.9}
  #allocation0 [shape = 'u32[]', space=smem, size = 0x4, offset = 0x4, fixed_abs, tag = 'smem constant byte address 0x4 - core index']
  #allocation1 [shape = 'u32[144,128]{1,0:T(1,128)}', space=vmem, size = 0x12000, scoped, tag = 'internal scratch']
  %s0 = inlined_call_operand.vmem [shape: bf16[2,4,8,8,128], index: 0, kind: input, shape index: {}]
  %s1 = inlined_call_operand.vmem [shape: f32[2,4,1,128], index: 1, kind: output, shape index: {0}]
  %s2 = inlined_call_operand.vmem [shape: f32[2,4,1,128], index: 2, kind: output, shape index: {1}]
  %3 = xla_tuple %s1, %s2
  %s4 = sld [smem:[#allocation0]]
  $region49: #{temporal_resnet_block.9} parent=0
    _
  %s6 = ssub.s32 1, %s4
  %s7 = scalar_select 0, %s6, %s4
  loop: start=0, step=1, limit=66
  $region2: #{temporal_resnet_block.9} parent=0 // loop_pre_header
    _
  $region3: #{temporal_resnet_block.9} parent=0 // loop_header
    %s9 = sphi 0, %s13
    %p10 = scmp.ge.s32.totalorder %s9, 66
    %s16 = sphi 0, %s35
    %s17 = sphi 0, %s31
    %s18 = sphi 0, %s27
    %s19 = sphi 0, %s16
    %s20 = sphi 0, %s17
    %s21 = sphi 0, %s18
    %s22 = sphi 0, %s19
    %s23 = sphi 0, %s20
    %s24 = sphi 0, %s21
    %s42 = sphi 0, %s44
    %s45 = sphi 0, %s42
    %s46 = sphi 0, %s45
    %s62 = sphi 0, %s46
    %s70 = sphi 0, %s72
    %s73 = sphi 0, %s70
    %s74 = sphi 0, %s73
    %s90 = sphi 0, %s74
    %s98 = sphi 0, %s100
    %s101 = sphi 0, %s98
    %s102 = sphi 0, %s101
    %s118 = sphi 0, %s102
  $region4: #{temporal_resnet_block.9} parent=0 // loop_header_branch
    %12 = sbr.rel (%p10) target = $region8
  $region5: #{temporal_resnet_block.9} parent=0 // loop_body
    %s14 = ssub.s32 %s9, 1
    %s15 = ssub.s32 %s9, 2
    %s25 = sadd.s32 1, %s18
    %p26 = scmp.ge.s32.totalorder %s25, 8
    %s27 = scalar_select %p26, 0, %s25
    %s28 = sadd.s32 1, %s17
    %s29 = scalar_select %p26, %s28, %s17
    %p30 = scmp.ge.s32.totalorder %s29, 4
    %s31 = scalar_select %p30, 0, %s29
    %s32 = sadd.s32 1, %s16
    %s33 = scalar_select %p30, %s32, %s16
    %p34 = scmp.ge.s32.totalorder %s33, 2
    %s35 = scalar_select %p34, 0, %s33
    %s36 = ssub.s32 %s16, %s35
    %s37 = ssub.s32 %s17, %s31
    %s38 = sor.u32 %s36, %s37
    %s39 = ssub.s32 %s18, %s27
    %s40 = sor.u32 %s38, %s39
    %p41 = scmp.eq.s32.totalorder %s40, 0
    %s43 = sadd.s32 %s42, 1
    %s44 = scalar_select %p41, %s42, %s43
    %p47 = pneg %p41
    %p48 = scmp.eq.s32.totalorder %s9, 63
    %p49 = por %p47, %p48
    %p50 = scmp.ne.s32.totalorder %s42, %s45
    %p51 = scmp.eq.s32.totalorder %s9, 0
    %p52 = por %p50, %p51
    %p53 = scmp.ne.s32.totalorder %s42, %s45
    %p54 = scmp.eq.s32.totalorder %s14, 63
    %p55 = por %p53, %p54
    %p56 = scmp.ne.s32.totalorder %s45, %s46
    %p57 = scmp.eq.s32.totalorder %s14, 0
    %p58 = por %p56, %p57
    %p59 = scmp.ne.s32.totalorder %s45, %s46
    %p60 = scmp.eq.s32.totalorder %s15, 63
    %p61 = por %p59, %p60
    %p63 = scmp.ne.s32.totalorder %s46, %s62
    %p64 = scmp.eq.s32.totalorder %s15, 0
    %p65 = por %p63, %p64
    %s66 = ssub.s32 %s16, %s35
    %s67 = ssub.s32 %s17, %s31
    %s68 = sor.u32 %s66, %s67
    %p69 = scmp.eq.s32.totalorder %s68, 0
    %s71 = sadd.s32 %s70, 1
    %s72 = scalar_select %p69, %s70, %s71
    %p75 = pneg %p69
    %p76 = scmp.eq.s32.totalorder %s9, 63
    %p77 = por %p75, %p76
    %p78 = scmp.ne.s32.totalorder %s70, %s73
    %p79 = scmp.eq.s32.totalorder %s9, 0
    %p80 = por %p78, %p79
    %p81 = scmp.ne.s32.totalorder %s70, %s73
    %p82 = scmp.eq.s32.totalorder %s14, 63
    %p83 = por %p81, %p82
    %p84 = scmp.ne.s32.totalorder %s73, %s74
    %p85 = scmp.eq.s32.totalorder %s14, 0
    %p86 = por %p84, %p85
    %p87 = scmp.ne.s32.totalorder %s73, %s74
    %p88 = scmp.eq.s32.totalorder %s15, 63
    %p89 = por %p87, %p88
    %p91 = scmp.ne.s32.totalorder %s74, %s90
    %p92 = scmp.eq.s32.totalorder %s15, 0
    %p93 = por %p91, %p92
    %s94 = ssub.s32 %s16, %s35
    %s95 = ssub.s32 %s17, %s31
    %s96 = sor.u32 %s94, %s95
    %p97 = scmp.eq.s32.totalorder %s96, 0
    %s99 = sadd.s32 %s98, 1
    %s100 = scalar_select %p97, %s98, %s99
    %p103 = pneg %p97
    %p104 = scmp.eq.s32.totalorder %s9, 63
    %p105 = por %p103, %p104
    %p106 = scmp.ne.s32.totalorder %s98, %s101
    %p107 = scmp.eq.s32.totalorder %s9, 0
    %p108 = por %p106, %p107
    %p109 = scmp.ne.s32.totalorder %s98, %s101
    %p110 = scmp.eq.s32.totalorder %s14, 63
    %p111 = por %p109, %p110
    %p112 = scmp.ne.s32.totalorder %s101, %s102
    %p113 = scmp.eq.s32.totalorder %s14, 0
    %p114 = por %p112, %p113
    %p115 = scmp.ne.s32.totalorder %s101, %s102
    %p116 = scmp.eq.s32.totalorder %s15, 63
    %p117 = por %p115, %p116
    %p119 = scmp.ne.s32.totalorder %s102, %s118
    %p120 = scmp.eq.s32.totalorder %s15, 0
    %p121 = por %p119, %p120
    %p122 = scmp.le.s32.totalorder 1, %s9
    %p123 = scmp.lt.s32.totalorder %s9, 65
    %p124 = pnand %p122, %p123
    %p125 = pneg %p124
    // Predicated region
    $region9: #{temporal_resnet_block.9} parent=5 // pred_check
      _
    $region10: #{temporal_resnet_block.9} parent=5 // pred_check_branch
      %127 = sbr.rel (%p124) target = $region12
    $region11: #{temporal_resnet_block.9} parent=5 // pred_region
      %s128 = ssub.s32 %s9, 1
    $region12: #{temporal_resnet_block.9} parent=5 // pred_fallthru
      _
    %p129 = scmp.lt.s32.totalorder %s9, 64
    // Predicated region
    $region13: #{temporal_resnet_block.9} parent=5 // pred_check
      %p130 = pneg %p129
    $region14: #{temporal_resnet_block.9} parent=5 // pred_check_branch
      %132 = sbr.rel (%p130) target = $region16
    $region15: #{temporal_resnet_block.9} parent=5 // pred_region
      // Predicated region
      $region17: #{temporal_resnet_block.9} parent=15 // pred_check
        %p133 = pneg %p52
      $region18: #{temporal_resnet_block.9} parent=15 // pred_check_branch
        %135 = sbr.rel (%p133) target = $region20
      $region19: #{temporal_resnet_block.9} parent=15 // pred_region
        %p136 = scmp.lt.s32.totalorder %s16, 1
        %s137 = scalar_select %p136, %s16, 1
        %p138 = scmp.lt.s32.totalorder %s17, 3
        %s139 = scalar_select %p138, %s17, 3
        %p140 = scmp.lt.s32.totalorder %s18, 7
        %s141 = scalar_select %p140, %s18, 7
        %s142 = smul.addr %s139, 8
        %s143 = sadd.s32 %s141, %s142
        %s144 = smul.addr %s137, 32
        %s145 = sadd.s32 %s143, %s144
        %s146 = smul.addr %s145, 4
        %s147 = scalar_lea.vmem %s0, %s146
      $region20: #{temporal_resnet_block.9} parent=15 // pred_fallthru
        _
    $region16: #{temporal_resnet_block.9} parent=5 // pred_fallthru
      _
    %p148 = scmp.le.s32.totalorder 1, %s9
    %p149 = scmp.lt.s32.totalorder %s9, 65
    %p150 = pnand %p148, %p149
    %p151 = pneg %p150
    // Predicated region
    $region21: #{temporal_resnet_block.9} parent=5 // pred_check
      _
    $region22: #{temporal_resnet_block.9} parent=5 // pred_check_branch
      %153 = sbr.rel (%p150) target = $region24
    $region23: #{temporal_resnet_block.9} parent=5 // pred_region
      %s154 = ssub.s32 %s9, 1
      %p155 = scmp.lt.s32.totalorder %s19, 1
      %s156 = scalar_select %p155, %s19, 1
      %p157 = scmp.lt.s32.totalorder %s20, 3
      %s158 = scalar_select %p157, %s20, 3
      %p159 = scmp.lt.s32.totalorder %s21, 7
      %s160 = scalar_select %p159, %s21, 7
      %s161 = smul.addr %s158, 8
      %s162 = sadd.s32 %s160, %s161
      %s163 = smul.addr %s156, 32
      %s164 = sadd.s32 %s162, %s163
      %s165 = smul.addr %s164, 4
      %s166 = scalar_lea.vmem %s0, %s165
      %p167 = pneg %p58
      %p168 = pneg %p55
      %p169 = pneg %p86
      %p170 = pneg %p83
      %p171 = scmp.lt.s32.totalorder %s19, 1
      %s172 = scalar_select %p171, %s19, 1
      %p173 = scmp.lt.s32.totalorder %s20, 3
      %s174 = scalar_select %p173, %s20, 3
      %s175 = smul.addr %s172, 4
      %s176 = sadd.s32 %s174, %s175
      %s177 = scalar_lea.vmem %s1, %s176
      %p178 = pneg %p114
      %p179 = pneg %p111
      %p180 = scmp.lt.s32.totalorder %s19, 1
      %s181 = scalar_select %p180, %s19, 1
      %p182 = scmp.lt.s32.totalorder %s20, 3
      %s183 = scalar_select %p182, %s20, 3
      %s184 = smul.addr %s181, 4
      %s185 = sadd.s32 %s183, %s184
      %s186 = scalar_lea.vmem %s2, %s185
      %p187 = scmp.lt.s32.totalorder %s19, 1
      %s188 = scalar_select %p187, %s19, 1
      %p189 = scmp.lt.s32.totalorder %s20, 3
      %s190 = scalar_select %p189, %s20, 3
      %p191 = scmp.lt.s32.totalorder %s21, 7
      %s192 = scalar_select %p191, %s21, 7
      %s193 = smul.addr %s190, 8
      %s194 = sadd.s32 %s192, %s193
      %s195 = smul.addr %s188, 32
      %s196 = sadd.s32 %s194, %s195
      %s197 = smul.addr %s196, 4
      %s198 = scalar_lea.vmem %s0, %s197
      %p199 = scmp.lt.s32.totalorder %s19, 1
      %s200 = scalar_select %p199, %s19, 1
      %p201 = scmp.lt.s32.totalorder %s20, 3
      %s202 = scalar_select %p201, %s20, 3
      %s203 = smul.addr %s200, 4
      %s204 = sadd.s32 %s202, %s203
      %s205 = scalar_lea.vmem %s1, %s204
      %p206 = scmp.lt.s32.totalorder %s19, 1
      %s207 = scalar_select %p206, %s19, 1
      %p208 = scmp.lt.s32.totalorder %s20, 3
      %s209 = scalar_select %p208, %s20, 3
      %s210 = smul.addr %s207, 4
      %s211 = sadd.s32 %s209, %s210
      %s212 = scalar_lea.vmem %s2, %s211
      %p213 = scmp.eq.s32.totalorder %s21, 0
      // Predicated region
      $region25: #{temporal_resnet_block.9} parent=23 // pred_check
        %p214 = pneg %p213
      $region26: #{temporal_resnet_block.9} parent=23 // pred_check_branch
        %216 = sbr.rel (%p214) target = $region28
      $region27: #{temporal_resnet_block.9} parent=23 // pred_region
        %217 = vst [vmem:[%s205] sm:$0x1] 0.0
        %218 = vst [vmem:[%s212] sm:$0x1] 0.0
      $region28: #{temporal_resnet_block.9} parent=23 // pred_fallthru
        _
      %v219 = vld [vmem:[%s198] sm:$0xf]
      %v220 = vunpack.c.l.bf16 %v219
      %v221 = vld [vmem:[%s205] sm:$0x1]
      %v222 = vrot.slane %v220, 4
      %v223 = vadd.f32 %v220, %v222
      %v224 = vrot.slane %v223, 2
      %v225 = vadd.f32 %v223, %v224
      %v226 = vrot.slane %v225, 1
      %v227 = vadd.f32 %v225, %v226
      %v228 = vadd.f32 %v221, %v227
      %229 = vst [vmem:[%s205] sm:$0x1] %v228
      %v230 = vld [vmem:[%s212] sm:$0x1]
      %v231 = vmul.f32 %v220, %v220
      %v232 = vrot.slane %v231, 4
      %v233 = vadd.f32 %v231, %v232
      %v234 = vrot.slane %v233, 2
      %v235 = vadd.f32 %v233, %v234
      %v236 = vrot.slane %v235, 1
      %v237 = vadd.f32 %v235, %v236
      %v238 = vadd.f32 %v230, %v237
      %239 = vst [vmem:[%s212] sm:$0x1] %v238
      %p240 = scmp.lt.s32.totalorder %s19, 1
      %s241 = scalar_select %p240, %s19, 1
      %p242 = scmp.lt.s32.totalorder %s20, 3
      %s243 = scalar_select %p242, %s20, 3
      %s244 = smul.addr %s241, 4
      %s245 = sadd.s32 %s243, %s244
      %s246 = scalar_lea.vmem %s1, %s245
      %p247 = scmp.lt.s32.totalorder %s19, 1
      %s248 = scalar_select %p247, %s19, 1
      %p249 = scmp.lt.s32.totalorder %s20, 3
      %s250 = scalar_select %p249, %s20, 3
      %s251 = smul.addr %s248, 4
      %s252 = sadd.s32 %s250, %s251
      %s253 = scalar_lea.vmem %s2, %s252
      // Predicated region
      $region29: #{temporal_resnet_block.9} parent=23 // pred_check
        %p254 = pneg %p83
      $region30: #{temporal_resnet_block.9} parent=23 // pred_check_branch
        %256 = sbr.rel (%p254) target = $region32
      $region31: #{temporal_resnet_block.9} parent=23 // pred_region
        _
      $region32: #{temporal_resnet_block.9} parent=23 // pred_fallthru
        _
      // Predicated region
      $region33: #{temporal_resnet_block.9} parent=23 // pred_check
        %p257 = pneg %p111
      $region34: #{temporal_resnet_block.9} parent=23 // pred_check_branch
        %259 = sbr.rel (%p257) target = $region36
      $region35: #{temporal_resnet_block.9} parent=23 // pred_region
        _
      $region36: #{temporal_resnet_block.9} parent=23 // pred_fallthru
        _
    $region24: #{temporal_resnet_block.9} parent=5 // pred_fallthru
      _
    %p260 = scmp.le.s32.totalorder 2, %s9
    // Predicated region
    $region37: #{temporal_resnet_block.9} parent=5 // pred_check
      %p261 = pneg %p260
    $region38: #{temporal_resnet_block.9} parent=5 // pred_check_branch
      %263 = sbr.rel (%p261) target = $region40
    $region39: #{temporal_resnet_block.9} parent=5 // pred_region
      %s264 = ssub.s32 %s9, 2
      // Predicated region
      $region41: #{temporal_resnet_block.9} parent=39 // pred_check
        %p265 = pneg %p89
      $region42: #{temporal_resnet_block.9} parent=39 // pred_check_branch
        %267 = sbr.rel (%p265) target = $region44
      $region43: #{temporal_resnet_block.9} parent=39 // pred_region
        %p268 = scmp.lt.s32.totalorder %s22, 1
        %s269 = scalar_select %p268, %s22, 1
        %p270 = scmp.lt.s32.totalorder %s23, 3
        %s271 = scalar_select %p270, %s23, 3
        %s272 = smul.addr %s269, 4
        %s273 = sadd.s32 %s271, %s272
        %s274 = scalar_lea.vmem %s1, %s273
      $region44: #{temporal_resnet_block.9} parent=39 // pred_fallthru
        _
      // Predicated region
      $region45: #{temporal_resnet_block.9} parent=39 // pred_check
        %p275 = pneg %p117
      $region46: #{temporal_resnet_block.9} parent=39 // pred_check_branch
        %277 = sbr.rel (%p275) target = $region48
      $region47: #{temporal_resnet_block.9} parent=39 // pred_region
        %p278 = scmp.lt.s32.totalorder %s22, 1
        %s279 = scalar_select %p278, %s22, 1
        %p280 = scmp.lt.s32.totalorder %s23, 3
        %s281 = scalar_select %p280, %s23, 3
        %s282 = smul.addr %s279, 4
        %s283 = sadd.s32 %s281, %s282
        %s284 = scalar_lea.vmem %s2, %s283
      $region48: #{temporal_resnet_block.9} parent=39 // pred_fallthru
        _
    $region40: #{temporal_resnet_block.9} parent=5 // pred_fallthru
      _
  $region6: #{temporal_resnet_block.9} parent=0 // loop_footer
    %s13 = sadd.s32 1, %s9
  $region7: #{temporal_resnet_block.9} parent=0 // loop_footer_branch
    %8 = sbr.rel target = $region3
  $region8: #{temporal_resnet_block.9} parent=0 // loop_exit
    _

// kernel: temporal_resnet_block.7
$region0: #{temporal_resnet_block.7}
  #allocation0 [shape = 'u32[]', space=smem, size = 0x4, offset = 0x4, fixed_abs, tag = 'smem constant byte address 0x4 - core index']
  #allocation1 [shape = 'u32[144,128]{1,0:T(1,128)}', space=vmem, size = 0x12000, scoped, tag = 'internal scratch']
  %s0 = inlined_call_operand.vmem [shape: f32[2,4,8,8,128], index: 0, kind: input, shape index: {}, may-alias: {0,1,2}]
  %s1 = inlined_call_operand.vmem [shape: f32[2,4,8,8,128], index: 1, kind: input, shape index: {}, may-alias: {0,1,2}]
  %s2 = inlined_call_operand.vmem [shape: f32[2,4,8,8,128], index: 2, kind: input, shape index: {}, may-alias: {0,1,2}]
  %s3 = inlined_call_operand.vmem [shape: f32[2,4,1,128], index: 3, kind: input, shape index: {}]
  %s4 = inlined_call_operand.vmem [shape: f32[2,4,1,128], index: 4, kind: input, shape index: {}]
  %s5 = inlined_call_operand.vmem [shape: bf16[1152,128], index: 5, kind: input, shape index: {}]
  %s6 = inlined_call_operand.vmem [shape: f32[1,128], index: 6, kind: input, shape index: {}]
  %s7 = inlined_call_operand.vmem [shape: bf16[2,4,8,8,128], index: 7, kind: output, shape index: {}]
  %s8 = sld [smem:[#allocation0]]
  $region61: #{temporal_resnet_block.7} parent=0
    _
  %s10 = ssub.s32 1, %s8
  %s11 = scalar_select 0, %s10, %s8
  loop: start=0, step=1, limit=66
  $region2: #{temporal_resnet_block.7} parent=0 // loop_pre_header
    _
  $region3: #{temporal_resnet_block.7} parent=0 // loop_header
    %s13 = sphi 0, %s17
    %p14 = scmp.ge.s32.totalorder %s13, 66
    %s20 = sphi 0, %s39
    %s21 = sphi 0, %s35
    %s22 = sphi 0, %s31
    %s23 = sphi 0, %s20
    %s24 = sphi 0, %s21
    %s25 = sphi 0, %s22
    %s26 = sphi 0, %s23
    %s27 = sphi 0, %s24
    %s28 = sphi 0, %s25
    %s56 = sphi 0, %s58
    %s59 = sphi 0, %s56
    %s60 = sphi 0, %s59
    %s76 = sphi 0, %s60
    %s94 = sphi 0, %s96
    %s97 = sphi 0, %s94
    %s98 = sphi 0, %s97
    %s114 = sphi 0, %s98
    %s134 = sphi 0, %s136
    %s137 = sphi 0, %s134
    %s138 = sphi 0, %s137
    %s154 = sphi 0, %s138
    %s162 = sphi 0, %s164
    %s165 = sphi 0, %s162
    %s166 = sphi 0, %s165
    %s182 = sphi 0, %s166
    %s190 = sphi 0, %s192
    %s193 = sphi 0, %s190
    %s194 = sphi 0, %s193
    %s210 = sphi 0, %s194
    %s214 = sphi 0, %s214
    %s216 = sphi 0, %s214
    %s217 = sphi 0, %s216
    %s231 = sphi 0, %s217
    %s235 = sphi 0, %s235
    %s237 = sphi 0, %s235
    %s238 = sphi 0, %s237
    %s252 = sphi 0, %s238
    %s262 = sphi 0, %s264
    %s265 = sphi 0, %s262
    %s266 = sphi 0, %s265
    %s282 = sphi 0, %s266
  $region4: #{temporal_resnet_block.7} parent=0 // loop_header_branch
    %16 = sbr.rel (%p14) target = $region8
  $region5: #{temporal_resnet_block.7} parent=0 // loop_body
    %s18 = ssub.s32 %s13, 1
    %s19 = ssub.s32 %s13, 2
    %s29 = sadd.s32 1, %s22
    %p30 = scmp.ge.s32.totalorder %s29, 8
    %s31 = scalar_select %p30, 0, %s29
    %s32 = sadd.s32 1, %s21
    %s33 = scalar_select %p30, %s32, %s21
    %p34 = scmp.ge.s32.totalorder %s33, 4
    %s35 = scalar_select %p34, 0, %s33
    %s36 = sadd.s32 1, %s20
    %s37 = scalar_select %p34, %s36, %s20
    %p38 = scmp.ge.s32.totalorder %s37, 2
    %s39 = scalar_select %p38, 0, %s37
    %s40 = sadd.s32 %s22, 4294967295
    %p41 = scmp.gt.s32.totalorder %s40, 0
    %s42 = scalar_select %p41, %s40, 0
    %p43 = scmp.lt.s32.totalorder %s42, 7
    %s44 = scalar_select %p43, %s42, 7
    %s45 = sadd.s32 %s31, 4294967295
    %p46 = scmp.gt.s32.totalorder %s45, 0
    %s47 = scalar_select %p46, %s45, 0
    %p48 = scmp.lt.s32.totalorder %s47, 7
    %s49 = scalar_select %p48, %s47, 7
    %s50 = ssub.s32 %s20, %s39
    %s51 = ssub.s32 %s21, %s35
    %s52 = sor.u32 %s50, %s51
    %s53 = ssub.s32 %s44, %s49
    %s54 = sor.u32 %s52, %s53
    %p55 = scmp.eq.s32.totalorder %s54, 0
    %s57 = sadd.s32 %s56, 1
    %s58 = scalar_select %p55, %s56, %s57
    %p61 = pneg %p55
    %p62 = scmp.eq.s32.totalorder %s13, 63
    %p63 = por %p61, %p62
    %p64 = scmp.ne.s32.totalorder %s56, %s59
    %p65 = scmp.eq.s32.totalorder %s13, 0
    %p66 = por %p64, %p65
    %p67 = scmp.ne.s32.totalorder %s56, %s59
    %p68 = scmp.eq.s32.totalorder %s18, 63
    %p69 = por %p67, %p68
    %p70 = scmp.ne.s32.totalorder %s59, %s60
    %p71 = scmp.eq.s32.totalorder %s18, 0
    %p72 = por %p70, %p71
    %p73 = scmp.ne.s32.totalorder %s59, %s60
    %p74 = scmp.eq.s32.totalorder %s19, 63
    %p75 = por %p73, %p74
    %p77 = scmp.ne.s32.totalorder %s60, %s76
    %p78 = scmp.eq.s32.totalorder %s19, 0
    %p79 = por %p77, %p78
    %p80 = scmp.gt.s32.totalorder %s22, 0
    %s81 = scalar_select %p80, %s22, 0
    %p82 = scmp.lt.s32.totalorder %s81, 7
    %s83 = scalar_select %p82, %s81, 7
    %p84 = scmp.gt.s32.totalorder %s31, 0
    %s85 = scalar_select %p84, %s31, 0
    %p86 = scmp.lt.s32.totalorder %s85, 7
    %s87 = scalar_select %p86, %s85, 7
    %s88 = ssub.s32 %s20, %s39
    %s89 = ssub.s32 %s21, %s35
    %s90 = sor.u32 %s88, %s89
    %s91 = ssub.s32 %s83, %s87
    %s92 = sor.u32 %s90, %s91
    %p93 = scmp.eq.s32.totalorder %s92, 0
    %s95 = sadd.s32 %s94, 1
    %s96 = scalar_select %p93, %s94, %s95
    %p99 = pneg %p93
    %p100 = scmp.eq.s32.totalorder %s13, 63
    %p101 = por %p99, %p100
    %p102 = scmp.ne.s32.totalorder %s94, %s97
    %p103 = scmp.eq.s32.totalorder %s13, 0
    %p104 = por %p102, %p103
    %p105 = scmp.ne.s32.totalorder %s94, %s97
    %p106 = scmp.eq.s32.totalorder %s18, 63
    %p107 = por %p105, %p106
    %p108 = scmp.ne.s32.totalorder %s97, %s98
    %p109 = scmp.eq.s32.totalorder %s18, 0
    %p110 = por %p108, %p109
    %p111 = scmp.ne.s32.totalorder %s97, %s98
    %p112 = scmp.eq.s32.totalorder %s19, 63
    %p113 = por %p111, %p112
    %p115 = scmp.ne.s32.totalorder %s98, %s114
    %p116 = scmp.eq.s32.totalorder %s19, 0
    %p117 = por %p115, %p116
    %s118 = sadd.s32 %s22, 1
    %p119 = scmp.gt.s32.totalorder %s118, 0
    %s120 = scalar_select %p119, %s118, 0
    %p121 = scmp.lt.s32.totalorder %s120, 7
    %s122 = scalar_select %p121, %s120, 7
    %s123 = sadd.s32 %s31, 1
    %p124 = scmp.gt.s32.totalorder %s123, 0
    %s125 = scalar_select %p124, %s123, 0
    %p126 = scmp.lt.s32.totalorder %s125, 7
    %s127 = scalar_select %p126, %s125, 7
    %s128 = ssub.s32 %s20, %s39
    %s129 = ssub.s32 %s21, %s35
    %s130 = sor.u32 %s128, %s129
    %s131 = ssub.s32 %s122, %s127
    %s132 = sor.u32 %s130, %s131
    %p133 = scmp.eq.s32.totalorder %s132, 0
    %s135 = sadd.s32 %s134, 1
    %s136 = scalar_select %p133, %s134, %s135
    %p139 = pneg %p133
    %p140 = scmp.eq.s32.totalorder %s13, 63
    %p141 = por %p139, %p140
    %p142 = scmp.ne.s32.totalorder %s134, %s137
    %p143 = scmp.eq.s32.totalorder %s13, 0
    %p144 = por %p142, %p143
    %p145 = scmp.ne.s32.totalorder %s134, %s137
    %p146 = scmp.eq.s32.totalorder %s18, 63
    %p147 = por %p145, %p146
    %p148 = scmp.ne.s32.totalorder %s137, %s138
    %p149 = scmp.eq.s32.totalorder %s18, 0
    %p150 = por %p148, %p149
    %p151 = scmp.ne.s32.totalorder %s137, %s138
    %p152 = scmp.eq.s32.totalorder %s19, 63
    %p153 = por %p151, %p152
    %p155 = scmp.ne.s32.totalorder %s138, %s154
    %p156 = scmp.eq.s32.totalorder %s19, 0
    %p157 = por %p155, %p156
    %s158 = ssub.s32 %s20, %s39
    %s159 = ssub.s32 %s21, %s35
    %s160 = sor.u32 %s158, %s159
    %p161 = scmp.eq.s32.totalorder %s160, 0
    %s163 = sadd.s32 %s162, 1
    %s164 = scalar_select %p161, %s162, %s163
    %p167 = pneg %p161
    %p168 = scmp.eq.s32.totalorder %s13, 63
    %p169 = por %p167, %p168
    %p170 = scmp.ne.s32.totalorder %s162, %s165
    %p171 = scmp.eq.s32.totalorder %s13, 0
    %p172 = por %p170, %p171
    %p173 = scmp.ne.s32.totalorder %s162, %s165
    %p174 = scmp.eq.s32.totalorder %s18, 63
    %p175 = por %p173, %p174
    %p176 = scmp.ne.s32.totalorder %s165, %s166
    %p177 = scmp.eq.s32.totalorder %s18, 0
    %p178 = por %p176, %p177
    %p179 = scmp.ne.s32.totalorder %s165, %s166
    %p180 = scmp.eq.s32.totalorder %s19, 63
    %p181 = por %p179, %p180
    %p183 = scmp.ne.s32.totalorder %s166, %s182
    %p184 = scmp.eq.s32.totalorder %s19, 0
    %p185 = por %p183, %p184
    %s186 = ssub.s32 %s20, %s39
    %s187 = ssub.s32 %s21, %s35
    %s188 = sor.u32 %s186, %s187
    %p189 = scmp.eq.s32.totalorder %s188, 0
    %s191 = sadd.s32 %s190, 1
    %s192 = scalar_select %p189, %s190, %s191
    %p195 = pneg %p189
    %p196 = scmp.eq.s32.totalorder %s13, 63
    %p197 = por %p195, %p196
    %p198 = scmp.ne.s32.totalorder %s190, %s193
    %p199 = scmp.eq.s32.totalorder %s13, 0
    %p200 = por %p198, %p199
    %p201 = scmp.ne.s32.totalorder %s190, %s193
    %p202 = scmp.eq.s32.totalorder %s18, 63
    %p203 = por %p201, %p202
    %p204 = scmp.ne.s32.totalorder %s193, %s194
    %p205 = scmp.eq.s32.totalorder %s18, 0
    %p206 = por %p204, %p205
    %p207 = scmp.ne.s32.totalorder %s193, %s194
    %p208 = scmp.eq.s32.totalorder %s19, 63
    %p209 = por %p207, %p208
    %p211 = scmp.ne.s32.totalorder %s194, %s210
    %p212 = scmp.eq.s32.totalorder %s19, 0
    %p213 = por %p211, %p212
    %s215 = sadd.s32 %s214, 1
    %p218 = scmp.eq.s32.totalorder %s13, 63
    %p219 = scmp.ne.s32.totalorder %s214, %s216
    %p220 = scmp.eq.s32.totalorder %s13, 0
    %p221 = por %p219, %p220
    %p222 = scmp.ne.s32.totalorder %s214, %s216
    %p223 = scmp.eq.s32.totalorder %s18, 63
    %p224 = por %p222, %p223
    %p225 = scmp.ne.s32.totalorder %s216, %s217
    %p226 = scmp.eq.s32.totalorder %s18, 0
    %p227 = por %p225, %p226
    %p228 = scmp.ne.s32.totalorder %s216, %s217
    %p229 = scmp.eq.s32.totalorder %s19, 63
    %p230 = por %p228, %p229
    %p232 = scmp.ne.s32.totalorder %s217, %s231
    %p233 = scmp.eq.s32.totalorder %s19, 0
    %p234 = por %p232, %p233
    %s236 = sadd.s32 %s235, 1
    %p239 = scmp.eq.s32.totalorder %s13, 63
    %p240 = scmp.ne.s32.totalorder %s235, %s237
    %p241 = scmp.eq.s32.totalorder %s13, 0
    %p242 = por %p240, %p241
    %p243 = scmp.ne.s32.totalorder %s235, %s237
    %p244 = scmp.eq.s32.totalorder %s18, 63
    %p245 = por %p243, %p244
    %p246 = scmp.ne.s32.totalorder %s237, %s238
    %p247 = scmp.eq.s32.totalorder %s18, 0
    %p248 = por %p246, %p247
    %p249 = scmp.ne.s32.totalorder %s237, %s238
    %p250 = scmp.eq.s32.totalorder %s19, 63
    %p251 = por %p249, %p250
    %p253 = scmp.ne.s32.totalorder %s238, %s252
    %p254 = scmp.eq.s32.totalorder %s19, 0
    %p255 = por %p253, %p254
    %s256 = ssub.s32 %s20, %s39
    %s257 = ssub.s32 %s21, %s35
    %s258 = sor.u32 %s256, %s257
    %s259 = ssub.s32 %s22, %s31
    %s260 = sor.u32 %s258, %s259
    %p261 = scmp.eq.s32.totalorder %s260, 0
    %s263 = sadd.s32 %s262, 1
    %s264 = scalar_select %p261, %s262, %s263
    %p267 = pneg %p261
    %p268 = scmp.eq.s32.totalorder %s13, 63
    %p269 = por %p267, %p268
    %p270 = scmp.ne.s32.totalorder %s262, %s265
    %p271 = scmp.eq.s32.totalorder %s13, 0
    %p272 = por %p270, %p271
    %p273 = scmp.ne.s32.totalorder %s262, %s265
    %p274 = scmp.eq.s32.totalorder %s18, 63
    %p275 = por %p273, %p274
    %p276 = scmp.ne.s32.totalorder %s265, %s266
    %p277 = scmp.eq.s32.totalorder %s18, 0
    %p278 = por %p276, %p277
    %p279 = scmp.ne.s32.totalorder %s265, %s266
    %p280 = scmp.eq.s32.totalorder %s19, 63
    %p281 = por %p279, %p280
    %p283 = scmp.ne.s32.totalorder %s266, %s282
    %p284 = scmp.eq.s32.totalorder %s19, 0
    %p285 = por %p283, %p284
    %p286 = scmp.le.s32.totalorder 1, %s13
    %p287 = scmp.lt.s32.totalorder %s13, 65
    %p288 = pnand %p286, %p287
    %p289 = pneg %p288
    // Predicated region
    $region9: #{temporal_resnet_block.7} parent=5 // pred_check
      _
    $region10: #{temporal_resnet_block.7} parent=5 // pred_check_branch
      %291 = sbr.rel (%p288) target = $region12
    $region11: #{temporal_resnet_block.7} parent=5 // pred_region
      %s292 = ssub.s32 %s13, 1
      // Predicated region
      $region13: #{temporal_resnet_block.7} parent=11 // pred_check
        %p293 = pneg %p227
      $region14: #{temporal_resnet_block.7} parent=11 // pred_check_branch
        %295 = sbr.rel (%p293) target = $region16
      $region15: #{temporal_resnet_block.7} parent=11 // pred_region
        _
      $region16: #{temporal_resnet_block.7} parent=11 // pred_fallthru
        _
      // Predicated region
      $region17: #{temporal_resnet_block.7} parent=11 // pred_check
        %p296 = pneg %p248
      $region18: #{temporal_resnet_block.7} parent=11 // pred_check_branch
        %298 = sbr.rel (%p296) target = $region20
      $region19: #{temporal_resnet_block.7} parent=11 // pred_region
        _
      $region20: #{temporal_resnet_block.7} parent=11 // pred_fallthru
        _
    $region12: #{temporal_resnet_block.7} parent=5 // pred_fallthru
      _
    %p299 = scmp.lt.s32.totalorder %s13, 64
    // Predicated region
    $region21: #{temporal_resnet_block.7} parent=5 // pred_check
      %p300 = pneg %p299
    $region22: #{temporal_resnet_block.7} parent=5 // pred_check_branch
      %302 = sbr.rel (%p300) target = $region24
    $region23: #{temporal_resnet_block.7} parent=5 // pred_region
      // Predicated region
      $region25: #{temporal_resnet_block.7} parent=23 // pred_check
        %p303 = pneg %p66
      $region26: #{temporal_resnet_block.7} parent=23 // pred_check_branch
        %305 = sbr.rel (%p303) target = $region28
      $region27: #{temporal_resnet_block.7} parent=23 // pred_region
        %s306 = sadd.s32 %s22, 4294967295
        %p307 = scmp.gt.s32.totalorder %s306, 0
        %s308 = scalar_select %p307, %s306, 0
        %p309 = scmp.lt.s32.totalorder %s308, 7
        %s310 = scalar_select %p309, %s308, 7
        %p311 = scmp.lt.s32.totalorder %s20, 1
        %s312 = scalar_select %p311, %s20, 1
        %p313 = scmp.lt.s32.totalorder %s21, 3
        %s314 = scalar_select %p313, %s21, 3
        %p315 = scmp.lt.s32.totalorder %s310, 7
        %s316 = scalar_select %p315, %s310, 7
        %s317 = smul.addr %s314, 8
        %s318 = sadd.s32 %s316, %s317
        %s319 = smul.addr %s312, 32
        %s320 = sadd.s32 %s318, %s319
        %s321 = smul.addr %s320, 8
        %s322 = scalar_lea.vmem %s0, %s321
        %s323 = sadd.s32 %s22, 4294967295
        %p324 = scmp.gt.s32.totalorder %s323, 0
        %s325 = scalar_select %p324, %s323, 0
        %p326 = scmp.lt.s32.totalorder %s325, 7
        %s327 = scalar_select %p326, %s325, 7
      $region28: #{temporal_resnet_block.7} parent=23 // pred_fallthru
        _
      // Predicated region
      $region29: #{temporal_resnet_block.7} parent=23 // pred_check
        %p328 = pneg %p104
      $region30: #{temporal_resnet_block.7} parent=23 // pred_check_branch
        %330 = sbr.rel (%p328) target = $region32
      $region31: #{temporal_resnet_block.7} parent=23 // pred_region
        %p331 = scmp.gt.s32.totalorder %s22, 0
        %s332 = scalar_select %p331, %s22, 0
        %p333 = scmp.lt.s32.totalorder %s332, 7
        %s334 = scalar_select %p333, %s332, 7
        %p335 = scmp.lt.s32.totalorder %s20, 1
        %s336 = scalar_select %p335, %s20, 1
        %p337 = scmp.lt.s32.totalorder %s21, 3
        %s338 = scalar_select %p337, %s21, 3
        %p339 = scmp.lt.s32.totalorder %s334, 7
        %s340 = scalar_select %p339, %s334, 7
        %s341 = smul.addr %s338, 8
        %s342 = sadd.s32 %s340, %s341
        %s343 = smul.addr %s336, 32
        %s344 = sadd.s32 %s342, %s343
        %s345 = smul.addr %s344, 8
        %s346 = scalar_lea.vmem %s1, %s345
        %p347 = scmp.gt.s32.totalorder %s22, 0
        %s348 = scalar_select %p347, %s22, 0
        %p349 = scmp.lt.s32.totalorder %s348, 7
        %s350 = scalar_select %p349, %s348, 7
      $region32: #{temporal_resnet_block.7} parent=23 // pred_fallthru
        _
      // Predicated region
      $region33: #{temporal_resnet_block.7} parent=23 // pred_check
        %p351 = pneg %p144
      $region34: #{temporal_resnet_block.7} parent=23 // pred_check_branch
        %353 = sbr.rel (%p351) target = $region36
      $region35: #{temporal_resnet_block.7} parent=23 // pred_region
        %s354 = sadd.s32 %s22, 1
        %p355 = scmp.gt.s32.totalorder %s354, 0
        %s356 = scalar_select %p355, %s354, 0
        %p357 = scmp.lt.s32.totalorder %s356, 7
        %s358 = scalar_select %p357, %s356, 7
        %p359 = scmp.lt.s32.totalorder %s20, 1
        %s360 = scalar_select %p359, %s20, 1
        %p361 = scmp.lt.s32.totalorder %s21, 3
        %s362 = scalar_select %p361, %s21, 3
        %p363 = scmp.lt.s32.totalorder %s358, 7
        %s364 = scalar_select %p363, %s358, 7
        %s365 = smul.addr %s362, 8
        %s366 = sadd.s32 %s364, %s365
        %s367 = smul.addr %s360, 32
        %s368 = sadd.s32 %s366, %s367
        %s369 = smul.addr %s368, 8
        %s370 = scalar_lea.vmem %s2, %s369
        %s371 = sadd.s32 %s22, 1
        %p372 = scmp.gt.s32.totalorder %s371, 0
        %s373 = scalar_select %p372, %s371, 0
        %p374 = scmp.lt.s32.totalorder %s373, 7
        %s375 = scalar_select %p374, %s373, 7
      $region36: #{temporal_resnet_block.7} parent=23 // pred_fallthru
        _
      // Predicated region
      $region37: #{temporal_resnet_block.7} parent=23 // pred_check
        %p376 = pneg %p172
      $region38: #{temporal_resnet_block.7} parent=23 // pred_check_branch
        %378 = sbr.rel (%p376) target = $region40
      $region39: #{temporal_resnet_block.7} parent=23 // pred_region
        %p379 = scmp.lt.s32.totalorder %s20, 1
        %s380 = scalar_select %p379, %s20, 1
        %p381 = scmp.lt.s32.totalorder %s21, 3
        %s382 = scalar_select %p381, %s21, 3
        %s383 = smul.addr %s380, 4
        %s384 = sadd.s32 %s382, %s383
        %s385 = scalar_lea.vmem %s3, %s384
      $region40: #{temporal_resnet_block.7} parent=23 // pred_fallthru
        _
      // Predicated region
      $region41: #{temporal_resnet_block.7} parent=23 // pred_check
        %p386 = pneg %p200
      $region42: #{temporal_resnet_block.7} parent=23 // pred_check_branch
        %388 = sbr.rel (%p386) target = $region44
      $region43: #{temporal_resnet_block.7} parent=23 // pred_region
        %p389 = scmp.lt.s32.totalorder %s20, 1
        %s390 = scalar_select %p389, %s20, 1
        %p391 = scmp.lt.s32.totalorder %s21, 3
        %s392 = scalar_select %p391, %s21, 3
        %s393 = smul.addr %s390, 4
        %s394 = sadd.s32 %s392, %s393
        %s395 = scalar_lea.vmem %s4, %s394
      $region44: #{temporal_resnet_block.7} parent=23 // pred_fallthru
        _
    $region24: #{temporal_resnet_block.7} parent=5 // pred_fallthru
      _
    %p396 = scmp.le.s32.totalorder 1, %s13
    %p397 = scmp.lt.s32.totalorder %s13, 65
    %p398 = pnand %p396, %p397
    %p399 = pneg %p398
    // Predicated region
    $region45: #{temporal_resnet_block.7} parent=5 // pred_check
      _
    $region46: #{temporal_resnet_block.7} parent=5 // pred_check_branch
      %401 = sbr.rel (%p398) target = $region48
    $region47: #{temporal_resnet_block.7} parent=5 // pred_region
      %s402 = ssub.s32 %s13, 1
      %s403 = sadd.s32 %s25, 4294967295
      %p404 = scmp.gt.s32.totalorder %s403, 0
      %s405 = scalar_select %p404, %s403, 0
      %p406 = scmp.lt.s32.totalorder %s405, 7
      %s407 = scalar_select %p406, %s405, 7
      %p408 = scmp.lt.s32.totalorder %s23, 1
      %s409 = scalar_select %p408, %s23, 1
      %p410 = scmp.lt.s32.totalorder %s24, 3
      %s411 = scalar_select %p410, %s24, 3
      %p412 = scmp.lt.s32.totalorder %s407, 7
      %s413 = scalar_select %p412, %s407, 7
      %s414 = smul.addr %s411, 8
      %s415 = sadd.s32 %s413, %s414
      %s416 = smul.addr %s409, 32
      %s417 = sadd.s32 %s415, %s416
      %s418 = smul.addr %s417, 8
      %s419 = scalar_lea.vmem %s0, %s418
      %p420 = pneg %p72
      %p421 = pneg %p69
      %p422 = scmp.gt.s32.totalorder %s25, 0
      %s423 = scalar_select %p422, %s25, 0
      %p424 = scmp.lt.s32.totalorder %s423, 7
      %s425 = scalar_select %p424, %s423, 7
      %p426 = scmp.lt.s32.totalorder %s23, 1
      %s427 = scalar_select %p426, %s23, 1
      %p428 = scmp.lt.s32.totalorder %s24, 3
      %s429 = scalar_select %p428, %s24, 3
      %p430 = scmp.lt.s32.totalorder %s425, 7
      %s431 = scalar_select %p430, %s425, 7
      %s432 = smul.addr %s429, 8
      %s433 = sadd.s32 %s431, %s432
      %s434 = smul.addr %s427, 32
      %s435 = sadd.s32 %s433, %s434
      %s436 = smul.addr %s435, 8
      %s437 = scalar_lea.vmem %s1, %s436
      %p438 = pneg %p110
      %p439 = pneg %p107
      %s440 = sadd.s32 %s25, 1
      %p441 = scmp.gt.s32.totalorder %s440, 0
      %s442 = scalar_select %p441, %s440, 0
      %p443 = scmp.lt.s32.totalorder %s442, 7
      %s444 = scalar_select %p443, %s442, 7
      %p445 = scmp.lt.s32.totalorder %s23, 1
      %s446 = scalar_select %p445, %s23, 1
      %p447 = scmp.lt.s32.totalorder %s24, 3
      %s448 = scalar_select %p447, %s24, 3
      %p449 = scmp.lt.s32.totalorder %s444, 7
      %s450 = scalar_select %p449, %s444, 7
      %s451 = smul.addr %s448, 8
      %s452 = sadd.s32 %s450, %s451
      %s453 = smul.addr %s446, 32
      %s454 = sadd.s32 %s452, %s453
      %s455 = smul.addr %s454, 8
      %s456 = scalar_lea.vmem %s2, %s455
      %p457 = pneg %p150
      %p458 = pneg %p147
      %p459 = scmp.lt.s32.totalorder %s23, 1
      %s460 = scalar_select %p459, %s23, 1
      %p461 = scmp.lt.s32.totalorder %s24, 3
      %s462 = scalar_select %p461, %s24, 3
      %s463 = smul.addr %s460, 4
      %s464 = sadd.s32 %s462, %s463
      %s465 = scalar_lea.vmem %s3, %s464
      %p466 = pneg %p178
      %p467 = pneg %p175
      %p468 = scmp.lt.s32.totalorder %s23, 1
      %s469 = scalar_select %p468, %s23, 1
      %p470 = scmp.lt.s32.totalorder %s24, 3
      %s471 = scalar_select %p470, %s24, 3
      %s472 = smul.addr %s469, 4
      %s473 = sadd.s32 %s471, %s472
      %s474 = scalar_lea.vmem %s4, %s473
      %p475 = pneg %p206
      %p476 = pneg %p203
      %p477 = pneg %p227
      %p478 = pneg %p224
      %p479 = pneg %p248
      %p480 = pneg %p245
      %p481 = pneg %p278
      %p482 = pneg %p275
      %p483 = scmp.lt.s32.totalorder %s23, 1
      %s484 = scalar_select %p483, %s23, 1
      %p485 = scmp.lt.s32.totalorder %s24, 3
      %s486 = scalar_select %p485, %s24, 3
      %p487 = scmp.lt.s32.totalorder %s25, 7
      %s488 = scalar_select %p487, %s25, 7
      %s489 = smul.addr %s486, 8
      %s490 = sadd.s32 %s488, %s489
      %s491 = smul.addr %s484, 32
      %s492 = sadd.s32 %s490, %s491
      %s493 = smul.addr %s492, 4
      %s494 = scalar_lea.vmem %s7, %s493
      %s495 = sadd.s32 %s25, 4294967295
      %p496 = scmp.gt.s32.totalorder %s495, 0
      %s497 = scalar_select %p496, %s495, 0
      %p498 = scmp.lt.s32.totalorder %s497, 7
      %s499 = scalar_select %p498, %s497, 7
      %p500 = scmp.lt.s32.totalorder %s23, 1
      %s501 = scalar_select %p500, %s23, 1
      %p502 = scmp.lt.s32.totalorder %s24, 3
      %s503 = scalar_select %p502, %s24, 3
      %p504 = scmp.lt.s32.totalorder %s499, 7
      %s505 = scalar_select %p504, %s499, 7
      %s506 = smul.addr %s503, 8
      %s507 = sadd.s32 %s505, %s506
      %s508 = smul.addr %s501, 32
      %s509 = sadd.s32 %s507, %s508
      %s510 = smul.addr %s509, 8
      %s511 = scalar_lea.vmem %s0, %s510
      %s512 = sadd.s32 %s25, 4294967295
      %p513 = scmp.gt.s32.totalorder %s512, 0
      %s514 = scalar_select %p513, %s512, 0
      %p515 = scmp.lt.s32.totalorder %s514, 7
      %s516 = scalar_select %p515, %s514, 7
      %p517 = scmp.gt.s32.totalorder %s25, 0
      %s518 = scalar_select %p517, %s25, 0
      %p519 = scmp.lt.s32.totalorder %s518, 7
      %s520 = scalar_select %p519, %s518, 7
      %p521 = scmp.lt.s32.totalorder %s23, 1
      %s522 = scalar_select %p521, %s23, 1
      %p523 = scmp.lt.s32.totalorder %s24, 3
      %s524 = scalar_select %p523, %s24, 3
      %p525 = scmp.lt.s32.totalorder %s520, 7
      %s526 = scalar_select %p525, %s520, 7
      %s527 = smul.addr %s524, 8
      %s528 = sadd.s32 %s526, %s527
      %s529 = smul.addr %s522, 32
      %s530 = sadd.s32 %s528, %s529
      %s531 = smul.addr %s530, 8
      %s532 = scalar_lea.vmem %s1, %s531
      %p533 = scmp.gt.s32.totalorder %s25, 0
      %s534 = scalar_select %p533, %s25, 0
      %p535 = scmp.lt.s32.totalorder %s534, 7
      %s536 = scalar_select %p535, %s534, 7
      %s537 = sadd.s32 %s25, 1
      %p538 = scmp.gt.s32.totalorder %s537, 0
      %s539 = scalar_select %p538, %s537, 0
      %p540 = scmp.lt.s32.totalorder %s539, 7
      %s541 = scalar_select %p540, %s539, 7
      %p542 = scmp.lt.s32.totalorder %s23, 1
      %s543 = scalar_select %p542, %s23, 1
      %p544 = scmp.lt.s32.totalorder %s24, 3
      %s545 = scalar_select %p544, %s24, 3
      %p546 = scmp.lt.s32.totalorder %s541, 7
      %s547 = scalar_select %p546, %s541, 7
      %s548 = smul.addr %s545, 8
      %s549 = sadd.s32 %s547, %s548
      %s550 = smul.addr %s543, 32
      %s551 = sadd.s32 %s549, %s550
      %s552 = smul.addr %s551, 8
      %s553 = scalar_lea.vmem %s2, %s552
      %s554 = sadd.s32 %s25, 1
      %p555 = scmp.gt.s32.totalorder %s554, 0
      %s556 = scalar_select %p555, %s554, 0
      %p557 = scmp.lt.s32.totalorder %s556, 7
      %s558 = scalar_select %p557, %s556, 7
      %p559 = scmp.lt.s32.totalorder %s23, 1
      %s560 = scalar_select %p559, %s23, 1
      %p561 = scmp.lt.s32.totalorder %s24, 3
      %s562 = scalar_select %p561, %s24, 3
      %s563 = smul.addr %s560, 4
      %s564 = sadd.s32 %s562, %s563
      %s565 = scalar_lea.vmem %s3, %s564
      %p566 = scmp.lt.s32.totalorder %s23, 1
      %s567 = scalar_select %p566, %s23, 1
      %p568 = scmp.lt.s32.totalorder %s24, 3
      %s569 = scalar_select %p568, %s24, 3
      %s570 = smul.addr %s567, 4
      %s571 = sadd.s32 %s569, %s570
      %s572 = scalar_lea.vmem %s4, %s571
      %p573 = scmp.lt.s32.totalorder %s23, 1
      %s574 = scalar_select %p573, %s23, 1
      %p575 = scmp.lt.s32.totalorder %s24, 3
      %s576 = scalar_select %p575, %s24, 3
      %p577 = scmp.lt.s32.totalorder %s25, 7
      %s578 = scalar_select %p577, %s25, 7
      %s579 = smul.addr %s576, 8
      %s580 = sadd.s32 %s578, %s579
      %s581 = smul.addr %s574, 32
      %s582 = sadd.s32 %s580, %s581
      %s583 = smul.addr %s582, 4
      %s584 = scalar_lea.vmem %s7, %s583
      %v586 = vld [vmem:[%s565] sm:$0x1]
      %v587 = vld [vmem:[%s572] sm:$0x1]
      %p588 = scmp.gt.s32.totalorder %s25, 0
      %v589 = vld [vmem:[%s511] sm:$0xff]
      %v591 = vlaneseq
      %v592 = vshrl.u32 %v591, 7
      %v593 = vsub.s32 0, %v592
      %v594 = vrot.slane %v586, %v593
      %v596 = vmul.f32 %v589, %v594
      %v598 = vlaneseq
      %v599 = vshrl.u32 %v598, 7
      %v600 = vsub.s32 0, %v599
      %v601 = vrot.slane %v587, %v600
      %v603 = vadd.f32 %v596, %v601
      %v604 = vsub.f32 0.0, %v603
      %v605 = vmul.f32 %v604, 1.442695
      %v606 = vpow.pop %v605
      %v607 = vadd.f32 %v606, 1.0
      %v608 = vrcp.pop %v607
      %v609 = vmul.f32 1.0, %v608
      %v610 = vmul.f32 %v603, %v609
      %s611 = scalar_select %p588, 1, 0
      %s612 = scvt.s32.f32 %s611
      %v613 = vstv %s612
      %v614 = vmul.f32 %v610, %v613
      %v615 = vpack.c.bf16 %v614, %v614
      %v616 = vld [vmem:[%s532] sm:$0xff]
      %v617 = vmul.f32 %v616, %v594
      %v618 = vadd.f32 %v617, %v601
      %v619 = vsub.f32 0.0, %v618
      %v620 = vmul.f32 %v619, 1.442695
      %v621 = vpow.pop %v620
      %v622 = vadd.f32 %v621, 1.0
      %v623 = vrcp.pop %v622
      %v624 = vmul.f32 1.0, %v623
      %v625 = vmul.f32 %v618, %v624
      %v626 = vpack.c.bf16 %v625, %v625
      %p627 = scmp.lt.s32.totalorder %s25, 7
      %v628 = vld [vmem:[%s553] sm:$0xff]
      %v629 = vmul.f32 %v628, %v594
      %v630 = vadd.f32 %v629, %v601
      %v631 = vsub.f32 0.0, %v630
      %v632 = vmul.f32 %v631, 1.442695
      %v633 = vpow.pop %v632
      %v634 = vadd.f32 %v633, 1.0
      %v635 = vrcp.pop %v634
      %v636 = vmul.f32 1.0, %v635
      %v637 = vmul.f32 %v630, %v636
      %s638 = scalar_select %p627, 1, 0
      %s639 = scvt.s32.f32 %s638
      %v640 = vstv %s639
      %v641 = vmul.f32 %v637, %v640
      %v642 = vpack.c.bf16 %v641, %v641
      %v644 = vshrl.u32 %v615, 16
      %v646 = vrot.slane %v644, 7
      %v647 = vshll.u32 %v615, 16
      %v649 = vor.u32 %v646, %v647
      %vm651 = vcmask 1040384
      %vm652 = vsmask.f32 256
      %vm653 = vmand %vm651, %vm652
      %v654 = vsel %vm653, 0, %v649
      %vm655 = vcmask 1044480
      %vm656 = vsmask.f32 4352
      %vm657 = vmand %vm655, %vm656
      %v658 = vsel %vm657, %v654, 0
      %v660 = vshrl.u32 %v626, 16
      %v662 = vrot.slane %v660, 7
      %v663 = vshll.u32 %v626, 16
      %v665 = vor.u32 %v662, %v663
      %v667 = vsel %vm653, 0, %v665
      %v668 = vsel %vm657, %v667, 0
      %v670 = vshrl.u32 %v642, 16
      %v672 = vrot.slane %v670, 7
      %v673 = vshll.u32 %v642, 16
      %v675 = vor.u32 %v672, %v673
      %v677 = vsel %vm653, 0, %v675
      %v678 = vsel %vm657, %v677, 0
      %v680 = vshrl.u32 %v658, 16
      %v682 = vshll.u32 %v658, 16
      %v684 = vrot.slane %v682, 1
      %v685 = vor.u32 %v680, %v684
      %v688 = vrot.slane %v658, 1
      %v691 = vshrl.u32 %v668, 16
      %v693 = vshll.u32 %v668, 16
      %v695 = vrot.slane %v693, 1
      %v696 = vor.u32 %v691, %v695
      %v699 = vrot.slane %v668, 1
      %v702 = vshrl.u32 %v678, 16
      %v704 = vshll.u32 %v678, 16
      %v706 = vrot.slane %v704, 1
      %v707 = vor.u32 %v702, %v706
      %v710 = vrot.slane %v678, 1
      %v712 = vld [vmem:[%s5] sm:$0xf]
      %v713 = vld [vmem:[%s5 + $0x4] sm:$0xf]
      %v714 = vld [vmem:[%s5 + $0x8] sm:$0xf]
      %v715 = vld [vmem:[%s5 + $0xc] sm:$0xf]
      %v716 = vld [vmem:[%s5 + $0x10] sm:$0xf]
      %v717 = vld [vmem:[%s5 + $0x14] sm:$0xf]
      %v718 = vld [vmem:[%s5 + $0x18] sm:$0xf]
      %v719 = vld [vmem:[%s5 + $0x1c] sm:$0xf]
      %v720 = vld [vmem:[%s5 + $0x20] sm:$0xf]
      %v721 = vld [vmem:[%s5 + $0x24] sm:$0xf]
      %v722 = vld [vmem:[%s5 + $0x28] sm:$0xf]
      %v723 = vld [vmem:[%s5 + $0x2c] sm:$0xf]
      %v724 = vld [vmem:[%s5 + $0x30] sm:$0xf]
      %v725 = vld [vmem:[%s5 + $0x34] sm:$0xf]
      %v726 = vld [vmem:[%s5 + $0x38] sm:$0xf]
      %v727 = vld [vmem:[%s5 + $0x3c] sm:$0xf]
      %v728 = vld [vmem:[%s5 + $0x40] sm:$0xf]
      %v729 = vld [vmem:[%s5 + $0x44] sm:$0xf]
      %v730 = vld [vmem:[%s5 + $0x48] sm:$0xf]
      %v731 = vld [vmem:[%s5 + $0x4c] sm:$0xf]
      %v732 = vld [vmem:[%s5 + $0x50] sm:$0xf]
      %v733 = vld [vmem:[%s5 + $0x54] sm:$0xf]
      %v734 = vld [vmem:[%s5 + $0x58] sm:$0xf]
      %v735 = vld [vmem:[%s5 + $0x5c] sm:$0xf]
      %v736 = vld [vmem:[%s5 + $0x60] sm:$0xf]
      %v737 = vld [vmem:[%s5 + $0x64] sm:$0xf]
      %v738 = vld [vmem:[%s5 + $0x68] sm:$0xf]
      %v739 = vld [vmem:[%s5 + $0x6c] sm:$0xf]
      %v740 = vld [vmem:[%s5 + $0x70] sm:$0xf]
      %v741 = vld [vmem:[%s5 + $0x74] sm:$0xf]
      %v742 = vld [vmem:[%s5 + $0x78] sm:$0xf]
      %v743 = vld [vmem:[%s5 + $0x7c] sm:$0xf]
      %v744 = vld [vmem:[%s5 + $0x80] sm:$0xf]
      %v745 = vld [vmem:[%s5 + $0x84] sm:$0xf]
      %v746 = vld [vmem:[%s5 + $0x88] sm:$0xf]
      %v747 = vld [vmem:[%s5 + $0x8c] sm:$0xf]
      %v748 = vld [vmem:[%s5 + $0x90] sm:$0xf]
      %v749 = vld [vmem:[%s5 + $0x94] sm:$0xf]
      %v750 = vld [vmem:[%s5 + $0x98] sm:$0xf]
      %v751 = vld [vmem:[%s5 + $0x9c] sm:$0xf]
      %v752 = vld [vmem:[%s5 + $0xa0] sm:$0xf]
      %v753 = vld [vmem:[%s5 + $0xa4] sm:$0xf]
      %v754 = vld [vmem:[%s5 + $0xa8] sm:$0xf]
      %v755 = vld [vmem:[%s5 + $0xac] sm:$0xf]
      %v756 = vld [vmem:[%s5 + $0xb0] sm:$0xf]
      %v757 = vld [vmem:[%s5 + $0xb4] sm:$0xf]
      %v758 = vld [vmem:[%s5 + $0xb8] sm:$0xf]
      %v759 = vld [vmem:[%s5 + $0xbc] sm:$0xf]
      %v760 = vld [vmem:[%s5 + $0xc0] sm:$0xf]
      %v761 = vld [vmem:[%s5 + $0xc4] sm:$0xf]
      %v762 = vld [vmem:[%s5 + $0xc8] sm:$0xf]
      %v763 = vld [vmem:[%s5 + $0xcc] sm:$0xf]
      %v764 = vld [vmem:[%s5 + $0xd0] sm:$0xf]
      %v765 = vld [vmem:[%s5 + $0xd4] sm:$0xf]
      %v766 = vld [vmem:[%s5 + $0xd8] sm:$0xf]
      %v767 = vld [vmem:[%s5 + $0xdc] sm:$0xf]
      %v768 = vld [vmem:[%s5 + $0xe0] sm:$0xf]
      %v769 = vld [vmem:[%s5 + $0xe4] sm:$0xf]
      %v770 = vld [vmem:[%s5 + $0xe8] sm:$0xf]
      %v771 = vld [vmem:[%s5 + $0xec] sm:$0xf]
      %v772 = vld [vmem:[%s5 + $0xf0] sm:$0xf]
      %v773 = vld [vmem:[%s5 + $0xf4] sm:$0xf]
      %v774 = vld [vmem:[%s5 + $0xf8] sm:$0xf]
      %v775 = vld [vmem:[%s5 + $0xfc] sm:$0xf]
      %v776 = vld [vmem:[%s5 + $0x100] sm:$0xf]
      %v777 = vld [vmem:[%s5 + $0x104] sm:$0xf]
      %v778 = vld [vmem:[%s5 + $0x108] sm:$0xf]
      %v779 = vld [vmem:[%s5 + $0x10c] sm:$0xf]
      %v780 = vld [vmem:[%s5 + $0x110] sm:$0xf]
      %v781 = vld [vmem:[%s5 + $0x114] sm:$0xf]
      %v782 = vld [vmem:[%s5 + $0x118] sm:$0xf]
      %v783 = vld [vmem:[%s5 + $0x11c] sm:$0xf]
      %v784 = vld [vmem:[%s5 + $0x120] sm:$0xf]
      %v785 = vld [vmem:[%s5 + $0x124] sm:$0xf]
      %v786 = vld [vmem:[%s5 + $0x128] sm:$0xf]
      %v787 = vld [vmem:[%s5 + $0x12c] sm:$0xf]
      %v788 = vld [vmem:[%s5 + $0x130] sm:$0xf]
      %v789 = vld [vmem:[%s5 + $0x134] sm:$0xf]
      %v790 = vld [vmem:[%s5 + $0x138] sm:$0xf]
      %v791 = vld [vmem:[%s5 + $0x13c] sm:$0xf]
      %v792 = vld [vmem:[%s5 + $0x140] sm:$0xf]
      %v793 = vld [vmem:[%s5 + $0x144] sm:$0xf]
      %v794 = vld [vmem:[%s5 + $0x148] sm:$0xf]
      %v795 = vld [vmem:[%s5 + $0x14c] sm:$0xf]
      %v796 = vld [vmem:[%s5 + $0x150] sm:$0xf]
      %v797 = vld [vmem:[%s5 + $0x154] sm:$0xf]
      %v798 = vld [vmem:[%s5 + $0x158] sm:$0xf]
      %v799 = vld [vmem:[%s5 + $0x15c] sm:$0xf]
      %v800 = vld [vmem:[%s5 + $0x160] sm:$0xf]
      %v801 = vld [vmem:[%s5 + $0x164] sm:$0xf]
      %v802 = vld [vmem:[%s5 + $0x168] sm:$0xf]
      %v803 = vld [vmem:[%s5 + $0x16c] sm:$0xf]
      %v804 = vld [vmem:[%s5 + $0x170] sm:$0xf]
      %v805 = vld [vmem:[%s5 + $0x174] sm:$0xf]
      %v806 = vld [vmem:[%s5 + $0x178] sm:$0xf]
      %v807 = vld [vmem:[%s5 + $0x17c] sm:$0xf]
      %v808 = vld [vmem:[%s5 + $0x180] sm:$0xf]
      %v809 = vld [vmem:[%s5 + $0x184] sm:$0xf]
      %v810 = vld [vmem:[%s5 + $0x188] sm:$0xf]
      %v811 = vld [vmem:[%s5 + $0x18c] sm:$0xf]
      %v812 = vld [vmem:[%s5 + $0x190] sm:$0xf]
      %v813 = vld [vmem:[%s5 + $0x194] sm:$0xf]
      %v814 = vld [vmem:[%s5 + $0x198] sm:$0xf]
      %v815 = vld [vmem:[%s5 + $0x19c] sm:$0xf]
      %v816 = vld [vmem:[%s5 + $0x1a0] sm:$0xf]
      %v817 = vld [vmem:[%s5 + $0x1a4] sm:$0xf]
      %v818 = vld [vmem:[%s5 + $0x1a8] sm:$0xf]
      %v819 = vld [vmem:[%s5 + $0x1ac] sm:$0xf]
      %v820 = vld [vmem:[%s5 + $0x1b0] sm:$0xf]
      %v821 = vld [vmem:[%s5 + $0x1b4] sm:$0xf]
      %v822 = vld [vmem:[%s5 + $0x1b8] sm:$0xf]
      %v823 = vld [vmem:[%s5 + $0x1bc] sm:$0xf]
      %v824 = vld [vmem:[%s5 + $0x1c0] sm:$0xf]
      %v825 = vld [vmem:[%s5 + $0x1c4] sm:$0xf]
      %v826 = vld [vmem:[%s5 + $0x1c8] sm:$0xf]
      %v827 = vld [vmem:[%s5 + $0x1cc] sm:$0xf]
      %v828 = vld [vmem:[%s5 + $0x1d0] sm:$0xf]
      %v829 = vld [vmem:[%s5 + $0x1d4] sm:$0xf]
      %v830 = vld [vmem:[%s5 + $0x1d8] sm:$0xf]
      %v831 = vld [vmem:[%s5 + $0x1dc] sm:$0xf]
      %v832 = vld [vmem:[%s5 + $0x1e0] sm:$0xf]
      %v833 = vld [vmem:[%s5 + $0x1e4] sm:$0xf]
      %v834 = vld [vmem:[%s5 + $0x1e8] sm:$0xf]
      %v835 = vld [vmem:[%s5 + $0x1ec] sm:$0xf]
      %v836 = vld [vmem:[%s5 + $0x1f0] sm:$0xf]
      %v837 = vld [vmem:[%s5 + $0x1f4] sm:$0xf]
      %v838 = vld [vmem:[%s5 + $0x1f8] sm:$0xf]
      %v839 = vld [vmem:[%s5 + $0x1fc] sm:$0xf]
      %v840 = vld [vmem:[%s5 + $0x200] sm:$0xf]
      %v841 = vld [vmem:[%s5 + $0x204] sm:$0xf]
      %v842 = vld [vmem:[%s5 + $0x208] sm:$0xf]
      %v843 = vld [vmem:[%s5 + $0x20c] sm:$0xf]
      %v844 = vld [vmem:[%s5 + $0x210] sm:$0xf]
      %v845 = vld [vmem:[%s5 + $0x214] sm:$0xf]
      %v846 = vld [vmem:[%s5 + $0x218] sm:$0xf]
      %v847 = vld [vmem:[%s5 + $0x21c] sm:$0xf]
      %v848 = vld [vmem:[%s5 + $0x220] sm:$0xf]
      %v849 = vld [vmem:[%s5 + $0x224] sm:$0xf]
      %v850 = vld [vmem:[%s5 + $0x228] sm:$0xf]
      %v851 = vld [vmem:[%s5 + $0x22c] sm:$0xf]
      %v852 = vld [vmem:[%s5 + $0x230] sm:$0xf]
      %v853 = vld [vmem:[%s5 + $0x234] sm:$0xf]
      %v854 = vld [vmem:[%s5 + $0x238] sm:$0xf]
      %v855 = vld [vmem:[%s5 + $0x23c] sm:$0xf]
      %v856 = vld [vmem:[%s6] sm:$0x1]
      %v858 = vlaneseq
      %v859 = vshrl.u32 %v858, 7
      %v860 = vsub.s32 0, %v859
      %v861 = vrot.slane %v856, %v860
      %v1007 = vunpack.c.l.b16 %v712
      %v1008 = vunpack.c.l.b16 %v713
      %v1009 = vunpack.c.l.b16 %v714
      %v1010 = vunpack.c.l.b16 %v715
      %v1011 = vunpack.c.l.b16 %v716
      %v1012 = vunpack.c.l.b16 %v717
      %v1013 = vunpack.c.l.b16 %v718
      %v1014 = vunpack.c.l.b16 %v719
      %v1015 = vunpack.c.l.b16 %v720
      %v1016 = vunpack.c.l.b16 %v721
      %v1017 = vunpack.c.l.b16 %v722
      %v1018 = vunpack.c.l.b16 %v723
      %v1019 = vunpack.c.l.b16 %v724
      %v1020 = vunpack.c.l.b16 %v725
      %v1021 = vunpack.c.l.b16 %v726
      %v1022 = vunpack.c.l.b16 %v727
      %v1023 = vunpack.c.l.b16 %v728
      %v1024 = vunpack.c.l.b16 %v729
      %v1025 = vunpack.c.l.b16 %v730
      %v1026 = vunpack.c.l.b16 %v731
      %v1027 = vunpack.c.l.b16 %v732
      %v1028 = vunpack.c.l.b16 %v733
      %v1029 = vunpack.c.l.b16 %v734
      %v1030 = vunpack.c.l.b16 %v735
      %v1031 = vunpack.c.l.b16 %v736
      %v1032 = vunpack.c.l.b16 %v737
      %v1033 = vunpack.c.l.b16 %v738
      %v1034 = vunpack.c.l.b16 %v739
      %v1035 = vunpack.c.l.b16 %v740
      %v1036 = vunpack.c.l.b16 %v741
      %v1037 = vunpack.c.l.b16 %v742
      %v1038 = vunpack.c.l.b16 %v743
      %v1039 = vunpack.c.l.b16 %v744
      %v1040 = vunpack.c.l.b16 %v745
      %v1041 = vunpack.c.l.b16 %v746
      %v1042 = vunpack.c.l.b16 %v747
      %v1043 = vunpack.c.l.b16 %v748
      %v1044 = vunpack.c.l.b16 %v749
      %v1045 = vunpack.c.l.b16 %v750
      %v1046 = vunpack.c.l.b16 %v751
      %v1047 = vunpack.c.l.b16 %v752
      %v1048 = vunpack.c.l.b16 %v753
      %v1049 = vunpack.c.l.b16 %v754
      %v1050 = vunpack.c.l.b16 %v755
      %v1051 = vunpack.c.l.b16 %v756
      %v1052 = vunpack.c.l.b16 %v757
      %v1053 = vunpack.c.l.b16 %v758
      %v1054 = vunpack.c.l.b16 %v759
      %v1055 = vunpack.c.l.b16 %v760
      %v1056 = vunpack.c.l.b16 %v761
      %v1057 = vunpack.c.l.b16 %v762
      %v1058 = vunpack.c.l.b16 %v763
      %v1059 = vunpack.c.l.b16 %v764
      %v1060 = vunpack.c.l.b16 %v765
      %v1061 = vunpack.c.l.b16 %v766
      %v1062 = vunpack.c.l.b16 %v767
      %v1063 = vunpack.c.l.b16 %v768
      %v1064 = vunpack.c.l.b16 %v769
      %v1065 = vunpack.c.l.b16 %v770
      %v1066 = vunpack.c.l.b16 %v771
      %v1067 = vunpack.c.l.b16 %v772
      %v1068 = vunpack.c.l.b16 %v773
      %v1069 = vunpack.c.l.b16 %v774
      %v1070 = vunpack.c.l.b16 %v775
      %v1071 = vunpack.c.l.b16 %v776
      %v1072 = vunpack.c.l.b16 %v777
      %v1073 = vunpack.c.l.b16 %v778
      %v1074 = vunpack.c.l.b16 %v779
      %v1075 = vunpack.c.l.b16 %v780
      %v1076 = vunpack.c.l.b16 %v781
      %v1077 = vunpack.c.l.b16 %v782
      %v1078 = vunpack.c.l.b16 %v783
      %v1079 = vunpack.c.l.b16 %v784
      %v1080 = vunpack.c.l.b16 %v785
      %v1081 = vunpack.c.l.b16 %v786
      %v1082 = vunpack.c.l.b16 %v787
      %v1083 = vunpack.c.l.b16 %v788
      %v1084 = vunpack.c.l.b16 %v789
      %v1085 = vunpack.c.l.b16 %v790
      %v1086 = vunpack.c.l.b16 %v791
      %v1087 = vunpack.c.l.b16 %v792
      %v1088 = vunpack.c.l.b16 %v793
      %v1089 = vunpack.c.l.b16 %v794
      %v1090 = vunpack.c.l.b16 %v795
      %v1091 = vunpack.c.l.b16 %v796
      %v1092 = vunpack.c.l.b16 %v797
      %v1093 = vunpack.c.l.b16 %v798
      %v1094 = vunpack.c.l.b16 %v799
      %v1095 = vunpack.c.l.b16 %v800
      %v1096 = vunpack.c.l.b16 %v801
      %v1097 = vunpack.c.l.b16 %v802
      %v1098 = vunpack.c.l.b16 %v803
      %v1099 = vunpack.c.l.b16 %v804
      %v1100 = vunpack.c.l.b16 %v805
      %v1101 = vunpack.c.l.b16 %v806
      %v1102 = vunpack.c.l.b16 %v807
      %v1103 = vunpack.c.l.b16 %v808
      %v1104 = vunpack.c.l.b16 %v809
      %v1105 = vunpack.c.l.b16 %v810
      %v1106 = vunpack.c.l.b16 %v811
      %v1107 = vunpack.c.l.b16 %v812
      %v1108 = vunpack.c.l.b16 %v813
      %v1109 = vunpack.c.l.b16 %v814
      %v1110 = vunpack.c.l.b16 %v815
      %v1111 = vunpack.c.l.b16 %v816
      %v1112 = vunpack.c.l.b16 %v817
      %v1113 = vunpack.c.l.b16 %v818
      %v1114 = vunpack.c.l.b16 %v819
      %v1115 = vunpack.c.l.b16 %v820
      %v1116 = vunpack.c.l.b16 %v821
      %v1117 = vunpack.c.l.b16 %v822
      %v1118 = vunpack.c.l.b16 %v823
      %v1119 = vunpack.c.l.b16 %v824
      %v1120 = vunpack.c.l.b16 %v825
      %v1121 = vunpack.c.l.b16 %v826
      %v1122 = vunpack.c.l.b16 %v827
      %v1123 = vunpack.c.l.b16 %v828
      %v1124 = vunpack.c.l.b16 %v829
      %v1125 = vunpack.c.l.b16 %v830
      %v1126 = vunpack.c.l.b16 %v831
      %v1127 = vunpack.c.l.b16 %v832
      %v1128 = vunpack.c.l.b16 %v833
      %v1129 = vunpack.c.l.b16 %v834
      %v1130 = vunpack.c.l.b16 %v835
      %v1131 = vunpack.c.l.b16 %v836
      %v1132 = vunpack.c.l.b16 %v837
      %v1133 = vunpack.c.l.b16 %v838
      %v1134 = vunpack.c.l.b16 %v839
      %v1135 = vunpack.c.l.b16 %v840
      %v1136 = vunpack.c.l.b16 %v841
      %v1137 = vunpack.c.l.b16 %v842
      %v1138 = vunpack.c.l.b16 %v843
      %v1139 = vunpack.c.l.b16 %v844
      %v1140 = vunpack.c.l.b16 %v845
      %v1141 = vunpack.c.l.b16 %v846
      %v1142 = vunpack.c.l.b16 %v847
      %v1143 = vunpack.c.l.b16 %v848
      %v1144 = vunpack.c.l.b16 %v849
      %v1145 = vunpack.c.l.b16 %v850
      %v1146 = vunpack.c.l.b16 %v851
      %v1147 = vunpack.c.l.b16 %v852
      %v1148 = vunpack.c.l.b16 %v853
      %v1149 = vunpack.c.l.b16 %v854
      %v1150 = vunpack.c.l.b16 %v855
      %v1151 = vpack.c.b16 %v1008, %v1007
      %v1152 = vpack.c.b16 %v1010, %v1009
      %v1153 = vpack.c.b16 %v1012, %v1011
      %v1154 = vpack.c.b16 %v1014, %v1013
      %v1155 = vpack.c.b16 %v1016, %v1015
      %v1156 = vpack.c.b16 %v1018, %v1017
      %v1157 = vpack.c.b16 %v1020, %v1019
      %v1158 = vpack.c.b16 %v1022, %v1021
      %v1159 = vpack.c.b16 %v1024, %v1023
      %v1160 = vpack.c.b16 %v1026, %v1025
      %v1161 = vpack.c.b16 %v1028, %v1027
      %v1162 = vpack.c.b16 %v1030, %v1029
      %v1163 = vpack.c.b16 %v1032, %v1031
      %v1164 = vpack.c.b16 %v1034, %v1033
      %v1165 = vpack.c.b16 %v1036, %v1035
      %v1166 = vpack.c.b16 %v1038, %v1037
      %v1167 = vpack.c.b16 %v1040, %v1039
      %v1168 = vpack.c.b16 %v1042, %v1041
      %v1169 = vpack.c.b16 %v1044, %v1043
      %v1170 = vpack.c.b16 %v1046, %v1045
      %v1171 = vpack.c.b16 %v1048, %v1047
      %v1172 = vpack.c.b16 %v1050, %v1049
      %v1173 = vpack.c.b16 %v1052, %v1051
      %v1174 = vpack.c.b16 %v1054, %v1053
      %v1175 = vpack.c.b16 %v1056, %v1055
      %v1176 = vpack.c.b16 %v1058, %v1057
      %v1177 = vpack.c.b16 %v1060, %v1059
      %v1178 = vpack.c.b16 %v1062, %v1061
      %v1179 = vpack.c.b16 %v1064, %v1063
      %v1180 = vpack.c.b16 %v1066, %v1065
      %v1181 = vpack.c.b16 %v1068, %v1067
      %v1182 = vpack.c.b16 %v1070, %v1069
      %v1183 = vpack.c.b16 %v1072, %v1071
      %v1184 = vpack.c.b16 %v1074, %v1073
      %v1185 = vpack.c.b16 %v1076, %v1075
      %v1186 = vpack.c.b16 %v1078, %v1077
      %v1187 = vpack.c.b16 %v1080, %v1079
      %v1188 = vpack.c.b16 %v1082, %v1081
      %v1189 = vpack.c.b16 %v1084, %v1083
      %v1190 = vpack.c.b16 %v1086, %v1085
      %v1191 = vpack.c.b16 %v1088, %v1087
      %v1192 = vpack.c.b16 %v1090, %v1089
      %v1193 = vpack.c.b16 %v1092, %v1091
      %v1194 = vpack.c.b16 %v1094, %v1093
      %v1195 = vpack.c.b16 %v1096, %v1095
      %v1196 = vpack.c.b16 %v1098, %v1097
      %v1197 = vpack.c.b16 %v1100, %v1099
      %v1198 = vpack.c.b16 %v1102, %v1101
      %v1199 = vpack.c.b16 %v1104, %v1103
      %v1200 = vpack.c.b16 %v1106, %v1105
      %v1201 = vpack.c.b16 %v1108, %v1107
      %v1202 = vpack.c.b16 %v1110, %v1109
      %v1203 = vpack.c.b16 %v1112, %v1111
      %v1204 = vpack.c.b16 %v1114, %v1113
      %v1205 = vpack.c.b16 %v1116, %v1115
      %v1206 = vpack.c.b16 %v1118, %v1117
      %v1207 = vpack.c.b16 %v1120, %v1119
      %v1208 = vpack.c.b16 %v1122, %v1121
      %v1209 = vpack.c.b16 %v1124, %v1123
      %v1210 = vpack.c.b16 %v1126, %v1125
      %v1211 = vpack.c.b16 %v1128, %v1127
      %v1212 = vpack.c.b16 %v1130, %v1129
      %v1213 = vpack.c.b16 %v1132, %v1131
      %v1214 = vpack.c.b16 %v1134, %v1133
      %v1215 = vpack.c.b16 %v1136, %v1135
      %v1216 = vpack.c.b16 %v1138, %v1137
      %v1217 = vpack.c.b16 %v1140, %v1139
      %v1218 = vpack.c.b16 %v1142, %v1141
      %v1219 = vpack.c.b16 %v1144, %v1143
      %v1220 = vpack.c.b16 %v1146, %v1145
      %v1221 = vpack.c.b16 %v1148, %v1147
      %v1222 = vpack.c.b16 %v1150, %v1149
      %1295 = vmatprep.subr.bf16.mxu0 0
      %1296 = vmatpush1.bf16.msra.mxu0 %v1151
      %1297 = vmatprep.subr.bf16.mxu0 0
      %1298 = vmatpush1.bf16.msra.mxu0 %v1152
      %1299 = vmatprep.subr.bf16.mxu0 0
      %1300 = vmatpush1.bf16.msra.mxu0 %v1153
      %1301 = vmatprep.subr.bf16.mxu0 0
      %1302 = vmatpush1.bf16.msra.mxu0 %v1154
      %1303 = vmatprep.subr.bf16.mxu0 0
      %1304 = vmatpush1.bf16.msra.mxu0 %v1155
      %1305 = vmatprep.subr.bf16.mxu0 0
      %1306 = vmatpush1.bf16.msra.mxu0 %v1156
      %1307 = vmatprep.subr.bf16.mxu0 0
      %1308 = vmatpush1.bf16.msra.mxu0 %v1157
      %1309 = vmatprep.subr.bf16.mxu0 0
      %1310 = vmatpush1.bf16.msra.mxu0 %v1158
      %1311 = vmatprep.subr.bf16.mxu0 0
      %1312 = vmatpush1.bf16.msra.mxu0 %v1159
      %1313 = vmatprep.subr.bf16.mxu0 0
      %1314 = vmatpush1.bf16.msra.mxu0 %v1160
      %1315 = vmatprep.subr.bf16.mxu0 0
      %1316 = vmatpush1.bf16.msra.mxu0 %v1161
      %1317 = vmatprep.subr.bf16.mxu0 0
      %1318 = vmatpush1.bf16.msra.mxu0 %v1162
      %1319 = vmatprep.subr.bf16.mxu0 0
      %1320 = vmatpush1.bf16.msra.mxu0 %v1163
      %1321 = vmatprep.subr.bf16.mxu0 0
      %1322 = vmatpush1.bf16.msra.mxu0 %v1164
      %1323 = vmatprep.subr.bf16.mxu0 0
      %1324 = vmatpush1.bf16.msra.mxu0 %v1165
      %1325 = vmatprep.subr.bf16.mxu0 0
      %1326 = vmatpush1.bf16.msra.mxu0 %v1166
      %1327 = vmatprep.mubr.bf16.mxu0 %v685
      %1328 = vmatmul.mubr.bf16.gmra.mrb[0].mxu0 %v658
      %v1329 = vpop.f32.mrb[0].mxu0
      %v1330 = vadd.f32 %v861, %v1329
      %v1331 = vpop.f32.mrb[0].mxu0
      %v1332 = vpop.f32.mrb[0].mxu0
      %v1333 = vpop.f32.mrb[0].mxu0
      %1334 = vdwg.mxu0
      %1335 = vmatprep.subr.bf16.mxu0 0
      %1336 = vmatpush1.bf16.msra.mxu0 %v1167
      %1337 = vmatprep.subr.bf16.mxu0 0
      %1338 = vmatpush1.bf16.msra.mxu0 %v1168
      %1339 = vmatprep.subr.bf16.mxu0 0
      %1340 = vmatpush1.bf16.msra.mxu0 %v1169
      %1341 = vmatprep.subr.bf16.mxu0 0
      %1342 = vmatpush1.bf16.msra.mxu0 %v1170
      %1343 = vmatprep.subr.bf16.mxu0 0
      %1344 = vmatpush1.bf16.msra.mxu0 %v1171
      %1345 = vmatprep.subr.bf16.mxu0 0
      %1346 = vmatpush1.bf16.msra.mxu0 %v1172
      %1347 = vmatprep.subr.bf16.mxu0 0
      %1348 = vmatpush1.bf16.msra.mxu0 %v1173
      %1349 = vmatprep.subr.bf16.mxu0 0
      %1350 = vmatpush1.bf16.msra.mxu0 %v1174
      %1351 = vmatprep.subr.bf16.mxu0 0
      %1352 = vmatpush1.bf16.msra.mxu0 %v1175
      %1353 = vmatprep.subr.bf16.mxu0 0
      %1354 = vmatpush1.bf16.msra.mxu0 %v1176
      %1355 = vmatprep.subr.bf16.mxu0 0
      %1356 = vmatpush1.bf16.msra.mxu0 %v1177
      %1357 = vmatprep.subr.bf16.mxu0 0
      %1358 = vmatpush1.bf16.msra.mxu0 %v1178
      %1359 = vmatprep.subr.bf16.mxu0 0
      %1360 = vmatpush1.bf16.msra.mxu0 %v1179
      %1361 = vmatprep.subr.bf16.mxu0 0
      %1362 = vmatpush1.bf16.msra.mxu0 %v1180
      %1363 = vmatprep.subr.bf16.mxu0 0
      %1364 = vmatpush1.bf16.msra.mxu0 %v1181
      %1365 = vmatprep.subr.bf16.mxu0 0
      %1366 = vmatpush1.bf16.msra.mxu0 %v1182
      %1367 = vmatprep.mubr.bf16.mxu0 %v668
      %1368 = vmatmul.mubr.bf16.gmra.mrb[0].mxu0 %v688
      %v1369 = vpop.f32.mrb[0].mxu0
      %v1370 = vadd.f32 %v1330, %v1369
      %v1371 = vpop.f32.mrb[0].mxu0
      %v1372 = vpop.f32.mrb[0].mxu0
      %v1373 = vpop.f32.mrb[0].mxu0
      %1374 = vdwg.mxu0
      %1375 = vmatprep.subr.bf16.mxu0 0
      %1376 = vmatpush1.bf16.msra.mxu0 %v1183
      %1377 = vmatprep.subr.bf16.mxu0 0
      %1378 = vmatpush1.bf16.msra.mxu0 %v1184
      %1379 = vmatprep.subr.bf16.mxu0 0
      %1380 = vmatpush1.bf16.msra.mxu0 %v1185
      %1381 = vmatprep.subr.bf16.mxu0 0
      %1382 = vmatpush1.bf16.msra.mxu0 %v1186
      %1383 = vmatprep.subr.bf16.mxu0 0
      %1384 = vmatpush1.bf16.msra.mxu0 %v1187
      %1385 = vmatprep.subr.bf16.mxu0 0
      %1386 = vmatpush1.bf16.msra.mxu0 %v1188
      %1387 = vmatprep.subr.bf16.mxu0 0
      %1388 = vmatpush1.bf16.msra.mxu0 %v1189
      %1389 = vmatprep.subr.bf16.mxu0 0
      %1390 = vmatpush1.bf16.msra.mxu0 %v1190
      %1391 = vmatprep.subr.bf16.mxu0 0
      %1392 = vmatpush1.bf16.msra.mxu0 %v1191
      %1393 = vmatprep.subr.bf16.mxu0 0
      %1394 = vmatpush1.bf16.msra.mxu0 %v1192
      %1395 = vmatprep.subr.bf16.mxu0 0
      %1396 = vmatpush1.bf16.msra.mxu0 %v1193
      %1397 = vmatprep.subr.bf16.mxu0 0
      %1398 = vmatpush1.bf16.msra.mxu0 %v1194
      %1399 = vmatprep.subr.bf16.mxu0 0
      %1400 = vmatpush1.bf16.msra.mxu0 %v1195
      %1401 = vmatprep.subr.bf16.mxu0 0
      %1402 = vmatpush1.bf16.msra.mxu0 %v1196
      %1403 = vmatprep.subr.bf16.mxu0 0
      %1404 = vmatpush1.bf16.msra.mxu0 %v1197
      %1405 = vmatprep.subr.bf16.mxu0 0
      %1406 = vmatpush1.bf16.msra.mxu0 %v1198
      %1407 = vmatprep.mubr.bf16.mxu0 %v699
      %1408 = vmatmul.mubr.bf16.gmra.mrb[0].mxu0 %v696
      %v1409 = vpop.f32.mrb[0].mxu0
      %v1410 = vadd.f32 %v1370, %v1409
      %v1411 = vpop.f32.mrb[0].mxu0
      %v1412 = vpop.f32.mrb[0].mxu0
      %v1413 = vpop.f32.mrb[0].mxu0
      %1414 = vdwg.mxu0
      %1415 = vmatprep.subr.bf16.mxu0 0
      %1416 = vmatpush1.bf16.msra.mxu0 %v1199
      %1417 = vmatprep.subr.bf16.mxu0 0
      %1418 = vmatpush1.bf16.msra.mxu0 %v1200
      %1419 = vmatprep.subr.bf16.mxu0 0
      %1420 = vmatpush1.bf16.msra.mxu0 %v1201
      %1421 = vmatprep.subr.bf16.mxu0 0
      %1422 = vmatpush1.bf16.msra.mxu0 %v1202
      %1423 = vmatprep.subr.bf16.mxu0 0
      %1424 = vmatpush1.bf16.msra.mxu0 %v1203
      %1425 = vmatprep.subr.bf16.mxu0 0
      %1426 = vmatpush1.bf16.msra.mxu0 %v1204
      %1427 = vmatprep.subr.bf16.mxu0 0
      %1428 = vmatpush1.bf16.msra.mxu0 %v1205
      %1429 = vmatprep.subr.bf16.mxu0 0
      %1430 = vmatpush1.bf16.msra.mxu0 %v1206
      %1431 = vmatprep.subr.bf16.mxu0 0
      %1432 = vmatpush1.bf16.msra.mxu0 %v1207
      %1433 = vmatprep.subr.bf16.mxu0 0
      %1434 = vmatpush1.bf16.msra.mxu0 %v1208
      %1435 = vmatprep.subr.bf16.mxu0 0
      %1436 = vmatpush1.bf16.msra.mxu0 %v1209
      %1437 = vmatprep.subr.bf16.mxu0 0
      %1438 = vmatpush1.bf16.msra.mxu0 %v1210
      %1439 = vmatprep.subr.bf16.mxu0 0
      %1440 = vmatpush1.bf16.msra.mxu0 %v1211
      %1441 = vmatprep.subr.bf16.mxu0 0
      %1442 = vmatpush1.bf16.msra.mxu0 %v1212
      %1443 = vmatprep.subr.bf16.mxu0 0
      %1444 = vmatpush1.bf16.msra.mxu0 %v1213
      %1445 = vmatprep.subr.bf16.mxu0 0
      %1446 = vmatpush1.bf16.msra.mxu0 %v1214
      %1447 = vmatprep.mubr.bf16.mxu0 %v707
      %1448 = vmatmul.mubr.bf16.gmra.mrb[0].mxu0 %v678
      %v1449 = vpop.f32.mrb[0].mxu0
      %v1450 = vadd.f32 %v1410, %v1449
      %v1451 = vpop.f32.mrb[0].mxu0
      %v1452 = vpop.f32.mrb[0].mxu0
      %v1453 = vpop.f32.mrb[0].mxu0
      %1454 = vdwg.mxu0
      %1455 = vmatprep.subr.bf16.mxu0 0
      %1456 = vmatpush1.bf16.msra.mxu0 %v1215
      %1457 = vmatprep.subr.bf16.mxu0 0
      %1458 = vmatpush1.bf16.msra.mxu0 %v1216
      %1459 = vmatprep.subr.bf16.mxu0 0
      %1460 = vmatpush1.bf16.msra.mxu0 %v1217
      %1461 = vmatprep.subr.bf16.mxu0 0
      %1462 = vmatpush1.bf16.msra.mxu0 %v1218
      %1463 = vmatprep.subr.bf16.mxu0 0
      %1464 = vmatpush1.bf16.msra.mxu0 %v1219
      %1465 = vmatprep.subr.bf16.mxu0 0
      %1466 = vmatpush1.bf16.msra.mxu0 %v1220
      %1467 = vmatprep.subr.bf16.mxu0 0
      %1468 = vmatpush1.bf16.msra.mxu0 %v1221
      %1469 = vmatprep.subr.bf16.mxu0 0
      %1470 = vmatpush1.bf16.msra.mxu0 %v1222
      %1471 = vmatprep.subr.bf16.mxu0 0
      %1472 = vmatpush1.bf16.msra.mxu0 0
      %1473 = vmatprep.subr.bf16.mxu0 0
      %1474 = vmatpush1.bf16.msra.mxu0 0
      %1475 = vmatprep.subr.bf16.mxu0 0
      %1476 = vmatpush1.bf16.msra.mxu0 0
      %1477 = vmatprep.subr.bf16.mxu0 0
      %1478 = vmatpush1.bf16.msra.mxu0 0
      %1479 = vmatprep.subr.bf16.mxu0 0
      %1480 = vmatpush1.bf16.msra.mxu0 0
      %1481 = vmatprep.subr.bf16.mxu0 0
      %1482 = vmatpush1.bf16.msra.mxu0 0
      %1483 = vmatprep.subr.bf16.mxu0 0
      %1484 = vmatpush1.bf16.msra.mxu0 0
      %1485 = vmatprep.subr.bf16.mxu0 0
      %1486 = vmatpush1.bf16.msra.mxu0 0
      %1487 = vmatprep.mubr.bf16.mxu0 0
      %1488 = vmatmul.mubr.bf16.gmra.mrb[0].mxu0 %v710
      %v1489 = vpop.f32.mrb[0].mxu0
      %v1490 = vadd.f32 %v1450, %v1489
      %v1491 = vpop.f32.mrb[0].mxu0
      %v1492 = vpop.f32.mrb[0].mxu0
      %v1493 = vpop.f32.mrb[0].mxu0
      %1494 = vdwg.mxu0
      %v1495 = vpack.c.bf16 %v1490, %v1490
      %1496 = vst [vmem:[%s584] sm:$0xf] %v1495
      %p1497 = scmp.lt.s32.totalorder %s23, 1
      %s1498 = scalar_select %p1497, %s23, 1
      %p1499 = scmp.lt.s32.totalorder %s24, 3
      %s1500 = scalar_select %p1499, %s24, 3
      %p1501 = scmp.lt.s32.totalorder %s25, 7
      %s1502 = scalar_select %p1501, %s25, 7
      %s1503 = smul.addr %s1500, 8
      %s1504 = sadd.s32 %s1502, %s1503
      %s1505 = smul.addr %s1498, 32
      %s1506 = sadd.s32 %s1504, %s1505
      %s1507 = smul.addr %s1506, 4
      %s1508 = scalar_lea.vmem %s7, %s1507
      // Predicated region
      $region49: #{temporal_resnet_block.7} parent=47 // pred_check
        %p1509 = pneg %p275
      $region50: #{temporal_resnet_block.7} parent=47 // pred_check_branch
        %1511 = sbr.rel (%p1509) target = $region52
      $region51: #{temporal_resnet_block.7} parent=47 // pred_region
        _
      $region52: #{temporal_resnet_block.7} parent=47 // pred_fallthru
        _
    $region48: #{temporal_resnet_block.7} parent=5 // pred_fallthru
      _
    %p1512 = scmp.le.s32.totalorder 2, %s13
    // Predicated region
    $region53: #{temporal_resnet_block.7} parent=5 // pred_check
      %p1513 = pneg %p1512
    $region54: #{temporal_resnet_block.7} parent=5 // pred_check_branch
      %1515 = sbr.rel (%p1513) target = $region56
    $region55: #{temporal_resnet_block.7} parent=5 // pred_region
      %s1516 = ssub.s32 %s13, 2
      // Predicated region
      $region57: #{temporal_resnet_block.7} parent=55 // pred_check
        %p1517 = pneg %p281
      $region58: #{temporal_resnet_block.7} parent=55 // pred_check_branch
        %1519 = sbr.rel (%p1517) target = $region60
      $region59: #{temporal_resnet_block.7} parent=55 // pred_region
        %p1520 = scmp.lt.s32.totalorder %s26, 1
        %s1521 = scalar_select %p1520, %s26, 1
        %p1522 = scmp.lt.s32.totalorder %s27, 3
        %s1523 = scalar_select %p1522, %s27, 3
        %p1524 = scmp.lt.s32.totalorder %s28, 7
        %s1525 = scalar_select %p1524, %s28, 7
        %s1526 = smul.addr %s1523, 8
        %s1527 = sadd.s32 %s1525, %s1526
        %s1528 = smul.addr %s1521, 32
        %s1529 = sadd.s32 %s1527, %s1528
        %s1530 = smul.addr %s1529, 4
        %s1531 = scalar_lea.vmem %s7, %s1530
      $region60: #{temporal_resnet_block.7} parent=55 // pred_fallthru
        _
    $region56: #{temporal_resnet_block.7} parent=5 // pred_fallthru
      _
  $region6: #{temporal_resnet_block.7} parent=0 // loop_footer
    %s17 = sadd.s32 1, %s13
  $region7: #{temporal_resnet_block.7} parent=0 // loop_footer_branch
    %12 = sbr.rel target = $region3
  $region8: #{temporal_resnet_block.7} parent=0 // loop_exit
    _

// kernel: temporal_resnet_block.11
$region0: #{temporal_resnet_block.11}
  #allocation0 [shape = 'u32[]', space=smem, size = 0x4, offset = 0x4, fixed_abs, tag = 'smem constant byte address 0x4 - core index']
  #allocation1 [shape = 'u32[144,128]{1,0:T(1,128)}', space=vmem, size = 0x12000, scoped, tag = 'internal scratch']
  %s0 = inlined_call_operand.vmem [shape: bf16[2,4,8,8,128], index: 0, kind: input, shape index: {}, may-alias: {0,1,2}]
  %s1 = inlined_call_operand.vmem [shape: bf16[2,4,8,8,128], index: 1, kind: input, shape index: {}, may-alias: {0,1,2}]
  %s2 = inlined_call_operand.vmem [shape: bf16[2,4,8,8,128], index: 2, kind: input, shape index: {}, may-alias: {0,1,2}]
  %s3 = inlined_call_operand.vmem [shape: f32[2,4,8,8,128], index: 3, kind: input, shape index: {}]
  %s4 = inlined_call_operand.vmem [shape: bf16[384,128], index: 4, kind: input, shape index: {}]
  %s5 = inlined_call_operand.vmem [shape: f32[1,128], index: 5, kind: input, shape index: {}]
  %s6 = inlined_call_operand.hbm [shape: f32[2,4,8,8,128], index: 6, kind: output, shape index: {}]
  %s7 = sld [smem:[#allocation0]]
  $region57: #{temporal_resnet_block.11} parent=0
    _
  %s9 = ssub.s32 1, %s7
  %s10 = scalar_select 0, %s9, %s7
  $region1: #{temporal_resnet_block.11} parent=0
    #allocation2 [shape = 'u8[8192]{0}', space=vmem, size = 0x2000, scoped, tag = 'output window, operand 0']
    #allocation3 [shape = 's32[2]{0}', space=sflag, size = 0x8, scoped, tag = 'scoped memory for temporal_resnet_block.11']
    %11 = vsyncpa [#allocation3], 0
    %s12 = scalar_lea.sflag [#allocation3], 1
    %13 = vsyncpa %s12, 0
    loop: start=0, step=1, limit=66
    $region2: #{temporal_resnet_block.11} parent=1 // loop_pre_header
      _
    $region3: #{temporal_resnet_block.11} parent=1 // loop_header
      %s15 = sphi 0, %s19
      %p16 = scmp.ge.s32.totalorder %s15, 66
      %s22 = sphi 0, %s41
      %s23 = sphi 0, %s37
      %s24 = sphi 0, %s33
      %s25 = sphi 0, %s22
      %s26 = sphi 0, %s23
      %s27 = sphi 0, %s24
      %s28 = sphi 0, %s25
      %s29 = sphi 0, %s26
      %s30 = sphi 0, %s27
      %s58 = sphi 0, %s60
      %s61 = sphi 0, %s58
      %s62 = sphi 0, %s61
      %s78 = sphi 0, %s62
      %s96 = sphi 0, %s98
      %s99 = sphi 0, %s96
      %s100 = sphi 0, %s99
      %s116 = sphi 0, %s100
      %s136 = sphi 0, %s138
      %s139 = sphi 0, %s136
      %s140 = sphi 0, %s139
      %s156 = sphi 0, %s140
      %s166 = sphi 0, %s168
      %s169 = sphi 0, %s166
      %s170 = sphi 0, %s169
      %s186 = sphi 0, %s170
      %s190 = sphi 0, %s190
      %s192 = sphi 0, %s190
      %s193 = sphi 0, %s192
      %s207 = sphi 0, %s193
      %s211 = sphi 0, %s211
      %s213 = sphi 0, %s211
      %s214 = sphi 0, %s213
      %s228 = sphi 0, %s214
      %s238 = sphi 0, %s240
      %s241 = sphi 0, %s238
      %s242 = sphi 0, %s241
      %s258 = sphi 0, %s242
    $region4: #{temporal_resnet_block.11} parent=1 // loop_header_branch
      %18 = sbr.rel (%p16) target = $region8
    $region5: #{temporal_resnet_block.11} parent=1 // loop_body
      %s20 = ssub.s32 %s15, 1
      %s21 = ssub.s32 %s15, 2
      %s31 = sadd.s32 1, %s24
      %p32 = scmp.ge.s32.totalorder %s31, 8
      %s33 = scalar_select %p32, 0, %s31
      %s34 = sadd.s32 1, %s23
      %s35 = scalar_select %p32, %s34, %s23
      %p36 = scmp.ge.s32.totalorder %s35, 4
      %s37 = scalar_select %p36, 0, %s35
      %s38 = sadd.s32 1, %s22
      %s39 = scalar_select %p36, %s38, %s22
      %p40 = scmp.ge.s32.totalorder %s39, 2
      %s41 = scalar_select %p40, 0, %s39
      %s42 = sadd.s32 %s23, 4294967295
      %p43 = scmp.gt.s32.totalorder %s42, 0
      %s44 = scalar_select %p43, %s42, 0
      %p45 = scmp.lt.s32.totalorder %s44, 3
      %s46 = scalar_select %p45, %s44, 3
      %s47 = sadd.s32 %s37, 4294967295
      %p48 = scmp.gt.s32.totalorder %s47, 0
      %s49 = scalar_select %p48, %s47, 0
      %p50 = scmp.lt.s32.totalorder %s49, 3
      %s51 = scalar_select %p50, %s49, 3
      %s52 = ssub.s32 %s22, %s41
      %s53 = ssub.s32 %s46, %s51
      %s54 = sor.u32 %s52, %s53
      %s55 = ssub.s32 %s24, %s33
      %s56 = sor.u32 %s54, %s55
      %p57 = scmp.eq.s32.totalorder %s56, 0
      %s59 = sadd.s32 %s58, 1
      %s60 = scalar_select %p57, %s58, %s59
      %p63 = pneg %p57
      %p64 = scmp.eq.s32.totalorder %s15, 63
      %p65 = por %p63, %p64
      %p66 = scmp.ne.s32.totalorder %s58, %s61
      %p67 = scmp.eq.s32.totalorder %s15, 0
      %p68 = por %p66, %p67
      %p69 = scmp.ne.s32.totalorder %s58, %s61
      %p70 = scmp.eq.s32.totalorder %s20, 63
      %p71 = por %p69, %p70
      %p72 = scmp.ne.s32.totalorder %s61, %s62
      %p73 = scmp.eq.s32.totalorder %s20, 0
      %p74 = por %p72, %p73
      %p75 = scmp.ne.s32.totalorder %s61, %s62
      %p76 = scmp.eq.s32.totalorder %s21, 63
      %p77 = por %p75, %p76
      %p79 = scmp.ne.s32.totalorder %s62, %s78
      %p80 = scmp.eq.s32.totalorder %s21, 0
      %p81 = por %p79, %p80
      %p82 = scmp.gt.s32.totalorder %s23, 0
      %s83 = scalar_select %p82, %s23, 0
      %p84 = scmp.lt.s32.totalorder %s83, 3
      %s85 = scalar_select %p84, %s83, 3
      %p86 = scmp.gt.s32.totalorder %s37, 0
      %s87 = scalar_select %p86, %s37, 0
      %p88 = scmp.lt.s32.totalorder %s87, 3
      %s89 = scalar_select %p88, %s87, 3
      %s90 = ssub.s32 %s22, %s41
      %s91 = ssub.s32 %s85, %s89
      %s92 = sor.u32 %s90, %s91
      %s93 = ssub.s32 %s24, %s33
      %s94 = sor.u32 %s92, %s93
      %p95 = scmp.eq.s32.totalorder %s94, 0
      %s97 = sadd.s32 %s96, 1
      %s98 = scalar_select %p95, %s96, %s97
      %p101 = pneg %p95
      %p102 = scmp.eq.s32.totalorder %s15, 63
      %p103 = por %p101, %p102
      %p104 = scmp.ne.s32.totalorder %s96, %s99
      %p105 = scmp.eq.s32.totalorder %s15, 0
      %p106 = por %p104, %p105
      %p107 = scmp.ne.s32.totalorder %s96, %s99
      %p108 = scmp.eq.s32.totalorder %s20, 63
      %p109 = por %p107, %p108
      %p110 = scmp.ne.s32.totalorder %s99, %s100
      %p111 = scmp.eq.s32.totalorder %s20, 0
      %p112 = por %p110, %p111
      %p113 = scmp.ne.s32.totalorder %s99, %s100
      %p114 = scmp.eq.s32.totalorder %s21, 63
      %p115 = por %p113, %p114
      %p117 = scmp.ne.s32.totalorder %s100, %s116
      %p118 = scmp.eq.s32.totalorder %s21, 0
      %p119 = por %p117, %p118
      %s120 = sadd.s32 %s23, 1
      %p121 = scmp.gt.s32.totalorder %s120, 0
      %s122 = scalar_select %p121, %s120, 0
      %p123 = scmp.lt.s32.totalorder %s122, 3
      %s124 = scalar_select %p123, %s122, 3
      %s125 = sadd.s32 %s37, 1
      %p126 = scmp.gt.s32.totalorder %s125, 0
      %s127 = scalar_select %p126, %s125, 0
      %p128 = scmp.lt.s32.totalorder %s127, 3
      %s129 = scalar_select %p128, %s127, 3
      %s130 = ssub.s32 %s22, %s41
      %s131 = ssub.s32 %s124, %s129
      %s132 = sor.u32 %s130, %s131
      %s133 = ssub.s32 %s24, %s33
      %s134 = sor.u32 %s132, %s133
      %p135 = scmp.eq.s32.totalorder %s134, 0
      %s137 = sadd.s32 %s136, 1
      %s138 = scalar_select %p135, %s136, %s137
      %p141 = pneg %p135
      %p142 = scmp.eq.s32.totalorder %s15, 63
      %p143 = por %p141, %p142
      %p144 = scmp.ne.s32.totalorder %s136, %s139
      %p145 = scmp.eq.s32.totalorder %s15, 0
      %p146 = por %p144, %p145
      %p147 = scmp.ne.s32.totalorder %s136, %s139
      %p148 = scmp.eq.s32.totalorder %s20, 63
      %p149 = por %p147, %p148
      %p150 = scmp.ne.s32.totalorder %s139, %s140
      %p151 = scmp.eq.s32.totalorder %s20, 0
      %p152 = por %p150, %p151
      %p153 = scmp.ne.s32.totalorder %s139, %s140
      %p154 = scmp.eq.s32.totalorder %s21, 63
      %p155 = por %p153, %p154
      %p157 = scmp.ne.s32.totalorder %s140, %s156
      %p158 = scmp.eq.s32.totalorder %s21, 0
      %p159 = por %p157, %p158
      %s160 = ssub.s32 %s22, %s41
      %s161 = ssub.s32 %s23, %s37
      %s162 = sor.u32 %s160, %s161
      %s163 = ssub.s32 %s24, %s33
      %s164 = sor.u32 %s162, %s163
      %p165 = scmp.eq.s32.totalorder %s164, 0
      %s167 = sadd.s32 %s166, 1
      %s168 = scalar_select %p165, %s166, %s167
      %p171 = pneg %p165
      %p172 = scmp.eq.s32.totalorder %s15, 63
      %p173 = por %p171, %p172
      %p174 = scmp.ne.s32.totalorder %s166, %s169
      %p175 = scmp.eq.s32.totalorder %s15, 0
      %p176 = por %p174, %p175
      %p177 = scmp.ne.s32.totalorder %s166, %s169
      %p178 = scmp.eq.s32.totalorder %s20, 63
      %p179 = por %p177, %p178
      %p180 = scmp.ne.s32.totalorder %s169, %s170
      %p181 = scmp.eq.s32.totalorder %s20, 0
      %p182 = por %p180, %p181
      %p183 = scmp.ne.s32.totalorder %s169, %s170
      %p184 = scmp.eq.s32.totalorder %s21, 63
      %p185 = por %p183, %p184
      %p187 = scmp.ne.s32.totalorder %s170, %s186
      %p188 = scmp.eq.s32.totalorder %s21, 0
      %p189 = por %p187, %p188
      %s191 = sadd.s32 %s190, 1
      %p194 = scmp.eq.s32.totalorder %s15, 63
      %p195 = scmp.ne.s32.totalorder %s190, %s192
      %p196 = scmp.eq.s32.totalorder %s15, 0
      %p197 = por %p195, %p196
      %p198 = scmp.ne.s32.totalorder %s190, %s192
      %p199 = scmp.eq.s32.totalorder %s20, 63
      %p200 = por %p198, %p199
      %p201 = scmp.ne.s32.totalorder %s192, %s193
      %p202 = scmp.eq.s32.totalorder %s20, 0
      %p203 = por %p201, %p202
      %p204 = scmp.ne.s32.totalorder %s192, %s193
      %p205 = scmp.eq.s32.totalorder %s21, 63
      %p206 = por %p204, %p205
      %p208 = scmp.ne.s32.totalorder %s193, %s207
      %p209 = scmp.eq.s32.totalorder %s21, 0
      %p210 = por %p208, %p209
      %s212 = sadd.s32 %s211, 1
      %p215 = scmp.eq.s32.totalorder %s15, 63
      %p216 = scmp.ne.s32.totalorder %s211, %s213
      %p217 = scmp.eq.s32.totalorder %s15, 0
      %p218 = por %p216, %p217
      %p219 = scmp.ne.s32.totalorder %s211, %s213
      %p220 = scmp.eq.s32.totalorder %s20, 63
      %p221 = por %p219, %p220
      %p222 = scmp.ne.s32.totalorder %s213, %s214
      %p223 = scmp.eq.s32.totalorder %s20, 0
      %p224 = por %p222, %p223
      %p225 = scmp.ne.s32.totalorder %s213, %s214
      %p226 = scmp.eq.s32.totalorder %s21, 63
      %p227 = por %p225, %p226
      %p229 = scmp.ne.s32.totalorder %s214, %s228
      %p230 = scmp.eq.s32.totalorder %s21, 0
      %p231 = por %p229, %p230
      %s232 = ssub.s32 %s22, %s41
      %s233 = ssub.s32 %s23, %s37
      %s234 = sor.u32 %s232, %s233
      %s235 = ssub.s32 %s24, %s33
      %s236 = sor.u32 %s234, %s235
      %p237 = scmp.eq.s32.totalorder %s236, 0
      %s239 = sadd.s32 %s238, 1
      %s240 = scalar_select %p237, %s238, %s239
      %p243 = pneg %p237
      %p244 = scmp.eq.s32.totalorder %s15, 63
      %p245 = por %p243, %p244
      %p246 = scmp.ne.s32.totalorder %s238, %s241
      %p247 = scmp.eq.s32.totalorder %s15, 0
      %p248 = por %p246, %p247
      %p249 = scmp.ne.s32.totalorder %s238, %s241
      %p250 = scmp.eq.s32.totalorder %s20, 63
      %p251 = por %p249, %p250
      %p252 = scmp.ne.s32.totalorder %s241, %s242
      %p253 = scmp.eq.s32.totalorder %s20, 0
      %p254 = por %p252, %p253
      %p255 = scmp.ne.s32.totalorder %s241, %s242
      %p256 = scmp.eq.s32.totalorder %s21, 63
      %p257 = por %p255, %p256
      %p259 = scmp.ne.s32.totalorder %s242, %s258
      %p260 = scmp.eq.s32.totalorder %s21, 0
      %p261 = por %p259, %p260
      %p262 = scmp.le.s32.totalorder 1, %s15
      %p263 = scmp.lt.s32.totalorder %s15, 65
      %p264 = pnand %p262, %p263
      %p265 = pneg %p264
      // Predicated region
      $region9: #{temporal_resnet_block.11} parent=5 // pred_check
        _
      $region10: #{temporal_resnet_block.11} parent=5 // pred_check_branch
        %267 = sbr.rel (%p264) target = $region12
      $region11: #{temporal_resnet_block.11} parent=5 // pred_region
        %s268 = ssub.s32 %s15, 1
        // Predicated region
        $region13: #{temporal_resnet_block.11} parent=11 // pred_check
          %p269 = pneg %p203
        $region14: #{temporal_resnet_block.11} parent=11 // pred_check_branch
          %271 = sbr.rel (%p269) target = $region16
        $region15: #{temporal_resnet_block.11} parent=11 // pred_region
          _
        $region16: #{temporal_resnet_block.11} parent=11 // pred_fallthru
          _
        // Predicated region
        $region17: #{temporal_resnet_block.11} parent=11 // pred_check
          %p272 = pneg %p224
        $region18: #{temporal_resnet_block.11} parent=11 // pred_check_branch
          %274 = sbr.rel (%p272) target = $region20
        $region19: #{temporal_resnet_block.11} parent=11 // pred_region
          _
        $region20: #{temporal_resnet_block.11} parent=11 // pred_fallthru
          _
      $region12: #{temporal_resnet_block.11} parent=5 // pred_fallthru
        _
      %p275 = scmp.lt.s32.totalorder %s15, 64
      // Predicated region
      $region21: #{temporal_resnet_block.11} parent=5 // pred_check
        %p276 = pneg %p275
      $region22: #{temporal_resnet_block.11} parent=5 // pred_check_branch
        %278 = sbr.rel (%p276) target = $region24
      $region23: #{temporal_resnet_block.11} parent=5 // pred_region
        // Predicated region
        $region25: #{temporal_resnet_block.11} parent=23 // pred_check
          %p279 = pneg %p68
        $region26: #{temporal_resnet_block.11} parent=23 // pred_check_branch
          %281 = sbr.rel (%p279) target = $region28
        $region27: #{temporal_resnet_block.11} parent=23 // pred_region
          %s282 = sadd.s32 %s23, 4294967295
          %p283 = scmp.gt.s32.totalorder %s282, 0
          %s284 = scalar_select %p283, %s282, 0
          %p285 = scmp.lt.s32.totalorder %s284, 3
          %s286 = scalar_select %p285, %s284, 3
          %p287 = scmp.lt.s32.totalorder %s22, 1
          %s288 = scalar_select %p287, %s22, 1
          %p289 = scmp.lt.s32.totalorder %s286, 3
          %s290 = scalar_select %p289, %s286, 3
          %p291 = scmp.lt.s32.totalorder %s24, 7
          %s292 = scalar_select %p291, %s24, 7
          %s293 = smul.addr %s290, 8
          %s294 = sadd.s32 %s292, %s293
          %s295 = smul.addr %s288, 32
          %s296 = sadd.s32 %s294, %s295
          %s297 = smul.addr %s296, 4
          %s298 = scalar_lea.vmem %s0, %s297
          %s299 = sadd.s32 %s23, 4294967295
          %p300 = scmp.gt.s32.totalorder %s299, 0
          %s301 = scalar_select %p300, %s299, 0
          %p302 = scmp.lt.s32.totalorder %s301, 3
          %s303 = scalar_select %p302, %s301, 3
        $region28: #{temporal_resnet_block.11} parent=23 // pred_fallthru
          _
        // Predicated region
        $region29: #{temporal_resnet_block.11} parent=23 // pred_check
          %p304 = pneg %p106
        $region30: #{temporal_resnet_block.11} parent=23 // pred_check_branch
          %306 = sbr.rel (%p304) target = $region32
        $region31: #{temporal_resnet_block.11} parent=23 // pred_region
          %p307 = scmp.gt.s32.totalorder %s23, 0
          %s308 = scalar_select %p307, %s23, 0
          %p309 = scmp.lt.s32.totalorder %s308, 3
          %s310 = scalar_select %p309, %s308, 3
          %p311 = scmp.lt.s32.totalorder %s22, 1
          %s312 = scalar_select %p311, %s22, 1
          %p313 = scmp.lt.s32.totalorder %s310, 3
          %s314 = scalar_select %p313, %s310, 3
          %p315 = scmp.lt.s32.totalorder %s24, 7
          %s316 = scalar_select %p315, %s24, 7
          %s317 = smul.addr %s314, 8
          %s318 = sadd.s32 %s316, %s317
          %s319 = smul.addr %s312, 32
          %s320 = sadd.s32 %s318, %s319
          %s321 = smul.addr %s320, 4
          %s322 = scalar_lea.vmem %s1, %s321
          %p323 = scmp.gt.s32.totalorder %s23, 0
          %s324 = scalar_select %p323, %s23, 0
          %p325 = scmp.lt.s32.totalorder %s324, 3
          %s326 = scalar_select %p325, %s324, 3
        $region32: #{temporal_resnet_block.11} parent=23 // pred_fallthru
          _
        // Predicated region
        $region33: #{temporal_resnet_block.11} parent=23 // pred_check
          %p327 = pneg %p146
        $region34: #{temporal_resnet_block.11} parent=23 // pred_check_branch
          %329 = sbr.rel (%p327) target = $region36
        $region35: #{temporal_resnet_block.11} parent=23 // pred_region
          %s330 = sadd.s32 %s23, 1
          %p331 = scmp.gt.s32.totalorder %s330, 0
          %s332 = scalar_select %p331, %s330, 0
          %p333 = scmp.lt.s32.totalorder %s332, 3
          %s334 = scalar_select %p333, %s332, 3
          %p335 = scmp.lt.s32.totalorder %s22, 1
          %s336 = scalar_select %p335, %s22, 1
          %p337 = scmp.lt.s32.totalorder %s334, 3
          %s338 = scalar_select %p337, %s334, 3
          %p339 = scmp.lt.s32.totalorder %s24, 7
          %s340 = scalar_select %p339, %s24, 7
          %s341 = smul.addr %s338, 8
          %s342 = sadd.s32 %s340, %s341
          %s343 = smul.addr %s336, 32
          %s344 = sadd.s32 %s342, %s343
          %s345 = smul.addr %s344, 4
          %s346 = scalar_lea.vmem %s2, %s345
          %s347 = sadd.s32 %s23, 1
          %p348 = scmp.gt.s32.totalorder %s347, 0
          %s349 = scalar_select %p348, %s347, 0
          %p350 = scmp.lt.s32.totalorder %s349, 3
          %s351 = scalar_select %p350, %s349, 3
        $region36: #{temporal_resnet_block.11} parent=23 // pred_fallthru
          _
        // Predicated region
        $region37: #{temporal_resnet_block.11} parent=23 // pred_check
          %p352 = pneg %p176
        $region38: #{temporal_resnet_block.11} parent=23 // pred_check_branch
          %354 = sbr.rel (%p352) target = $region40
        $region39: #{temporal_resnet_block.11} parent=23 // pred_region
          %p355 = scmp.lt.s32.totalorder %s22, 1
          %s356 = scalar_select %p355, %s22, 1
          %p357 = scmp.lt.s32.totalorder %s23, 3
          %s358 = scalar_select %p357, %s23, 3
          %p359 = scmp.lt.s32.totalorder %s24, 7
          %s360 = scalar_select %p359, %s24, 7
          %s361 = smul.addr %s358, 8
          %s362 = sadd.s32 %s360, %s361
          %s363 = smul.addr %s356, 32
          %s364 = sadd.s32 %s362, %s363
          %s365 = smul.addr %s364, 8
          %s366 = scalar_lea.vmem %s3, %s365
        $region40: #{temporal_resnet_block.11} parent=23 // pred_fallthru
          _
      $region24: #{temporal_resnet_block.11} parent=5 // pred_fallthru
        _
      %p367 = scmp.le.s32.totalorder 1, %s15
      %p368 = scmp.lt.s32.totalorder %s15, 65
      %p369 = pnand %p367, %p368
      %p370 = pneg %p369
      // Predicated region
      $region41: #{temporal_resnet_block.11} parent=5 // pred_check
        _
      $region42: #{temporal_resnet_block.11} parent=5 // pred_check_branch
        %372 = sbr.rel (%p369) target = $region44
      $region43: #{temporal_resnet_block.11} parent=5 // pred_region
        %s373 = ssub.s32 %s15, 1
        %s374 = sadd.s32 %s26, 4294967295
        %p375 = scmp.gt.s32.totalorder %s374, 0
        %s376 = scalar_select %p375, %s374, 0
        %p377 = scmp.lt.s32.totalorder %s376, 3
        %s378 = scalar_select %p377, %s376, 3
        %p379 = scmp.lt.s32.totalorder %s25, 1
        %s380 = scalar_select %p379, %s25, 1
        %p381 = scmp.lt.s32.totalorder %s378, 3
        %s382 = scalar_select %p381, %s378, 3
        %p383 = scmp.lt.s32.totalorder %s27, 7
        %s384 = scalar_select %p383, %s27, 7
        %s385 = smul.addr %s382, 8
        %s386 = sadd.s32 %s384, %s385
        %s387 = smul.addr %s380, 32
        %s388 = sadd.s32 %s386, %s387
        %s389 = smul.addr %s388, 4
        %s390 = scalar_lea.vmem %s0, %s389
        %p391 = pneg %p74
        %p392 = pneg %p71
        %p393 = scmp.gt.s32.totalorder %s26, 0
        %s394 = scalar_select %p393, %s26, 0
        %p395 = scmp.lt.s32.totalorder %s394, 3
        %s396 = scalar_select %p395, %s394, 3
        %p397 = scmp.lt.s32.totalorder %s25, 1
        %s398 = scalar_select %p397, %s25, 1
        %p399 = scmp.lt.s32.totalorder %s396, 3
        %s400 = scalar_select %p399, %s396, 3
        %p401 = scmp.lt.s32.totalorder %s27, 7
        %s402 = scalar_select %p401, %s27, 7
        %s403 = smul.addr %s400, 8
        %s404 = sadd.s32 %s402, %s403
        %s405 = smul.addr %s398, 32
        %s406 = sadd.s32 %s404, %s405
        %s407 = smul.addr %s406, 4
        %s408 = scalar_lea.vmem %s1, %s407
        %p409 = pneg %p112
        %p410 = pneg %p109
        %s411 = sadd.s32 %s26, 1
        %p412 = scmp.gt.s32.totalorder %s411, 0
        %s413 = scalar_select %p412, %s411, 0
        %p414 = scmp.lt.s32.totalorder %s413, 3
        %s415 = scalar_select %p414, %s413, 3
        %p416 = scmp.lt.s32.totalorder %s25, 1
        %s417 = scalar_select %p416, %s25, 1
        %p418 = scmp.lt.s32.totalorder %s415, 3
        %s419 = scalar_select %p418, %s415, 3
        %p420 = scmp.lt.s32.totalorder %s27, 7
        %s421 = scalar_select %p420, %s27, 7
        %s422 = smul.addr %s419, 8
        %s423 = sadd.s32 %s421, %s422
        %s424 = smul.addr %s417, 32
        %s425 = sadd.s32 %s423, %s424
        %s426 = smul.addr %s425, 4
        %s427 = scalar_lea.vmem %s2, %s426
        %p428 = pneg %p152
        %p429 = pneg %p149
        %p430 = scmp.lt.s32.totalorder %s25, 1
        %s431 = scalar_select %p430, %s25, 1
        %p432 = scmp.lt.s32.totalorder %s26, 3
        %s433 = scalar_select %p432, %s26, 3
        %p434 = scmp.lt.s32.totalorder %s27, 7
        %s435 = scalar_select %p434, %s27, 7
        %s436 = smul.addr %s433, 8
        %s437 = sadd.s32 %s435, %s436
        %s438 = smul.addr %s431, 32
        %s439 = sadd.s32 %s437, %s438
        %s440 = smul.addr %s439, 8
        %s441 = scalar_lea.vmem %s3, %s440
        %p442 = pneg %p182
        %p443 = pneg %p179
        %p444 = pneg %p203
        %p445 = pneg %p200
        %p446 = pneg %p224
        %p447 = pneg %p221
        %p448 = pneg %p254
        %p449 = pneg %p251
        %s450 = sand.u32 %s241, 1
        %s451 = scalar_lea.sflag [#allocation3], %s450
        %s452 = sand.u32 %s241, 1
        %s453 = smul.addr %s452, 8
        %s454 = scalar_lea.vmem [#allocation2], %s453
        %s455 = sadd.s32 %s26, 4294967295
        %p456 = scmp.gt.s32.totalorder %s455, 0
        %s457 = scalar_select %p456, %s455, 0
        %p458 = scmp.lt.s32.totalorder %s457, 3
        %s459 = scalar_select %p458, %s457, 3
        %p460 = scmp.lt.s32.totalorder %s25, 1
        %s461 = scalar_select %p460, %s25, 1
        %p462 = scmp.lt.s32.totalorder %s459, 3
        %s463 = scalar_select %p462, %s459, 3
        %p464 = scmp.lt.s32.totalorder %s27, 7
        %s465 = scalar_select %p464, %s27, 7
        %s466 = smul.addr %s463, 8
        %s467 = sadd.s32 %s465, %s466
        %s468 = smul.addr %s461, 32
        %s469 = sadd.s32 %s467, %s468
        %s470 = smul.addr %s469, 4
        %s471 = scalar_lea.vmem %s0, %s470
        %s472 = sadd.s32 %s26, 4294967295
        %p473 = scmp.gt.s32.totalorder %s472, 0
        %s474 = scalar_select %p473, %s472, 0
        %p475 = scmp.lt.s32.totalorder %s474, 3
        %s476 = scalar_select %p475, %s474, 3
        %p477 = scmp.gt.s32.totalorder %s26, 0
        %s478 = scalar_select %p477, %s26, 0
        %p479 = scmp.lt.s32.totalorder %s478, 3
        %s480 = scalar_select %p479, %s478, 3
        %p481 = scmp.lt.s32.totalorder %s25, 1
        %s482 = scalar_select %p481, %s25, 1
        %p483 = scmp.lt.s32.totalorder %s480, 3
        %s484 = scalar_select %p483, %s480, 3
        %p485 = scmp.lt.s32.totalorder %s27, 7
        %s486 = scalar_select %p485, %s27, 7
        %s487 = smul.addr %s484, 8
        %s488 = sadd.s32 %s486, %s487
        %s489 = smul.addr %s482, 32
        %s490 = sadd.s32 %s488, %s489
        %s491 = smul.addr %s490, 4
        %s492 = scalar_lea.vmem %s1, %s491
        %p493 = scmp.gt.s32.totalorder %s26, 0
        %s494 = scalar_select %p493, %s26, 0
        %p495 = scmp.lt.s32.totalorder %s494, 3
        %s496 = scalar_select %p495, %s494, 3
        %s497 = sadd.s32 %s26, 1
        %p498 = scmp.gt.s32.totalorder %s497, 0
        %s499 = scalar_select %p498, %s497, 0
        %p500 = scmp.lt.s32.totalorder %s499, 3
        %s501 = scalar_select %p500, %s499, 3
        %p502 = scmp.lt.s32.totalorder %s25, 1
        %s503 = scalar_select %p502, %s25, 1
        %p504 = scmp.lt.s32.totalorder %s501, 3
        %s505 = scalar_select %p504, %s501, 3
        %p506 = scmp.lt.s32.totalorder %s27, 7
        %s507 = scalar_select %p506, %s27, 7
        %s508 = smul.addr %s505, 8
        %s509 = sadd.s32 %s507, %s508
        %s510 = smul.addr %s503, 32
        %s511 = sadd.s32 %s509, %s510
        %s512 = smul.addr %s511, 4
        %s513 = scalar_lea.vmem %s2, %s512
        %s514 = sadd.s32 %s26, 1
        %p515 = scmp.gt.s32.totalorder %s514, 0
        %s516 = scalar_select %p515, %s514, 0
        %p517 = scmp.lt.s32.totalorder %s516, 3
        %s518 = scalar_select %p517, %s516, 3
        %p519 = scmp.lt.s32.totalorder %s25, 1
        %s520 = scalar_select %p519, %s25, 1
        %p521 = scmp.lt.s32.totalorder %s26, 3
        %s522 = scalar_select %p521, %s26, 3
        %p523 = scmp.lt.s32.totalorder %s27, 7
        %s524 = scalar_select %p523, %s27, 7
        %s525 = smul.addr %s522, 8
        %s526 = sadd.s32 %s524, %s525
        %s527 = smul.addr %s520, 32
        %s528 = sadd.s32 %s526, %s527
        %s529 = smul.addr %s528, 8
        %s530 = scalar_lea.vmem %s3, %s529
        %v532 = vld [vmem:[%s471] sm:$0xf]
        %v533 = vld [vmem:[%s492] sm:$0xf]
        %v534 = vld [vmem:[%s513] sm:$0xf]
        %v535 = vld [vmem:[%s4] sm:$0xf]
        %v536 = vld [vmem:[%s4 + $0x4] sm:$0xf]
        %v537 = vld [vmem:[%s4 + $0x8] sm:$0xf]
        %v538 = vld [vmem:[%s4 + $0xc] sm:$0xf]
        %v539 = vld [vmem:[%s4 + $0x10] sm:$0xf]
        %v540 = vld [vmem:[%s4 + $0x14] sm:$0xf]
        %v541 = vld [vmem:[%s4 + $0x18] sm:$0xf]
        %v542 = vld [vmem:[%s4 + $0x1c] sm:$0xf]
        %v543 = vld [vmem:[%s4 + $0x20] sm:$0xf]
        %v544 = vld [vmem:[%s4 + $0x24] sm:$0xf]
        %v545 = vld [vmem:[%s4 + $0x28] sm:$0xf]
        %v546 = vld [vmem:[%s4 + $0x2c] sm:$0xf]
        %v547 = vld [vmem:[%s4 + $0x30] sm:$0xf]
        %v548 = vld [vmem:[%s4 + $0x34] sm:$0xf]
        %v549 = vld [vmem:[%s4 + $0x38] sm:$0xf]
        %v550 = vld [vmem:[%s4 + $0x3c] sm:$0xf]
        %v551 = vld [vmem:[%s4 + $0x40] sm:$0xf]
        %v552 = vld [vmem:[%s4 + $0x44] sm:$0xf]
        %v553 = vld [vmem:[%s4 + $0x48] sm:$0xf]
        %v554 = vld [vmem:[%s4 + $0x4c] sm:$0xf]
        %v555 = vld [vmem:[%s4 + $0x50] sm:$0xf]
        %v556 = vld [vmem:[%s4 + $0x54] sm:$0xf]
        %v557 = vld [vmem:[%s4 + $0x58] sm:$0xf]
        %v558 = vld [vmem:[%s4 + $0x5c] sm:$0xf]
        %v559 = vld [vmem:[%s4 + $0x60] sm:$0xf]
        %v560 = vld [vmem:[%s4 + $0x64] sm:$0xf]
        %v561 = vld [vmem:[%s4 + $0x68] sm:$0xf]
        %v562 = vld [vmem:[%s4 + $0x6c] sm:$0xf]
        %v563 = vld [vmem:[%s4 + $0x70] sm:$0xf]
        %v564 = vld [vmem:[%s4 + $0x74] sm:$0xf]
        %v565 = vld [vmem:[%s4 + $0x78] sm:$0xf]
        %v566 = vld [vmem:[%s4 + $0x7c] sm:$0xf]
        %v567 = vld [vmem:[%s4 + $0x80] sm:$0xf]
        %v568 = vld [vmem:[%s4 + $0x84] sm:$0xf]
        %v569 = vld [vmem:[%s4 + $0x88] sm:$0xf]
        %v570 = vld [vmem:[%s4 + $0x8c] sm:$0xf]
        %v571 = vld [vmem:[%s4 + $0x90] sm:$0xf]
        %v572 = vld [vmem:[%s4 + $0x94] sm:$0xf]
        %v573 = vld [vmem:[%s4 + $0x98] sm:$0xf]
        %v574 = vld [vmem:[%s4 + $0x9c] sm:$0xf]
        %v575 = vld [vmem:[%s4 + $0xa0] sm:$0xf]
        %v576 = vld [vmem:[%s4 + $0xa4] sm:$0xf]
        %v577 = vld [vmem:[%s4 + $0xa8] sm:$0xf]
        %v578 = vld [vmem:[%s4 + $0xac] sm:$0xf]
        %v579 = vld [vmem:[%s4 + $0xb0] sm:$0xf]
        %v580 = vld [vmem:[%s4 + $0xb4] sm:$0xf]
        %v581 = vld [vmem:[%s4 + $0xb8] sm:$0xf]
        %v582 = vld [vmem:[%s4 + $0xbc] sm:$0xf]
        %v583 = vld [vmem:[%s5] sm:$0x1]
        %v585 = vlaneseq
        %v586 = vshrl.u32 %v585, 7
        %v587 = vsub.s32 0, %v586
        %v588 = vrot.slane %v583, %v587
        %v638 = vunpack.c.l.b16 %v535
        %v639 = vunpack.c.l.b16 %v536
        %v640 = vunpack.c.l.b16 %v537
        %v641 = vunpack.c.l.b16 %v538
        %v642 = vunpack.c.l.b16 %v539
        %v643 = vunpack.c.l.b16 %v540
        %v644 = vunpack.c.l.b16 %v541
        %v645 = vunpack.c.l.b16 %v542
        %v646 = vunpack.c.l.b16 %v543
        %v647 = vunpack.c.l.b16 %v544
        %v648 = vunpack.c.l.b16 %v545
        %v649 = vunpack.c.l.b16 %v546
        %v650 = vunpack.c.l.b16 %v547
        %v651 = vunpack.c.l.b16 %v548
        %v652 = vunpack.c.l.b16 %v549
        %v653 = vunpack.c.l.b16 %v550
        %v654 = vunpack.c.l.b16 %v551
        %v655 = vunpack.c.l.b16 %v552
        %v656 = vunpack.c.l.b16 %v553
        %v657 = vunpack.c.l.b16 %v554
        %v658 = vunpack.c.l.b16 %v555
        %v659 = vunpack.c.l.b16 %v556
        %v660 = vunpack.c.l.b16 %v557
        %v661 = vunpack.c.l.b16 %v558
        %v662 = vunpack.c.l.b16 %v559
        %v663 = vunpack.c.l.b16 %v560
        %v664 = vunpack.c.l.b16 %v561
        %v665 = vunpack.c.l.b16 %v562
        %v666 = vunpack.c.l.b16 %v563
        %v667 = vunpack.c.l.b16 %v564
        %v668 = vunpack.c.l.b16 %v565
        %v669 = vunpack.c.l.b16 %v566
        %v670 = vunpack.c.l.b16 %v567
        %v671 = vunpack.c.l.b16 %v568
        %v672 = vunpack.c.l.b16 %v569
        %v673 = vunpack.c.l.b16 %v570
        %v674 = vunpack.c.l.b16 %v571
        %v675 = vunpack.c.l.b16 %v572
        %v676 = vunpack.c.l.b16 %v573
        %v677 = vunpack.c.l.b16 %v574
        %v678 = vunpack.c.l.b16 %v575
        %v679 = vunpack.c.l.b16 %v576
        %v680 = vunpack.c.l.b16 %v577
        %v681 = vunpack.c.l.b16 %v578
        %v682 = vunpack.c.l.b16 %v579
        %v683 = vunpack.c.l.b16 %v580
        %v684 = vunpack.c.l.b16 %v581
        %v685 = vunpack.c.l.b16 %v582
        %v686 = vpack.c.b16 %v639, %v638
        %v687 = vpack.c.b16 %v641, %v640
        %v688 = vpack.c.b16 %v643, %v642
        %v689 = vpack.c.b16 %v645, %v644
        %v690 = vpack.c.b16 %v647, %v646
        %v691 = vpack.c.b16 %v649, %v648
        %v692 = vpack.c.b16 %v651, %v650
        %v693 = vpack.c.b16 %v653, %v652
        %v694 = vpack.c.b16 %v655, %v654
        %v695 = vpack.c.b16 %v657, %v656
        %v696 = vpack.c.b16 %v659, %v658
        %v697 = vpack.c.b16 %v661, %v660
        %v698 = vpack.c.b16 %v663, %v662
        %v699 = vpack.c.b16 %v665, %v664
        %v700 = vpack.c.b16 %v667, %v666
        %v701 = vpack.c.b16 %v669, %v668
        %v702 = vpack.c.b16 %v671, %v670
        %v703 = vpack.c.b16 %v673, %v672
        %v704 = vpack.c.b16 %v675, %v674
        %v705 = vpack.c.b16 %v677, %v676
        %v706 = vpack.c.b16 %v679, %v678
        %v707 = vpack.c.b16 %v681, %v680
        %v708 = vpack.c.b16 %v683, %v682
        %v709 = vpack.c.b16 %v685, %v684
        %734 = vmatprep.subr.bf16.mxu0 0
        %735 = vmatpush1.bf16.msra.mxu0 %v686
        %736 = vmatprep.subr.bf16.mxu0 0
        %737 = vmatpush1.bf16.msra.mxu0 %v687
        %738 = vmatprep.subr.bf16.mxu0 0
        %739 = vmatpush1.bf16.msra.mxu0 %v688
        %740 = vmatprep.subr.bf16.mxu0 0
        %741 = vmatpush1.bf16.msra.mxu0 %v689
        %742 = vmatprep.subr.bf16.mxu0 0
        %743 = vmatpush1.bf16.msra.mxu0 %v690
        %744 = vmatprep.subr.bf16.mxu0 0
        %745 = vmatpush1.bf16.msra.mxu0 %v691
        %746 = vmatprep.subr.bf16.mxu0 0
        %747 = vmatpush1.bf16.msra.mxu0 %v692
        %748 = vmatprep.subr.bf16.mxu0 0
        %749 = vmatpush1.bf16.msra.mxu0 %v693
        %750 = vmatprep.subr.bf16.mxu0 0
        %751 = vmatpush1.bf16.msra.mxu0 %v694
        %752 = vmatprep.subr.bf16.mxu0 0
        %753 = vmatpush1.bf16.msra.mxu0 %v695
        %754 = vmatprep.subr.bf16.mxu0 0
        %755 = vmatpush1.bf16.msra.mxu0 %v696
        %756 = vmatprep.subr.bf16.mxu0 0
        %757 = vmatpush1.bf16.msra.mxu0 %v697
        %758 = vmatprep.subr.bf16.mxu0 0
        %759 = vmatpush1.bf16.msra.mxu0 %v698
        %760 = vmatprep.subr.bf16.mxu0 0
        %761 = vmatpush1.bf16.msra.mxu0 %v699
        %762 = vmatprep.subr.bf16.mxu0 0
        %763 = vmatpush1.bf16.msra.mxu0 %v700
        %764 = vmatprep.subr.bf16.mxu0 0
        %765 = vmatpush1.bf16.msra.mxu0 %v701
        %766 = vmatprep.mubr.bf16.mxu0 %v533
        %767 = vmatmul.mubr.bf16.gmra.mrb[0].mxu0 %v532
        %v768 = vpop.f32.mrb[0].mxu0
        %v769 = vadd.f32 %v588, %v768
        %v770 = vpop.f32.mrb[0].mxu0
        %v771 = vpop.f32.mrb[0].mxu0
        %v772 = vpop.f32.mrb[0].mxu0
        %773 = vdwg.mxu0
        %774 = vmatprep.subr.bf16.mxu0 0
        %775 = vmatpush1.bf16.msra.mxu0 %v702
        %776 = vmatprep.subr.bf16.mxu0 0
        %777 = vmatpush1.bf16.msra.mxu0 %v703
        %778 = vmatprep.subr.bf16.mxu0 0
        %779 = vmatpush1.bf16.msra.mxu0 %v704
        %780 = vmatprep.subr.bf16.mxu0 0
        %781 = vmatpush1.bf16.msra.mxu0 %v705
        %782 = vmatprep.subr.bf16.mxu0 0
        %783 = vmatpush1.bf16.msra.mxu0 %v706
        %784 = vmatprep.subr.bf16.mxu0 0
        %785 = vmatpush1.bf16.msra.mxu0 %v707
        %786 = vmatprep.subr.bf16.mxu0 0
        %787 = vmatpush1.bf16.msra.mxu0 %v708
        %788 = vmatprep.subr.bf16.mxu0 0
        %789 = vmatpush1.bf16.msra.mxu0 %v709
        %790 = vmatprep.subr.bf16.mxu0 0
        %791 = vmatpush1.bf16.msra.mxu0 0
        %792 = vmatprep.subr.bf16.mxu0 0
        %793 = vmatpush1.bf16.msra.mxu0 0
        %794 = vmatprep.subr.bf16.mxu0 0
        %795 = vmatpush1.bf16.msra.mxu0 0
        %796 = vmatprep.subr.bf16.mxu0 0
        %797 = vmatpush1.bf16.msra.mxu0 0
        %798 = vmatprep.subr.bf16.mxu0 0
        %799 = vmatpush1.bf16.msra.mxu0 0
        %800 = vmatprep.subr.bf16.mxu0 0
        %801 = vmatpush1.bf16.msra.mxu0 0
        %802 = vmatprep.subr.bf16.mxu0 0
        %803 = vmatpush1.bf16.msra.mxu0 0
        %804 = vmatprep.subr.bf16.mxu0 0
        %805 = vmatpush1.bf16.msra.mxu0 0
        %806 = vmatprep.mubr.bf16.mxu0 0
        %807 = vmatmul.mubr.bf16.gmra.mrb[0].mxu0 %v534
        %v808 = vpop.f32.mrb[0].mxu0
        %v809 = vadd.f32 %v769, %v808
        %v810 = vpop.f32.mrb[0].mxu0
        %v811 = vpop.f32.mrb[0].mxu0
        %v812 = vpop.f32.mrb[0].mxu0
        %813 = vdwg.mxu0
        %v814 = vld [vmem:[%s530] sm:$0xff]
        %v815 = vadd.f32 %v809, %v814
        %816 = vst [vmem:[%s454] sm:$0xff] %v815
        %s817 = sand.u32 %s241, 1
        %s818 = scalar_lea.sflag [#allocation3], %s817
        %s819 = sand.u32 %s241, 1
        %s820 = smul.addr %s819, 8
        %s821 = scalar_lea.vmem [#allocation2], %s820
        // Predicated region
        $region45: #{temporal_resnet_block.11} parent=43 // pred_check
          %p822 = pneg %p251
        $region46: #{temporal_resnet_block.11} parent=43 // pred_check_branch
          %824 = sbr.rel (%p822) target = $region48
        $region47: #{temporal_resnet_block.11} parent=43 // pred_region
          %s826 = ssub.s32 128, 128
          %827 = vsyncadd %s818, %s826
          %s828 = smul.addr %s26, 8
          %s829 = sadd.s32 %s27, %s828
          %s830 = smul.addr %s25, 32
          %s831 = sadd.s32 %s829, %s830
          %s832 = smul.addr %s831, 128
          %s833 = scalar_lea.hbm %s6, %s832
          %s835 = sshll.u32 %s821, 4
          %s836 = int_to_ptr.vmem [resolvable:$true] %s835
          %838 = dma.vmem_to_hbm [thread:$0]  %s836, 128, %s833, %s818
        $region48: #{temporal_resnet_block.11} parent=43 // pred_fallthru
          _
      $region44: #{temporal_resnet_block.11} parent=5 // pred_fallthru
        _
      %p839 = scmp.le.s32.totalorder 2, %s15
      // Predicated region
      $region49: #{temporal_resnet_block.11} parent=5 // pred_check
        %p840 = pneg %p839
      $region50: #{temporal_resnet_block.11} parent=5 // pred_check_branch
        %842 = sbr.rel (%p840) target = $region52
      $region51: #{temporal_resnet_block.11} parent=5 // pred_region
        %s843 = ssub.s32 %s15, 2
        // Predicated region
        $region53: #{temporal_resnet_block.11} parent=51 // pred_check
          %p844 = pneg %p257
        $region54: #{temporal_resnet_block.11} parent=51 // pred_check_branch
          %846 = sbr.rel (%p844) target = $region56
        $region55: #{temporal_resnet_block.11} parent=51 // pred_region
          %s847 = sand.u32 %s242, 1
          %s848 = scalar_lea.sflag [#allocation3], %s847
          %s849 = sand.u32 %s242, 1
          %s850 = smul.addr %s849, 8
          %s851 = scalar_lea.vmem [#allocation2], %s850
          %852 = dma.done %s848, 128
        $region56: #{temporal_resnet_block.11} parent=51 // pred_fallthru
          _
      $region52: #{temporal_resnet_block.11} parent=5 // pred_fallthru
        _
    $region6: #{temporal_resnet_block.11} parent=1 // loop_footer
      %s19 = sadd.s32 1, %s15
    $region7: #{temporal_resnet_block.11} parent=1 // loop_footer_branch
      %14 = sbr.rel target = $region3
    $region8: #{temporal_resnet_block.11} parent=1 // loop_exit
      _
    %853 = vsyncpa [#allocation3], 1
    %s854 = scalar_lea.sflag [#allocation3], 1
    %855 = vsyncpa %s854, 1

// kernel: temporal_resnet_block.10
$region0: #{temporal_resnet_block.10}
  #allocation0 [shape = 'u32[]', space=smem, size = 0x4, offset = 0x4, fixed_abs, tag = 'smem constant byte address 0x4 - core index']
  #allocation1 [shape = 'u32[144,128]{1,0:T(1,128)}', space=vmem, size = 0x12000, scoped, tag = 'internal scratch']
  %s0 = inlined_call_operand.vmem [shape: bf16[2,4,8,8,128], index: 0, kind: input, shape index: {}, may-alias: {0,1,2}]
  %s1 = inlined_call_operand.vmem [shape: bf16[2,4,8,8,128], index: 1, kind: input, shape index: {}, may-alias: {0,1,2}]
  %s2 = inlined_call_operand.vmem [shape: bf16[2,4,8,8,128], index: 2, kind: input, shape index: {}, may-alias: {0,1,2}]
  %s3 = inlined_call_operand.vmem [shape: f32[2,4,1,128], index: 3, kind: input, shape index: {}]
  %s4 = inlined_call_operand.vmem [shape: f32[2,4,1,128], index: 4, kind: input, shape index: {}]
  %s5 = inlined_call_operand.vmem [shape: bf16[1152,128], index: 5, kind: input, shape index: {}]
  %s6 = inlined_call_operand.vmem [shape: f32[1,128], index: 6, kind: input, shape index: {}]
  %s7 = inlined_call_operand.vmem [shape: bf16[2,4,8,8,128], index: 7, kind: output, shape index: {}]
  %s8 = sld [smem:[#allocation0]]
  $region61: #{temporal_resnet_block.10} parent=0
    _
  %s10 = ssub.s32 1, %s8
  %s11 = scalar_select 0, %s10, %s8
  loop: start=0, step=1, limit=66
  $region2: #{temporal_resnet_block.10} parent=0 // loop_pre_header
    _
  $region3: #{temporal_resnet_block.10} parent=0 // loop_header
    %s13 = sphi 0, %s17
    %p14 = scmp.ge.s32.totalorder %s13, 66
    %s20 = sphi 0, %s39
    %s21 = sphi 0, %s35
    %s22 = sphi 0, %s31
    %s23 = sphi 0, %s20
    %s24 = sphi 0, %s21
    %s25 = sphi 0, %s22
    %s26 = sphi 0, %s23
    %s27 = sphi 0, %s24
    %s28 = sphi 0, %s25
    %s56 = sphi 0, %s58
    %s59 = sphi 0, %s56
    %s60 = sphi 0, %s59
    %s76 = sphi 0, %s60
    %s94 = sphi 0, %s96
    %s97 = sphi 0, %s94
    %s98 = sphi 0, %s97
    %s114 = sphi 0, %s98
    %s134 = sphi 0, %s136
    %s137 = sphi 0, %s134
    %s138 = sphi 0, %s137
    %s154 = sphi 0, %s138
    %s162 = sphi 0, %s164
    %s165 = sphi 0, %s162
    %s166 = sphi 0, %s165
    %s182 = sphi 0, %s166
    %s190 = sphi 0, %s192
    %s193 = sphi 0, %s190
    %s194 = sphi 0, %s193
    %s210 = sphi 0, %s194
    %s214 = sphi 0, %s214
    %s216 = sphi 0, %s214
    %s217 = sphi 0, %s216
    %s231 = sphi 0, %s217
    %s235 = sphi 0, %s235
    %s237 = sphi 0, %s235
    %s238 = sphi 0, %s237
    %s252 = sphi 0, %s238
    %s262 = sphi 0, %s264
    %s265 = sphi 0, %s262
    %s266 = sphi 0, %s265
    %s282 = sphi 0, %s266
  $region4: #{temporal_resnet_block.10} parent=0 // loop_header_branch
    %16 = sbr.rel (%p14) target = $region8
  $region5: #{temporal_resnet_block.10} parent=0 // loop_body
    %s18 = ssub.s32 %s13, 1
    %s19 = ssub.s32 %s13, 2
    %s29 = sadd.s32 1, %s22
    %p30 = scmp.ge.s32.totalorder %s29, 8
    %s31 = scalar_select %p30, 0, %s29
    %s32 = sadd.s32 1, %s21
    %s33 = scalar_select %p30, %s32, %s21
    %p34 = scmp.ge.s32.totalorder %s33, 4
    %s35 = scalar_select %p34, 0, %s33
    %s36 = sadd.s32 1, %s20
    %s37 = scalar_select %p34, %s36, %s20
    %p38 = scmp.ge.s32.totalorder %s37, 2
    %s39 = scalar_select %p38, 0, %s37
    %s40 = sadd.s32 %s22, 4294967295
    %p41 = scmp.gt.s32.totalorder %s40, 0
    %s42 = scalar_select %p41, %s40, 0
    %p43 = scmp.lt.s32.totalorder %s42, 7
    %s44 = scalar_select %p43, %s42, 7
    %s45 = sadd.s32 %s31, 4294967295
    %p46 = scmp.gt.s32.totalorder %s45, 0
    %s47 = scalar_select %p46, %s45, 0
    %p48 = scmp.lt.s32.totalorder %s47, 7
    %s49 = scalar_select %p48, %s47, 7
    %s50 = ssub.s32 %s20, %s39
    %s51 = ssub.s32 %s21, %s35
    %s52 = sor.u32 %s50, %s51
    %s53 = ssub.s32 %s44, %s49
    %s54 = sor.u32 %s52, %s53
    %p55 = scmp.eq.s32.totalorder %s54, 0
    %s57 = sadd.s32 %s56, 1
    %s58 = scalar_select %p55, %s56, %s57
    %p61 = pneg %p55
    %p62 = scmp.eq.s32.totalorder %s13, 63
    %p63 = por %p61, %p62
    %p64 = scmp.ne.s32.totalorder %s56, %s59
    %p65 = scmp.eq.s32.totalorder %s13, 0
    %p66 = por %p64, %p65
    %p67 = scmp.ne.s32.totalorder %s56, %s59
    %p68 = scmp.eq.s32.totalorder %s18, 63
    %p69 = por %p67, %p68
    %p70 = scmp.ne.s32.totalorder %s59, %s60
    %p71 = scmp.eq.s32.totalorder %s18, 0
    %p72 = por %p70, %p71
    %p73 = scmp.ne.s32.totalorder %s59, %s60
    %p74 = scmp.eq.s32.totalorder %s19, 63
    %p75 = por %p73, %p74
    %p77 = scmp.ne.s32.totalorder %s60, %s76
    %p78 = scmp.eq.s32.totalorder %s19, 0
    %p79 = por %p77, %p78
    %p80 = scmp.gt.s32.totalorder %s22, 0
    %s81 = scalar_select %p80, %s22, 0
    %p82 = scmp.lt.s32.totalorder %s81, 7
    %s83 = scalar_select %p82, %s81, 7
    %p84 = scmp.gt.s32.totalorder %s31, 0
    %s85 = scalar_select %p84, %s31, 0
    %p86 = scmp.lt.s32.totalorder %s85, 7
    %s87 = scalar_select %p86, %s85, 7
    %s88 = ssub.s32 %s20, %s39
    %s89 = ssub.s32 %s21, %s35
    %s90 = sor.u32 %s88, %s89
    %s91 = ssub.s32 %s83, %s87
    %s92 = sor.u32 %s90, %s91
    %p93 = scmp.eq.s32.totalorder %s92, 0
    %s95 = sadd.s32 %s94, 1
    %s96 = scalar_select %p93, %s94, %s95
    %p99 = pneg %p93
    %p100 = scmp.eq.s32.totalorder %s13, 63
    %p101 = por %p99, %p100
    %p102 = scmp.ne.s32.totalorder %s94, %s97
    %p103 = scmp.eq.s32.totalorder %s13, 0
    %p104 = por %p102, %p103
    %p105 = scmp.ne.s32.totalorder %s94, %s97
    %p106 = scmp.eq.s32.totalorder %s18, 63
    %p107 = por %p105, %p106
    %p108 = scmp.ne.s32.totalorder %s97, %s98
    %p109 = scmp.eq.s32.totalorder %s18, 0
    %p110 = por %p108, %p109
    %p111 = scmp.ne.s32.totalorder %s97, %s98
    %p112 = scmp.eq.s32.totalorder %s19, 63
    %p113 = por %p111, %p112
    %p115 = scmp.ne.s32.totalorder %s98, %s114
    %p116 = scmp.eq.s32.totalorder %s19, 0
    %p117 = por %p115, %p116
    %s118 = sadd.s32 %s22, 1
    %p119 = scmp.gt.s32.totalorder %s118, 0
    %s120 = scalar_select %p119, %s118, 0
    %p121 = scmp.lt.s32.totalorder %s120, 7
    %s122 = scalar_select %p121, %s120, 7
    %s123 = sadd.s32 %s31, 1
    %p124 = scmp.gt.s32.totalorder %s123, 0
    %s125 = scalar_select %p124, %s123, 0
    %p126 = scmp.lt.s32.totalorder %s125, 7
    %s127 = scalar_select %p126, %s125, 7
    %s128 = ssub.s32 %s20, %s39
    %s129 = ssub.s32 %s21, %s35
    %s130 = sor.u32 %s128, %s129
    %s131 = ssub.s32 %s122, %s127
    %s132 = sor.u32 %s130, %s131
    %p133 = scmp.eq.s32.totalorder %s132, 0
    %s135 = sadd.s32 %s134, 1
    %s136 = scalar_select %p133, %s134, %s135
    %p139 = pneg %p133
    %p140 = scmp.eq.s32.totalorder %s13, 63
    %p141 = por %p139, %p140
    %p142 = scmp.ne.s32.totalorder %s134, %s137
    %p143 = scmp.eq.s32.totalorder %s13, 0
    %p144 = por %p142, %p143
    %p145 = scmp.ne.s32.totalorder %s134, %s137
    %p146 = scmp.eq.s32.totalorder %s18, 63
    %p147 = por %p145, %p146
    %p148 = scmp.ne.s32.totalorder %s137, %s138
    %p149 = scmp.eq.s32.totalorder %s18, 0
    %p150 = por %p148, %p149
    %p151 = scmp.ne.s32.totalorder %s137, %s138
    %p152 = scmp.eq.s32.totalorder %s19, 63
    %p153 = por %p151, %p152
    %p155 = scmp.ne.s32.totalorder %s138, %s154
    %p156 = scmp.eq.s32.totalorder %s19, 0
    %p157 = por %p155, %p156
    %s158 = ssub.s32 %s20, %s39
    %s159 = ssub.s32 %s21, %s35
    %s160 = sor.u32 %s158, %s159
    %p161 = scmp.eq.s32.totalorder %s160, 0
    %s163 = sadd.s32 %s162, 1
    %s164 = scalar_select %p161, %s162, %s163
    %p167 = pneg %p161
    %p168 = scmp.eq.s32.totalorder %s13, 63
    %p169 = por %p167, %p168
    %p170 = scmp.ne.s32.totalorder %s162, %s165
    %p171 = scmp.eq.s32.totalorder %s13, 0
    %p172 = por %p170, %p171
    %p173 = scmp.ne.s32.totalorder %s162, %s165
    %p174 = scmp.eq.s32.totalorder %s18, 63
    %p175 = por %p173, %p174
    %p176 = scmp.ne.s32.totalorder %s165, %s166
    %p177 = scmp.eq.s32.totalorder %s18, 0
    %p178 = por %p176, %p177
    %p179 = scmp.ne.s32.totalorder %s165, %s166
    %p180 = scmp.eq.s32.totalorder %s19, 63
    %p181 = por %p179, %p180
    %p183 = scmp.ne.s32.totalorder %s166, %s182
    %p184 = scmp.eq.s32.totalorder %s19, 0
    %p185 = por %p183, %p184
    %s186 = ssub.s32 %s20, %s39
    %s187 = ssub.s32 %s21, %s35
    %s188 = sor.u32 %s186, %s187
    %p189 = scmp.eq.s32.totalorder %s188, 0
    %s191 = sadd.s32 %s190, 1
    %s192 = scalar_select %p189, %s190, %s191
    %p195 = pneg %p189
    %p196 = scmp.eq.s32.totalorder %s13, 63
    %p197 = por %p195, %p196
    %p198 = scmp.ne.s32.totalorder %s190, %s193
    %p199 = scmp.eq.s32.totalorder %s13, 0
    %p200 = por %p198, %p199
    %p201 = scmp.ne.s32.totalorder %s190, %s193
    %p202 = scmp.eq.s32.totalorder %s18, 63
    %p203 = por %p201, %p202
    %p204 = scmp.ne.s32.totalorder %s193, %s194
    %p205 = scmp.eq.s32.totalorder %s18, 0
    %p206 = por %p204, %p205
    %p207 = scmp.ne.s32.totalorder %s193, %s194
    %p208 = scmp.eq.s32.totalorder %s19, 63
    %p209 = por %p207, %p208
    %p211 = scmp.ne.s32.totalorder %s194, %s210
    %p212 = scmp.eq.s32.totalorder %s19, 0
    %p213 = por %p211, %p212
    %s215 = sadd.s32 %s214, 1
    %p218 = scmp.eq.s32.totalorder %s13, 63
    %p219 = scmp.ne.s32.totalorder %s214, %s216
    %p220 = scmp.eq.s32.totalorder %s13, 0
    %p221 = por %p219, %p220
    %p222 = scmp.ne.s32.totalorder %s214, %s216
    %p223 = scmp.eq.s32.totalorder %s18, 63
    %p224 = por %p222, %p223
    %p225 = scmp.ne.s32.totalorder %s216, %s217
    %p226 = scmp.eq.s32.totalorder %s18, 0
    %p227 = por %p225, %p226
    %p228 = scmp.ne.s32.totalorder %s216, %s217
    %p229 = scmp.eq.s32.totalorder %s19, 63
    %p230 = por %p228, %p229
    %p232 = scmp.ne.s32.totalorder %s217, %s231
    %p233 = scmp.eq.s32.totalorder %s19, 0
    %p234 = por %p232, %p233
    %s236 = sadd.s32 %s235, 1
    %p239 = scmp.eq.s32.totalorder %s13, 63
    %p240 = scmp.ne.s32.totalorder %s235, %s237
    %p241 = scmp.eq.s32.totalorder %s13, 0
    %p242 = por %p240, %p241
    %p243 = scmp.ne.s32.totalorder %s235, %s237
    %p244 = scmp.eq.s32.totalorder %s18, 63
    %p245 = por %p243, %p244
    %p246 = scmp.ne.s32.totalorder %s237, %s238
    %p247 = scmp.eq.s32.totalorder %s18, 0
    %p248 = por %p246, %p247
    %p249 = scmp.ne.s32.totalorder %s237, %s238
    %p250 = scmp.eq.s32.totalorder %s19, 63
    %p251 = por %p249, %p250
    %p253 = scmp.ne.s32.totalorder %s238, %s252
    %p254 = scmp.eq.s32.totalorder %s19, 0
    %p255 = por %p253, %p254
    %s256 = ssub.s32 %s20, %s39
    %s257 = ssub.s32 %s21, %s35
    %s258 = sor.u32 %s256, %s257
    %s259 = ssub.s32 %s22, %s31
    %s260 = sor.u32 %s258, %s259
    %p261 = scmp.eq.s32.totalorder %s260, 0
    %s263 = sadd.s32 %s262, 1
    %s264 = scalar_select %p261, %s262, %s263
    %p267 = pneg %p261
    %p268 = scmp.eq.s32.totalorder %s13, 63
    %p269 = por %p267, %p268
    %p270 = scmp.ne.s32.totalorder %s262, %s265
    %p271 = scmp.eq.s32.totalorder %s13, 0
    %p272 = por %p270, %p271
    %p273 = scmp.ne.s32.totalorder %s262, %s265
    %p274 = scmp.eq.s32.totalorder %s18, 63
    %p275 = por %p273, %p274
    %p276 = scmp.ne.s32.totalorder %s265, %s266
    %p277 = scmp.eq.s32.totalorder %s18, 0
    %p278 = por %p276, %p277
    %p279 = scmp.ne.s32.totalorder %s265, %s266
    %p280 = scmp.eq.s32.totalorder %s19, 63
    %p281 = por %p279, %p280
    %p283 = scmp.ne.s32.totalorder %s266, %s282
    %p284 = scmp.eq.s32.totalorder %s19, 0
    %p285 = por %p283, %p284
    %p286 = scmp.le.s32.totalorder 1, %s13
    %p287 = scmp.lt.s32.totalorder %s13, 65
    %p288 = pnand %p286, %p287
    %p289 = pneg %p288
    // Predicated region
    $region9: #{temporal_resnet_block.10} parent=5 // pred_check
      _
    $region10: #{temporal_resnet_block.10} parent=5 // pred_check_branch
      %291 = sbr.rel (%p288) target = $region12
    $region11: #{temporal_resnet_block.10} parent=5 // pred_region
      %s292 = ssub.s32 %s13, 1
      // Predicated region
      $region13: #{temporal_resnet_block.10} parent=11 // pred_check
        %p293 = pneg %p227
      $region14: #{temporal_resnet_block.10} parent=11 // pred_check_branch
        %295 = sbr.rel (%p293) target = $region16
      $region15: #{temporal_resnet_block.10} parent=11 // pred_region
        _
      $region16: #{temporal_resnet_block.10} parent=11 // pred_fallthru
        _
      // Predicated region
      $region17: #{temporal_resnet_block.10} parent=11 // pred_check
        %p296 = pneg %p248
      $region18: #{temporal_resnet_block.10} parent=11 // pred_check_branch
        %298 = sbr.rel (%p296) target = $region20
      $region19: #{temporal_resnet_block.10} parent=11 // pred_region
        _
      $region20: #{temporal_resnet_block.10} parent=11 // pred_fallthru
        _
    $region12: #{temporal_resnet_block.10} parent=5 // pred_fallthru
      _
    %p299 = scmp.lt.s32.totalorder %s13, 64
    // Predicated region
    $region21: #{temporal_resnet_block.10} parent=5 // pred_check
      %p300 = pneg %p299
    $region22: #{temporal_resnet_block.10} parent=5 // pred_check_branch
      %302 = sbr.rel (%p300) target = $region24
    $region23: #{temporal_resnet_block.10} parent=5 // pred_region
      // Predicated region
      $region25: #{temporal_resnet_block.10} parent=23 // pred_check
        %p303 = pneg %p66
      $region26: #{temporal_resnet_block.10} parent=23 // pred_check_branch
        %305 = sbr.rel (%p303) target = $region28
      $region27: #{temporal_resnet_block.10} parent=23 // pred_region
        %s306 = sadd.s32 %s22, 4294967295
        %p307 = scmp.gt.s32.totalorder %s306, 0
        %s308 = scalar_select %p307, %s306, 0
        %p309 = scmp.lt.s32.totalorder %s308, 7
        %s310 = scalar_select %p309, %s308, 7
        %p311 = scmp.lt.s32.totalorder %s20, 1
        %s312 = scalar_select %p311, %s20, 1
        %p313 = scmp.lt.s32.totalorder %s21, 3
        %s314 = scalar_select %p313, %s21, 3
        %p315 = scmp.lt.s32.totalorder %s310, 7
        %s316 = scalar_select %p315, %s310, 7
        %s317 = smul.addr %s314, 8
        %s318 = sadd.s32 %s316, %s317
        %s319 = smul.addr %s312, 32
        %s320 = sadd.s32 %s318, %s319
        %s321 = smul.addr %s320, 4
        %s322 = scalar_lea.vmem %s0, %s321
        %s323 = sadd.s32 %s22, 4294967295
        %p324 = scmp.gt.s32.totalorder %s323, 0
        %s325 = scalar_select %p324, %s323, 0
        %p326 = scmp.lt.s32.totalorder %s325, 7
        %s327 = scalar_select %p326, %s325, 7
      $region28: #{temporal_resnet_block.10} parent=23 // pred_fallthru
        _
      // Predicated region
      $region29: #{temporal_resnet_block.10} parent=23 // pred_check
        %p328 = pneg %p104
      $region30: #{temporal_resnet_block.10} parent=23 // pred_check_branch
        %330 = sbr.rel (%p328) target = $region32
      $region31: #{temporal_resnet_block.10} parent=23 // pred_region
        %p331 = scmp.gt.s32.totalorder %s22, 0
        %s332 = scalar_select %p331, %s22, 0
        %p333 = scmp.lt.s32.totalorder %s332, 7
        %s334 = scalar_select %p333, %s332, 7
        %p335 = scmp.lt.s32.totalorder %s20, 1
        %s336 = scalar_select %p335, %s20, 1
        %p337 = scmp.lt.s32.totalorder %s21, 3
        %s338 = scalar_select %p337, %s21, 3
        %p339 = scmp.lt.s32.totalorder %s334, 7
        %s340 = scalar_select %p339, %s334, 7
        %s341 = smul.addr %s338, 8
        %s342 = sadd.s32 %s340, %s341
        %s343 = smul.addr %s336, 32
        %s344 = sadd.s32 %s342, %s343
        %s345 = smul.addr %s344, 4
        %s346 = scalar_lea.vmem %s1, %s345
        %p347 = scmp.gt.s32.totalorder %s22, 0
        %s348 = scalar_select %p347, %s22, 0
        %p349 = scmp.lt.s32.totalorder %s348, 7
        %s350 = scalar_select %p349, %s348, 7
      $region32: #{temporal_resnet_block.10} parent=23 // pred_fallthru
        _
      // Predicated region
      $region33: #{temporal_resnet_block.10} parent=23 // pred_check
        %p351 = pneg %p144
      $region34: #{temporal_resnet_block.10} parent=23 // pred_check_branch
        %353 = sbr.rel (%p351) target = $region36
      $region35: #{temporal_resnet_block.10} parent=23 // pred_region
        %s354 = sadd.s32 %s22, 1
        %p355 = scmp.gt.s32.totalorder %s354, 0
        %s356 = scalar_select %p355, %s354, 0
        %p357 = scmp.lt.s32.totalorder %s356, 7
        %s358 = scalar_select %p357, %s356, 7
        %p359 = scmp.lt.s32.totalorder %s20, 1
        %s360 = scalar_select %p359, %s20, 1
        %p361 = scmp.lt.s32.totalorder %s21, 3
        %s362 = scalar_select %p361, %s21, 3
        %p363 = scmp.lt.s32.totalorder %s358, 7
        %s364 = scalar_select %p363, %s358, 7
        %s365 = smul.addr %s362, 8
        %s366 = sadd.s32 %s364, %s365
        %s367 = smul.addr %s360, 32
        %s368 = sadd.s32 %s366, %s367
        %s369 = smul.addr %s368, 4
        %s370 = scalar_lea.vmem %s2, %s369
        %s371 = sadd.s32 %s22, 1
        %p372 = scmp.gt.s32.totalorder %s371, 0
        %s373 = scalar_select %p372, %s371, 0
        %p374 = scmp.lt.s32.totalorder %s373, 7
        %s375 = scalar_select %p374, %s373, 7
      $region36: #{temporal_resnet_block.10} parent=23 // pred_fallthru
        _
      // Predicated region
      $region37: #{temporal_resnet_block.10} parent=23 // pred_check
        %p376 = pneg %p172
      $region38: #{temporal_resnet_block.10} parent=23 // pred_check_branch
        %378 = sbr.rel (%p376) target = $region40
      $region39: #{temporal_resnet_block.10} parent=23 // pred_region
        %p379 = scmp.lt.s32.totalorder %s20, 1
        %s380 = scalar_select %p379, %s20, 1
        %p381 = scmp.lt.s32.totalorder %s21, 3
        %s382 = scalar_select %p381, %s21, 3
        %s383 = smul.addr %s380, 4
        %s384 = sadd.s32 %s382, %s383
        %s385 = scalar_lea.vmem %s3, %s384
      $region40: #{temporal_resnet_block.10} parent=23 // pred_fallthru
        _
      // Predicated region
      $region41: #{temporal_resnet_block.10} parent=23 // pred_check
        %p386 = pneg %p200
      $region42: #{temporal_resnet_block.10} parent=23 // pred_check_branch
        %388 = sbr.rel (%p386) target = $region44
      $region43: #{temporal_resnet_block.10} parent=23 // pred_region
        %p389 = scmp.lt.s32.totalorder %s20, 1
        %s390 = scalar_select %p389, %s20, 1
        %p391 = scmp.lt.s32.totalorder %s21, 3
        %s392 = scalar_select %p391, %s21, 3
        %s393 = smul.addr %s390, 4
        %s394 = sadd.s32 %s392, %s393
        %s395 = scalar_lea.vmem %s4, %s394
      $region44: #{temporal_resnet_block.10} parent=23 // pred_fallthru
        _
    $region24: #{temporal_resnet_block.10} parent=5 // pred_fallthru
      _
    %p396 = scmp.le.s32.totalorder 1, %s13
    %p397 = scmp.lt.s32.totalorder %s13, 65
    %p398 = pnand %p396, %p397
    %p399 = pneg %p398
    // Predicated region
    $region45: #{temporal_resnet_block.10} parent=5 // pred_check
      _
    $region46: #{temporal_resnet_block.10} parent=5 // pred_check_branch
      %401 = sbr.rel (%p398) target = $region48
    $region47: #{temporal_resnet_block.10} parent=5 // pred_region
      %s402 = ssub.s32 %s13, 1
      %s403 = sadd.s32 %s25, 4294967295
      %p404 = scmp.gt.s32.totalorder %s403, 0
      %s405 = scalar_select %p404, %s403, 0
      %p406 = scmp.lt.s32.totalorder %s405, 7
      %s407 = scalar_select %p406, %s405, 7
      %p408 = scmp.lt.s32.totalorder %s23, 1
      %s409 = scalar_select %p408, %s23, 1
      %p410 = scmp.lt.s32.totalorder %s24, 3
      %s411 = scalar_select %p410, %s24, 3
      %p412 = scmp.lt.s32.totalorder %s407, 7
      %s413 = scalar_select %p412, %s407, 7
      %s414 = smul.addr %s411, 8
      %s415 = sadd.s32 %s413, %s414
      %s416 = smul.addr %s409, 32
      %s417 = sadd.s32 %s415, %s416
      %s418 = smul.addr %s417, 4
      %s419 = scalar_lea.vmem %s0, %s418
      %p420 = pneg %p72
      %p421 = pneg %p69
      %p422 = scmp.gt.s32.totalorder %s25, 0
      %s423 = scalar_select %p422, %s25, 0
      %p424 = scmp.lt.s32.totalorder %s423, 7
      %s425 = scalar_select %p424, %s423, 7
      %p426 = scmp.lt.s32.totalorder %s23, 1
      %s427 = scalar_select %p426, %s23, 1
      %p428 = scmp.lt.s32.totalorder %s24, 3
      %s429 = scalar_select %p428, %s24, 3
      %p430 = scmp.lt.s32.totalorder %s425, 7
      %s431 = scalar_select %p430, %s425, 7
      %s432 = smul.addr %s429, 8
      %s433 = sadd.s32 %s431, %s432
      %s434 = smul.addr %s427, 32
      %s435 = sadd.s32 %s433, %s434
      %s436 = smul.addr %s435, 4
      %s437 = scalar_lea.vmem %s1, %s436
      %p438 = pneg %p110
      %p439 = pneg %p107
      %s440 = sadd.s32 %s25, 1
      %p441 = scmp.gt.s32.totalorder %s440, 0
      %s442 = scalar_select %p441, %s440, 0
      %p443 = scmp.lt.s32.totalorder %s442, 7
      %s444 = scalar_select %p443, %s442, 7
      %p445 = scmp.lt.s32.totalorder %s23, 1
      %s446 = scalar_select %p445, %s23, 1
      %p447 = scmp.lt.s32.totalorder %s24, 3
      %s448 = scalar_select %p447, %s24, 3
      %p449 = scmp.lt.s32.totalorder %s444, 7
      %s450 = scalar_select %p449, %s444, 7
      %s451 = smul.addr %s448, 8
      %s452 = sadd.s32 %s450, %s451
      %s453 = smul.addr %s446, 32
      %s454 = sadd.s32 %s452, %s453
      %s455 = smul.addr %s454, 4
      %s456 = scalar_lea.vmem %s2, %s455
      %p457 = pneg %p150
      %p458 = pneg %p147
      %p459 = scmp.lt.s32.totalorder %s23, 1
      %s460 = scalar_select %p459, %s23, 1
      %p461 = scmp.lt.s32.totalorder %s24, 3
      %s462 = scalar_select %p461, %s24, 3
      %s463 = smul.addr %s460, 4
      %s464 = sadd.s32 %s462, %s463
      %s465 = scalar_lea.vmem %s3, %s464
      %p466 = pneg %p178
      %p467 = pneg %p175
      %p468 = scmp.lt.s32.totalorder %s23, 1
      %s469 = scalar_select %p468, %s23, 1
      %p470 = scmp.lt.s32.totalorder %s24, 3
      %s471 = scalar_select %p470, %s24, 3
      %s472 = smul.addr %s469, 4
      %s473 = sadd.s32 %s471, %s472
      %s474 = scalar_lea.vmem %s4, %s473
      %p475 = pneg %p206
      %p476 = pneg %p203
      %p477 = pneg %p227
      %p478 = pneg %p224
      %p479 = pneg %p248
      %p480 = pneg %p245
      %p481 = pneg %p278
      %p482 = pneg %p275
      %p483 = scmp.lt.s32.totalorder %s23, 1
      %s484 = scalar_select %p483, %s23, 1
      %p485 = scmp.lt.s32.totalorder %s24, 3
      %s486 = scalar_select %p485, %s24, 3
      %p487 = scmp.lt.s32.totalorder %s25, 7
      %s488 = scalar_select %p487, %s25, 7
      %s489 = smul.addr %s486, 8
      %s490 = sadd.s32 %s488, %s489
      %s491 = smul.addr %s484, 32
      %s492 = sadd.s32 %s490, %s491
      %s493 = smul.addr %s492, 4
      %s494 = scalar_lea.vmem %s7, %s493
      %s495 = sadd.s32 %s25, 4294967295
      %p496 = scmp.gt.s32.totalorder %s495, 0
      %s497 = scalar_select %p496, %s495, 0
      %p498 = scmp.lt.s32.totalorder %s497, 7
      %s499 = scalar_select %p498, %s497, 7
      %p500 = scmp.lt.s32.totalorder %s23, 1
      %s501 = scalar_select %p500, %s23, 1
      %p502 = scmp.lt.s32.totalorder %s24, 3
      %s503 = scalar_select %p502, %s24, 3
      %p504 = scmp.lt.s32.totalorder %s499, 7
      %s505 = scalar_select %p504, %s499, 7
      %s506 = smul.addr %s503, 8
      %s507 = sadd.s32 %s505, %s506
      %s508 = smul.addr %s501, 32
      %s509 = sadd.s32 %s507, %s508
      %s510 = smul.addr %s509, 4
      %s511 = scalar_lea.vmem %s0, %s510
      %s512 = sadd.s32 %s25, 4294967295
      %p513 = scmp.gt.s32.totalorder %s512, 0
      %s514 = scalar_select %p513, %s512, 0
      %p515 = scmp.lt.s32.totalorder %s514, 7
      %s516 = scalar_select %p515, %s514, 7
      %p517 = scmp.gt.s32.totalorder %s25, 0
      %s518 = scalar_select %p517, %s25, 0
      %p519 = scmp.lt.s32.totalorder %s518, 7
      %s520 = scalar_select %p519, %s518, 7
      %p521 = scmp.lt.s32.totalorder %s23, 1
      %s522 = scalar_select %p521, %s23, 1
      %p523 = scmp.lt.s32.totalorder %s24, 3
      %s524 = scalar_select %p523, %s24, 3
      %p525 = scmp.lt.s32.totalorder %s520, 7
      %s526 = scalar_select %p525, %s520, 7
      %s527 = smul.addr %s524, 8
      %s528 = sadd.s32 %s526, %s527
      %s529 = smul.addr %s522, 32
      %s530 = sadd.s32 %s528, %s529
      %s531 = smul.addr %s530, 4
      %s532 = scalar_lea.vmem %s1, %s531
      %p533 = scmp.gt.s32.totalorder %s25, 0
      %s534 = scalar_select %p533, %s25, 0
      %p535 = scmp.lt.s32.totalorder %s534, 7
      %s536 = scalar_select %p535, %s534, 7
      %s537 = sadd.s32 %s25, 1
      %p538 = scmp.gt.s32.totalorder %s537, 0
      %s539 = scalar_select %p538, %s537, 0
      %p540 = scmp.lt.s32.totalorder %s539, 7
      %s541 = scalar_select %p540, %s539, 7
      %p542 = scmp.lt.s32.totalorder %s23, 1
      %s543 = scalar_select %p542, %s23, 1
      %p544 = scmp.lt.s32.totalorder %s24, 3
      %s545 = scalar_select %p544, %s24, 3
      %p546 = scmp.lt.s32.totalorder %s541, 7
      %s547 = scalar_select %p546, %s541, 7
      %s548 = smul.addr %s545, 8
      %s549 = sadd.s32 %s547, %s548
      %s550 = smul.addr %s543, 32
      %s551 = sadd.s32 %s549, %s550
      %s552 = smul.addr %s551, 4
      %s553 = scalar_lea.vmem %s2, %s552
      %s554 = sadd.s32 %s25, 1
      %p555 = scmp.gt.s32.totalorder %s554, 0
      %s556 = scalar_select %p555, %s554, 0
      %p557 = scmp.lt.s32.totalorder %s556, 7
      %s558 = scalar_select %p557, %s556, 7
      %p559 = scmp.lt.s32.totalorder %s23, 1
      %s560 = scalar_select %p559, %s23, 1
      %p561 = scmp.lt.s32.totalorder %s24, 3
      %s562 = scalar_select %p561, %s24, 3
      %s563 = smul.addr %s560, 4
      %s564 = sadd.s32 %s562, %s563
      %s565 = scalar_lea.vmem %s3, %s564
      %p566 = scmp.lt.s32.totalorder %s23, 1
      %s567 = scalar_select %p566, %s23, 1
      %p568 = scmp.lt.s32.totalorder %s24, 3
      %s569 = scalar_select %p568, %s24, 3
      %s570 = smul.addr %s567, 4
      %s571 = sadd.s32 %s569, %s570
      %s572 = scalar_lea.vmem %s4, %s571
      %p573 = scmp.lt.s32.totalorder %s23, 1
      %s574 = scalar_select %p573, %s23, 1
      %p575 = scmp.lt.s32.totalorder %s24, 3
      %s576 = scalar_select %p575, %s24, 3
      %p577 = scmp.lt.s32.totalorder %s25, 7
      %s578 = scalar_select %p577, %s25, 7
      %s579 = smul.addr %s576, 8
      %s580 = sadd.s32 %s578, %s579
      %s581 = smul.addr %s574, 32
      %s582 = sadd.s32 %s580, %s581
      %s583 = smul.addr %s582, 4
      %s584 = scalar_lea.vmem %s7, %s583
      %v586 = vld [vmem:[%s565] sm:$0x1]
      %v587 = vld [vmem:[%s572] sm:$0x1]
      %p588 = scmp.gt.s32.totalorder %s25, 0
      %v589 = vld [vmem:[%s511] sm:$0xf]
      %v590 = vunpack.c.l.bf16 %v589
      %v592 = vlaneseq
      %v593 = vshrl.u32 %v592, 7
      %v594 = vsub.s32 0, %v593
      %v595 = vrot.slane %v586, %v594
      %v597 = vmul.f32 %v590, %v595
      %v599 = vlaneseq
      %v600 = vshrl.u32 %v599, 7
      %v601 = vsub.s32 0, %v600
      %v602 = vrot.slane %v587, %v601
      %v604 = vadd.f32 %v597, %v602
      %v605 = vsub.f32 0.0, %v604
      %v606 = vmul.f32 %v605, 1.442695
      %v607 = vpow.pop %v606
      %v608 = vadd.f32 %v607, 1.0
      %v609 = vrcp.pop %v608
      %v610 = vmul.f32 1.0, %v609
      %v611 = vmul.f32 %v604, %v610
      %s612 = scalar_select %p588, 1, 0
      %s613 = scvt.s32.f32 %s612
      %v614 = vstv %s613
      %v615 = vmul.f32 %v611, %v614
      %v616 = vpack.c.bf16 %v615, %v615
      %v617 = vld [vmem:[%s532] sm:$0xf]
      %v618 = vunpack.c.l.bf16 %v617
      %v619 = vmul.f32 %v618, %v595
      %v620 = vadd.f32 %v619, %v602
      %v621 = vsub.f32 0.0, %v620
      %v622 = vmul.f32 %v621, 1.442695
      %v623 = vpow.pop %v622
      %v624 = vadd.f32 %v623, 1.0
      %v625 = vrcp.pop %v624
      %v626 = vmul.f32 1.0, %v625
      %v627 = vmul.f32 %v620, %v626
      %v628 = vpack.c.bf16 %v627, %v627
      %p629 = scmp.lt.s32.totalorder %s25, 7
      %v630 = vld [vmem:[%s553] sm:$0xf]
      %v631 = vunpack.c.l.bf16 %v630
      %v632 = vmul.f32 %v631, %v595
      %v633 = vadd.f32 %v632, %v602
      %v634 = vsub.f32 0.0, %v633
      %v635 = vmul.f32 %v634, 1.442695
      %v636 = vpow.pop %v635
      %v637 = vadd.f32 %v636, 1.0
      %v638 = vrcp.pop %v637
      %v639 = vmul.f32 1.0, %v638
      %v640 = vmul.f32 %v633, %v639
      %s641 = scalar_select %p629, 1, 0
      %s642 = scvt.s32.f32 %s641
      %v643 = vstv %s642
      %v644 = vmul.f32 %v640, %v643
      %v645 = vpack.c.bf16 %v644, %v644
      %v647 = vshrl.u32 %v616, 16
      %v649 = vrot.slane %v647, 7
      %v650 = vshll.u32 %v616, 16
      %v652 = vor.u32 %v649, %v650
      %vm654 = vcmask 1040384
      %vm655 = vsmask.f32 256
      %vm656 = vmand %vm654, %vm655
      %v657 = vsel %vm656, 0, %v652
      %vm658 = vcmask 1044480
      %vm659 = vsmask.f32 4352
      %vm660 = vmand %vm658, %vm659
      %v661 = vsel %vm660, %v657, 0
      %v663 = vshrl.u32 %v628, 16
      %v665 = vrot.slane %v663, 7
      %v666 = vshll.u32 %v628, 16
      %v668 = vor.u32 %v665, %v666
      %v670 = vsel %vm656, 0, %v668
      %v671 = vsel %vm660, %v670, 0
      %v673 = vshrl.u32 %v645, 16
      %v675 = vrot.slane %v673, 7
      %v676 = vshll.u32 %v645, 16
      %v678 = vor.u32 %v675, %v676
      %v680 = vsel %vm656, 0, %v678
      %v681 = vsel %vm660, %v680, 0
      %v683 = vshrl.u32 %v661, 16
      %v685 = vshll.u32 %v661, 16
      %v687 = vrot.slane %v685, 1
      %v688 = vor.u32 %v683, %v687
      %v691 = vrot.slane %v661, 1
      %v694 = vshrl.u32 %v671, 16
      %v696 = vshll.u32 %v671, 16
      %v698 = vrot.slane %v696, 1
      %v699 = vor.u32 %v694, %v698
      %v702 = vrot.slane %v671, 1
      %v705 = vshrl.u32 %v681, 16
      %v707 = vshll.u32 %v681, 16
      %v709 = vrot.slane %v707, 1
      %v710 = vor.u32 %v705, %v709
      %v713 = vrot.slane %v681, 1
      %v715 = vld [vmem:[%s5] sm:$0xf]
      %v716 = vld [vmem:[%s5 + $0x4] sm:$0xf]
      %v717 = vld [vmem:[%s5 + $0x8] sm:$0xf]
      %v718 = vld [vmem:[%s5 + $0xc] sm:$0xf]
      %v719 = vld [vmem:[%s5 + $0x10] sm:$0xf]
      %v720 = vld [vmem:[%s5 + $0x14] sm:$0xf]
      %v721 = vld [vmem:[%s5 + $0x18] sm:$0xf]
      %v722 = vld [vmem:[%s5 + $0x1c] sm:$0xf]
      %v723 = vld [vmem:[%s5 + $0x20] sm:$0xf]
      %v724 = vld [vmem:[%s5 + $0x24] sm:$0xf]
      %v725 = vld [vmem:[%s5 + $0x28] sm:$0xf]
      %v726 = vld [vmem:[%s5 + $0x2c] sm:$0xf]
      %v727 = vld [vmem:[%s5 + $0x30] sm:$0xf]
      %v728 = vld [vmem:[%s5 + $0x34] sm:$0xf]
      %v729 = vld [vmem:[%s5 + $0x38] sm:$0xf]
      %v730 = vld [vmem:[%s5 + $0x3c] sm:$0xf]
      %v731 = vld [vmem:[%s5 + $0x40] sm:$0xf]
      %v732 = vld [vmem:[%s5 + $0x44] sm:$0xf]
      %v733 = vld [vmem:[%s5 + $0x48] sm:$0xf]
      %v734 = vld [vmem:[%s5 + $0x4c] sm:$0xf]
      %v735 = vld [vmem:[%s5 + $0x50] sm:$0xf]
      %v736 = vld [vmem:[%s5 + $0x54] sm:$0xf]
      %v737 = vld [vmem:[%s5 + $0x58] sm:$0xf]
      %v738 = vld [vmem:[%s5 + $0x5c] sm:$0xf]
      %v739 = vld [vmem:[%s5 + $0x60] sm:$0xf]
      %v740 = vld [vmem:[%s5 + $0x64] sm:$0xf]
      %v741 = vld [vmem:[%s5 + $0x68] sm:$0xf]
      %v742 = vld [vmem:[%s5 + $0x6c] sm:$0xf]
      %v743 = vld [vmem:[%s5 + $0x70] sm:$0xf]
      %v744 = vld [vmem:[%s5 + $0x74] sm:$0xf]
      %v745 = vld [vmem:[%s5 + $0x78] sm:$0xf]
      %v746 = vld [vmem:[%s5 + $0x7c] sm:$0xf]
      %v747 = vld [vmem:[%s5 + $0x80] sm:$0xf]
      %v748 = vld [vmem:[%s5 + $0x84] sm:$0xf]
      %v749 = vld [vmem:[%s5 + $0x88] sm:$0xf]
      %v750 = vld [vmem:[%s5 + $0x8c] sm:$0xf]
      %v751 = vld [vmem:[%s5 + $0x90] sm:$0xf]
      %v752 = vld [vmem:[%s5 + $0x94] sm:$0xf]
      %v753 = vld [vmem:[%s5 + $0x98] sm:$0xf]
      %v754 = vld [vmem:[%s5 + $0x9c] sm:$0xf]
      %v755 = vld [vmem:[%s5 + $0xa0] sm:$0xf]
      %v756 = vld [vmem:[%s5 + $0xa4] sm:$0xf]
      %v757 = vld [vmem:[%s5 + $0xa8] sm:$0xf]
      %v758 = vld [vmem:[%s5 + $0xac] sm:$0xf]
      %v759 = vld [vmem:[%s5 + $0xb0] sm:$0xf]
      %v760 = vld [vmem:[%s5 + $0xb4] sm:$0xf]
      %v761 = vld [vmem:[%s5 + $0xb8] sm:$0xf]
      %v762 = vld [vmem:[%s5 + $0xbc] sm:$0xf]
      %v763 = vld [vmem:[%s5 + $0xc0] sm:$0xf]
      %v764 = vld [vmem:[%s5 + $0xc4] sm:$0xf]
      %v765 = vld [vmem:[%s5 + $0xc8] sm:$0xf]
      %v766 = vld [vmem:[%s5 + $0xcc] sm:$0xf]
      %v767 = vld [vmem:[%s5 + $0xd0] sm:$0xf]
      %v768 = vld [vmem:[%s5 + $0xd4] sm:$0xf]
      %v769 = vld [vmem:[%s5 + $0xd8] sm:$0xf]
      %v770 = vld [vmem:[%s5 + $0xdc] sm:$0xf]
      %v771 = vld [vmem:[%s5 + $0xe0] sm:$0xf]
      %v772 = vld [vmem:[%s5 + $0xe4] sm:$0xf]
      %v773 = vld [vmem:[%s5 + $0xe8] sm:$0xf]
      %v774 = vld [vmem:[%s5 + $0xec] sm:$0xf]
      %v775 = vld [vmem:[%s5 + $0xf0] sm:$0xf]
      %v776 = vld [vmem:[%s5 + $0xf4] sm:$0xf]
      %v777 = vld [vmem:[%s5 + $0xf8] sm:$0xf]
      %v778 = vld [vmem:[%s5 + $0xfc] sm:$0xf]
      %v779 = vld [vmem:[%s5 + $0x100] sm:$0xf]
      %v780 = vld [vmem:[%s5 + $0x104] sm:$0xf]
      %v781 = vld [vmem:[%s5 + $0x108] sm:$0xf]
      %v782 = vld [vmem:[%s5 + $0x10c] sm:$0xf]
      %v783 = vld [vmem:[%s5 + $0x110] sm:$0xf]
      %v784 = vld [vmem:[%s5 + $0x114] sm:$0xf]
      %v785 = vld [vmem:[%s5 + $0x118] sm:$0xf]
      %v786 = vld [vmem:[%s5 + $0x11c] sm:$0xf]
      %v787 = vld [vmem:[%s5 + $0x120] sm:$0xf]
      %v788 = vld [vmem:[%s5 + $0x124] sm:$0xf]
      %v789 = vld [vmem:[%s5 + $0x128] sm:$0xf]
      %v790 = vld [vmem:[%s5 + $0x12c] sm:$0xf]
      %v791 = vld [vmem:[%s5 + $0x130] sm:$0xf]
      %v792 = vld [vmem:[%s5 + $0x134] sm:$0xf]
      %v793 = vld [vmem:[%s5 + $0x138] sm:$0xf]
      %v794 = vld [vmem:[%s5 + $0x13c] sm:$0xf]
      %v795 = vld [vmem:[%s5 + $0x140] sm:$0xf]
      %v796 = vld [vmem:[%s5 + $0x144] sm:$0xf]
      %v797 = vld [vmem:[%s5 + $0x148] sm:$0xf]
      %v798 = vld [vmem:[%s5 + $0x14c] sm:$0xf]
      %v799 = vld [vmem:[%s5 + $0x150] sm:$0xf]
      %v800 = vld [vmem:[%s5 + $0x154] sm:$0xf]
      %v801 = vld [vmem:[%s5 + $0x158] sm:$0xf]
      %v802 = vld [vmem:[%s5 + $0x15c] sm:$0xf]
      %v803 = vld [vmem:[%s5 + $0x160] sm:$0xf]
      %v804 = vld [vmem:[%s5 + $0x164] sm:$0xf]
      %v805 = vld [vmem:[%s5 + $0x168] sm:$0xf]
      %v806 = vld [vmem:[%s5 + $0x16c] sm:$0xf]
      %v807 = vld [vmem:[%s5 + $0x170] sm:$0xf]
      %v808 = vld [vmem:[%s5 + $0x174] sm:$0xf]
      %v809 = vld [vmem:[%s5 + $0x178] sm:$0xf]
      %v810 = vld [vmem:[%s5 + $0x17c] sm:$0xf]
      %v811 = vld [vmem:[%s5 + $0x180] sm:$0xf]
      %v812 = vld [vmem:[%s5 + $0x184] sm:$0xf]
      %v813 = vld [vmem:[%s5 + $0x188] sm:$0xf]
      %v814 = vld [vmem:[%s5 + $0x18c] sm:$0xf]
      %v815 = vld [vmem:[%s5 + $0x190] sm:$0xf]
      %v816 = vld [vmem:[%s5 + $0x194] sm:$0xf]
      %v817 = vld [vmem:[%s5 + $0x198] sm:$0xf]
      %v818 = vld [vmem:[%s5 + $0x19c] sm:$0xf]
      %v819 = vld [vmem:[%s5 + $0x1a0] sm:$0xf]
      %v820 = vld [vmem:[%s5 + $0x1a4] sm:$0xf]
      %v821 = vld [vmem:[%s5 + $0x1a8] sm:$0xf]
      %v822 = vld [vmem:[%s5 + $0x1ac] sm:$0xf]
      %v823 = vld [vmem:[%s5 + $0x1b0] sm:$0xf]
      %v824 = vld [vmem:[%s5 + $0x1b4] sm:$0xf]
      %v825 = vld [vmem:[%s5 + $0x1b8] sm:$0xf]
      %v826 = vld [vmem:[%s5 + $0x1bc] sm:$0xf]
      %v827 = vld [vmem:[%s5 + $0x1c0] sm:$0xf]
      %v828 = vld [vmem:[%s5 + $0x1c4] sm:$0xf]
      %v829 = vld [vmem:[%s5 + $0x1c8] sm:$0xf]
      %v830 = vld [vmem:[%s5 + $0x1cc] sm:$0xf]
      %v831 = vld [vmem:[%s5 + $0x1d0] sm:$0xf]
      %v832 = vld [vmem:[%s5 + $0x1d4] sm:$0xf]
      %v833 = vld [vmem:[%s5 + $0x1d8] sm:$0xf]
      %v834 = vld [vmem:[%s5 + $0x1dc] sm:$0xf]
      %v835 = vld [vmem:[%s5 + $0x1e0] sm:$0xf]
      %v836 = vld [vmem:[%s5 + $0x1e4] sm:$0xf]
      %v837 = vld [vmem:[%s5 + $0x1e8] sm:$0xf]
      %v838 = vld [vmem:[%s5 + $0x1ec] sm:$0xf]
      %v839 = vld [vmem:[%s5 + $0x1f0] sm:$0xf]
      %v840 = vld [vmem:[%s5 + $0x1f4] sm:$0xf]
      %v841 = vld [vmem:[%s5 + $0x1f8] sm:$0xf]
      %v842 = vld [vmem:[%s5 + $0x1fc] sm:$0xf]
      %v843 = vld [vmem:[%s5 + $0x200] sm:$0xf]
      %v844 = vld [vmem:[%s5 + $0x204] sm:$0xf]
      %v845 = vld [vmem:[%s5 + $0x208] sm:$0xf]
      %v846 = vld [vmem:[%s5 + $0x20c] sm:$0xf]
      %v847 = vld [vmem:[%s5 + $0x210] sm:$0xf]
      %v848 = vld [vmem:[%s5 + $0x214] sm:$0xf]
      %v849 = vld [vmem:[%s5 + $0x218] sm:$0xf]
      %v850 = vld [vmem:[%s5 + $0x21c] sm:$0xf]
      %v851 = vld [vmem:[%s5 + $0x220] sm:$0xf]
      %v852 = vld [vmem:[%s5 + $0x224] sm:$0xf]
      %v853 = vld [vmem:[%s5 + $0x228] sm:$0xf]
      %v854 = vld [vmem:[%s5 + $0x22c] sm:$0xf]
      %v855 = vld [vmem:[%s5 + $0x230] sm:$0xf]
      %v856 = vld [vmem:[%s5 + $0x234] sm:$0xf]
      %v857 = vld [vmem:[%s5 + $0x238] sm:$0xf]
      %v858 = vld [vmem:[%s5 + $0x23c] sm:$0xf]
      %v859 = vld [vmem:[%s6] sm:$0x1]
      %v861 = vlaneseq
      %v862 = vshrl.u32 %v861, 7
      %v863 = vsub.s32 0, %v862
      %v864 = vrot.slane %v859, %v863
      %v1010 = vunpack.c.l.b16 %v715
      %v1011 = vunpack.c.l.b16 %v716
      %v1012 = vunpack.c.l.b16 %v717
      %v1013 = vunpack.c.l.b16 %v718
      %v1014 = vunpack.c.l.b16 %v719
      %v1015 = vunpack.c.l.b16 %v720
      %v1016 = vunpack.c.l.b16 %v721
      %v1017 = vunpack.c.l.b16 %v722
      %v1018 = vunpack.c.l.b16 %v723
      %v1019 = vunpack.c.l.b16 %v724
      %v1020 = vunpack.c.l.b16 %v725
      %v1021 = vunpack.c.l.b16 %v726
      %v1022 = vunpack.c.l.b16 %v727
      %v1023 = vunpack.c.l.b16 %v728
      %v1024 = vunpack.c.l.b16 %v729
      %v1025 = vunpack.c.l.b16 %v730
      %v1026 = vunpack.c.l.b16 %v731
      %v1027 = vunpack.c.l.b16 %v732
      %v1028 = vunpack.c.l.b16 %v733
      %v1029 = vunpack.c.l.b16 %v734
      %v1030 = vunpack.c.l.b16 %v735
      %v1031 = vunpack.c.l.b16 %v736
      %v1032 = vunpack.c.l.b16 %v737
      %v1033 = vunpack.c.l.b16 %v738
      %v1034 = vunpack.c.l.b16 %v739
      %v1035 = vunpack.c.l.b16 %v740
      %v1036 = vunpack.c.l.b16 %v741
      %v1037 = vunpack.c.l.b16 %v742
      %v1038 = vunpack.c.l.b16 %v743
      %v1039 = vunpack.c.l.b16 %v744
      %v1040 = vunpack.c.l.b16 %v745
      %v1041 = vunpack.c.l.b16 %v746
      %v1042 = vunpack.c.l.b16 %v747
      %v1043 = vunpack.c.l.b16 %v748
      %v1044 = vunpack.c.l.b16 %v749
      %v1045 = vunpack.c.l.b16 %v750
      %v1046 = vunpack.c.l.b16 %v751
      %v1047 = vunpack.c.l.b16 %v752
      %v1048 = vunpack.c.l.b16 %v753
      %v1049 = vunpack.c.l.b16 %v754
      %v1050 = vunpack.c.l.b16 %v755
      %v1051 = vunpack.c.l.b16 %v756
      %v1052 = vunpack.c.l.b16 %v757
      %v1053 = vunpack.c.l.b16 %v758
      %v1054 = vunpack.c.l.b16 %v759
      %v1055 = vunpack.c.l.b16 %v760
      %v1056 = vunpack.c.l.b16 %v761
      %v1057 = vunpack.c.l.b16 %v762
      %v1058 = vunpack.c.l.b16 %v763
      %v1059 = vunpack.c.l.b16 %v764
      %v1060 = vunpack.c.l.b16 %v765
      %v1061 = vunpack.c.l.b16 %v766
      %v1062 = vunpack.c.l.b16 %v767
      %v1063 = vunpack.c.l.b16 %v768
      %v1064 = vunpack.c.l.b16 %v769
      %v1065 = vunpack.c.l.b16 %v770
      %v1066 = vunpack.c.l.b16 %v771
      %v1067 = vunpack.c.l.b16 %v772
      %v1068 = vunpack.c.l.b16 %v773
      %v1069 = vunpack.c.l.b16 %v774
      %v1070 = vunpack.c.l.b16 %v775
      %v1071 = vunpack.c.l.b16 %v776
      %v1072 = vunpack.c.l.b16 %v777
      %v1073 = vunpack.c.l.b16 %v778
      %v1074 = vunpack.c.l.b16 %v779
      %v1075 = vunpack.c.l.b16 %v780
      %v1076 = vunpack.c.l.b16 %v781
      %v1077 = vunpack.c.l.b16 %v782
      %v1078 = vunpack.c.l.b16 %v783
      %v1079 = vunpack.c.l.b16 %v784
      %v1080 = vunpack.c.l.b16 %v785
      %v1081 = vunpack.c.l.b16 %v786
      %v1082 = vunpack.c.l.b16 %v787
      %v1083 = vunpack.c.l.b16 %v788
      %v1084 = vunpack.c.l.b16 %v789
      %v1085 = vunpack.c.l.b16 %v790
      %v1086 = vunpack.c.l.b16 %v791
      %v1087 = vunpack.c.l.b16 %v792
      %v1088 = vunpack.c.l.b16 %v793
      %v1089 = vunpack.c.l.b16 %v794
      %v1090 = vunpack.c.l.b16 %v795
      %v1091 = vunpack.c.l.b16 %v796
      %v1092 = vunpack.c.l.b16 %v797
      %v1093 = vunpack.c.l.b16 %v798
      %v1094 = vunpack.c.l.b16 %v799
      %v1095 = vunpack.c.l.b16 %v800
      %v1096 = vunpack.c.l.b16 %v801
      %v1097 = vunpack.c.l.b16 %v802
      %v1098 = vunpack.c.l.b16 %v803
      %v1099 = vunpack.c.l.b16 %v804
      %v1100 = vunpack.c.l.b16 %v805
      %v1101 = vunpack.c.l.b16 %v806
      %v1102 = vunpack.c.l.b16 %v807
      %v1103 = vunpack.c.l.b16 %v808
      %v1104 = vunpack.c.l.b16 %v809
      %v1105 = vunpack.c.l.b16 %v810
      %v1106 = vunpack.c.l.b16 %v811
      %v1107 = vunpack.c.l.b16 %v812
      %v1108 = vunpack.c.l.b16 %v813
      %v1109 = vunpack.c.l.b16 %v814
      %v1110 = vunpack.c.l.b16 %v815
      %v1111 = vunpack.c.l.b16 %v816
      %v1112 = vunpack.c.l.b16 %v817
      %v1113 = vunpack.c.l.b16 %v818
      %v1114 = vunpack.c.l.b16 %v819
      %v1115 = vunpack.c.l.b16 %v820
      %v1116 = vunpack.c.l.b16 %v821
      %v1117 = vunpack.c.l.b16 %v822
      %v1118 = vunpack.c.l.b16 %v823
      %v1119 = vunpack.c.l.b16 %v824
      %v1120 = vunpack.c.l.b16 %v825
      %v1121 = vunpack.c.l.b16 %v826
      %v1122 = vunpack.c.l.b16 %v827
      %v1123 = vunpack.c.l.b16 %v828
      %v1124 = vunpack.c.l.b16 %v829
      %v1125 = vunpack.c.l.b16 %v830
      %v1126 = vunpack.c.l.b16 %v831
      %v1127 = vunpack.c.l.b16 %v832
      %v1128 = vunpack.c.l.b16 %v833
      %v1129 = vunpack.c.l.b16 %v834
      %v1130 = vunpack.c.l.b16 %v835
      %v1131 = vunpack.c.l.b16 %v836
      %v1132 = vunpack.c.l.b16 %v837
      %v1133 = vunpack.c.l.b16 %v838
      %v1134 = vunpack.c.l.b16 %v839
      %v1135 = vunpack.c.l.b16 %v840
      %v1136 = vunpack.c.l.b16 %v841
      %v1137 = vunpack.c.l.b16 %v842
      %v1138 = vunpack.c.l.b16 %v843
      %v1139 = vunpack.c.l.b16 %v844
      %v1140 = vunpack.c.l.b16 %v845
      %v1141 = vunpack.c.l.b16 %v846
      %v1142 = vunpack.c.l.b16 %v847
      %v1143 = vunpack.c.l.b16 %v848
      %v1144 = vunpack.c.l.b16 %v849
      %v1145 = vunpack.c.l.b16 %v850
      %v1146 = vunpack.c.l.b16 %v851
      %v1147 = vunpack.c.l.b16 %v852
      %v1148 = vunpack.c.l.b16 %v853
      %v1149 = vunpack.c.l.b16 %v854
      %v1150 = vunpack.c.l.b16 %v855
      %v1151 = vunpack.c.l.b16 %v856
      %v1152 = vunpack.c.l.b16 %v857
      %v1153 = vunpack.c.l.b16 %v858
      %v1154 = vpack.c.b16 %v1011, %v1010
      %v1155 = vpack.c.b16 %v1013, %v1012
      %v1156 = vpack.c.b16 %v1015, %v1014
      %v1157 = vpack.c.b16 %v1017, %v1016
      %v1158 = vpack.c.b16 %v1019, %v1018
      %v1159 = vpack.c.b16 %v1021, %v1020
      %v1160 = vpack.c.b16 %v1023, %v1022
      %v1161 = vpack.c.b16 %v1025, %v1024
      %v1162 = vpack.c.b16 %v1027, %v1026
      %v1163 = vpack.c.b16 %v1029, %v1028
      %v1164 = vpack.c.b16 %v1031, %v1030
      %v1165 = vpack.c.b16 %v1033, %v1032
      %v1166 = vpack.c.b16 %v1035, %v1034
      %v1167 = vpack.c.b16 %v1037, %v1036
      %v1168 = vpack.c.b16 %v1039, %v1038
      %v1169 = vpack.c.b16 %v1041, %v1040
      %v1170 = vpack.c.b16 %v1043, %v1042
      %v1171 = vpack.c.b16 %v1045, %v1044
      %v1172 = vpack.c.b16 %v1047, %v1046
      %v1173 = vpack.c.b16 %v1049, %v1048
      %v1174 = vpack.c.b16 %v1051, %v1050
      %v1175 = vpack.c.b16 %v1053, %v1052
      %v1176 = vpack.c.b16 %v1055, %v1054
      %v1177 = vpack.c.b16 %v1057, %v1056
      %v1178 = vpack.c.b16 %v1059, %v1058
      %v1179 = vpack.c.b16 %v1061, %v1060
      %v1180 = vpack.c.b16 %v1063, %v1062
      %v1181 = vpack.c.b16 %v1065, %v1064
      %v1182 = vpack.c.b16 %v1067, %v1066
      %v1183 = vpack.c.b16 %v1069, %v1068
      %v1184 = vpack.c.b16 %v1071, %v1070
      %v1185 = vpack.c.b16 %v1073, %v1072
      %v1186 = vpack.c.b16 %v1075, %v1074
      %v1187 = vpack.c.b16 %v1077, %v1076
      %v1188 = vpack.c.b16 %v1079, %v1078
      %v1189 = vpack.c.b16 %v1081, %v1080
      %v1190 = vpack.c.b16 %v1083, %v1082
      %v1191 = vpack.c.b16 %v1085, %v1084
      %v1192 = vpack.c.b16 %v1087, %v1086
      %v1193 = vpack.c.b16 %v1089, %v1088
      %v1194 = vpack.c.b16 %v1091, %v1090
      %v1195 = vpack.c.b16 %v1093, %v1092
      %v1196 = vpack.c.b16 %v1095, %v1094
      %v1197 = vpack.c.b16 %v1097, %v1096
      %v1198 = vpack.c.b16 %v1099, %v1098
      %v1199 = vpack.c.b16 %v1101, %v1100
      %v1200 = vpack.c.b16 %v1103, %v1102
      %v1201 = vpack.c.b16 %v1105, %v1104
      %v1202 = vpack.c.b16 %v1107, %v1106
      %v1203 = vpack.c.b16 %v1109, %v1108
      %v1204 = vpack.c.b16 %v1111, %v1110
      %v1205 = vpack.c.b16 %v1113, %v1112
      %v1206 = vpack.c.b16 %v1115, %v1114
      %v1207 = vpack.c.b16 %v1117, %v1116
      %v1208 = vpack.c.b16 %v1119, %v1118
      %v1209 = vpack.c.b16 %v1121, %v1120
      %v1210 = vpack.c.b16 %v1123, %v1122
      %v1211 = vpack.c.b16 %v1125, %v1124
      %v1212 = vpack.c.b16 %v1127, %v1126
      %v1213 = vpack.c.b16 %v1129, %v1128
      %v1214 = vpack.c.b16 %v1131, %v1130
      %v1215 = vpack.c.b16 %v1133, %v1132
      %v1216 = vpack.c.b16 %v1135, %v1134
      %v1217 = vpack.c.b16 %v1137, %v1136
      %v1218 = vpack.c.b16 %v1139, %v1138
      %v1219 = vpack.c.b16 %v1141, %v1140
      %v1220 = vpack.c.b16 %v1143, %v1142
      %v1221 = vpack.c.b16 %v1145, %v1144
      %v1222 = vpack.c.b16 %v1147, %v1146
      %v1223 = vpack.c.b16 %v1149, %v1148
      %v1224 = vpack.c.b16 %v1151, %v1150
      %v1225 = vpack.c.b16 %v1153, %v1152
      %1298 = vmatprep.subr.bf16.mxu0 0
      %1299 = vmatpush1.bf16.msra.mxu0 %v1154
      %1300 = vmatprep.subr.bf16.mxu0 0
      %1301 = vmatpush1.bf16.msra.mxu0 %v1155
      %1302 = vmatprep.subr.bf16.mxu0 0
      %1303 = vmatpush1.bf16.msra.mxu0 %v1156
      %1304 = vmatprep.subr.bf16.mxu0 0
      %1305 = vmatpush1.bf16.msra.mxu0 %v1157
      %1306 = vmatprep.subr.bf16.mxu0 0
      %1307 = vmatpush1.bf16.msra.mxu0 %v1158
      %1308 = vmatprep.subr.bf16.mxu0 0
      %1309 = vmatpush1.bf16.msra.mxu0 %v1159
      %1310 = vmatprep.subr.bf16.mxu0 0
      %1311 = vmatpush1.bf16.msra.mxu0 %v1160
      %1312 = vmatprep.subr.bf16.mxu0 0
      %1313 = vmatpush1.bf16.msra.mxu0 %v1161
      %1314 = vmatprep.subr.bf16.mxu0 0
      %1315 = vmatpush1.bf16.msra.mxu0 %v1162
      %1316 = vmatprep.subr.bf16.mxu0 0
      %1317 = vmatpush1.bf16.msra.mxu0 %v1163
      %1318 = vmatprep.subr.bf16.mxu0 0
      %1319 = vmatpush1.bf16.msra.mxu0 %v1164
      %1320 = vmatprep.subr.bf16.mxu0 0
      %1321 = vmatpush1.bf16.msra.mxu0 %v1165
      %1322 = vmatprep.subr.bf16.mxu0 0
      %1323 = vmatpush1.bf16.msra.mxu0 %v1166
      %1324 = vmatprep.subr.bf16.mxu0 0
      %1325 = vmatpush1.bf16.msra.mxu0 %v1167
      %1326 = vmatprep.subr.bf16.mxu0 0
      %1327 = vmatpush1.bf16.msra.mxu0 %v1168
      %1328 = vmatprep.subr.bf16.mxu0 0
      %1329 = vmatpush1.bf16.msra.mxu0 %v1169
      %1330 = vmatprep.mubr.bf16.mxu0 %v688
      %1331 = vmatmul.mubr.bf16.gmra.mrb[0].mxu0 %v661
      %v1332 = vpop.f32.mrb[0].mxu0
      %v1333 = vadd.f32 %v864, %v1332
      %v1334 = vpop.f32.mrb[0].mxu0
      %v1335 = vpop.f32.mrb[0].mxu0
      %v1336 = vpop.f32.mrb[0].mxu0
      %1337 = vdwg.mxu0
      %1338 = vmatprep.subr.bf16.mxu0 0
      %1339 = vmatpush1.bf16.msra.mxu0 %v1170
      %1340 = vmatprep.subr.bf16.mxu0 0
      %1341 = vmatpush1.bf16.msra.mxu0 %v1171
      %1342 = vmatprep.subr.bf16.mxu0 0
      %1343 = vmatpush1.bf16.msra.mxu0 %v1172
      %1344 = vmatprep.subr.bf16.mxu0 0
      %1345 = vmatpush1.bf16.msra.mxu0 %v1173
      %1346 = vmatprep.subr.bf16.mxu0 0
      %1347 = vmatpush1.bf16.msra.mxu0 %v1174
      %1348 = vmatprep.subr.bf16.mxu0 0
      %1349 = vmatpush1.bf16.msra.mxu0 %v1175
      %1350 = vmatprep.subr.bf16.mxu0 0
      %1351 = vmatpush1.bf16.msra.mxu0 %v1176
      %1352 = vmatprep.subr.bf16.mxu0 0
      %1353 = vmatpush1.bf16.msra.mxu0 %v1177
      %1354 = vmatprep.subr.bf16.mxu0 0
      %1355 = vmatpush1.bf16.msra.mxu0 %v1178
      %1356 = vmatprep.subr.bf16.mxu0 0
      %1357 = vmatpush1.bf16.msra.mxu0 %v1179
      %1358 = vmatprep.subr.bf16.mxu0 0
      %1359 = vmatpush1.bf16.msra.mxu0 %v1180
      %1360 = vmatprep.subr.bf16.mxu0 0
      %1361 = vmatpush1.bf16.msra.mxu0 %v1181
      %1362 = vmatprep.subr.bf16.mxu0 0
      %1363 = vmatpush1.bf16.msra.mxu0 %v1182
      %1364 = vmatprep.subr.bf16.mxu0 0
      %1365 = vmatpush1.bf16.msra.mxu0 %v1183
      %1366 = vmatprep.subr.bf16.mxu0 0
      %1367 = vmatpush1.bf16.msra.mxu0 %v1184
      %1368 = vmatprep.subr.bf16.mxu0 0
      %1369 = vmatpush1.bf16.msra.mxu0 %v1185
      %1370 = vmatprep.mubr.bf16.mxu0 %v671
      %1371 = vmatmul.mubr.bf16.gmra.mrb[0].mxu0 %v691
      %v1372 = vpop.f32.mrb[0].mxu0
      %v1373 = vadd.f32 %v1333, %v1372
      %v1374 = vpop.f32.mrb[0].mxu0
      %v1375 = vpop.f32.mrb[0].mxu0
      %v1376 = vpop.f32.mrb[0].mxu0
      %1377 = vdwg.mxu0
      %1378 = vmatprep.subr.bf16.mxu0 0
      %1379 = vmatpush1.bf16.msra.mxu0 %v1186
      %1380 = vmatprep.subr.bf16.mxu0 0
      %1381 = vmatpush1.bf16.msra.mxu0 %v1187
      %1382 = vmatprep.subr.bf16.mxu0 0
      %1383 = vmatpush1.bf16.msra.mxu0 %v1188
      %1384 = vmatprep.subr.bf16.mxu0 0
      %1385 = vmatpush1.bf16.msra.mxu0 %v1189
      %1386 = vmatprep.subr.bf16.mxu0 0
      %1387 = vmatpush1.bf16.msra.mxu0 %v1190
      %1388 = vmatprep.subr.bf16.mxu0 0
      %1389 = vmatpush1.bf16.msra.mxu0 %v1191
      %1390 = vmatprep.subr.bf16.mxu0 0
      %1391 = vmatpush1.bf16.msra.mxu0 %v1192
      %1392 = vmatprep.subr.bf16.mxu0 0
      %1393 = vmatpush1.bf16.msra.mxu0 %v1193
      %1394 = vmatprep.subr.bf16.mxu0 0
      %1395 = vmatpush1.bf16.msra.mxu0 %v1194
      %1396 = vmatprep.subr.bf16.mxu0 0
      %1397 = vmatpush1.bf16.msra.mxu0 %v1195
      %1398 = vmatprep.subr.bf16.mxu0 0
      %1399 = vmatpush1.bf16.msra.mxu0 %v1196
      %1400 = vmatprep.subr.bf16.mxu0 0
      %1401 = vmatpush1.bf16.msra.mxu0 %v1197
      %1402 = vmatprep.subr.bf16.mxu0 0
      %1403 = vmatpush1.bf16.msra.mxu0 %v1198
      %1404 = vmatprep.subr.bf16.mxu0 0
      %1405 = vmatpush1.bf16.msra.mxu0 %v1199
      %1406 = vmatprep.subr.bf16.mxu0 0
      %1407 = vmatpush1.bf16.msra.mxu0 %v1200
      %1408 = vmatprep.subr.bf16.mxu0 0
      %1409 = vmatpush1.bf16.msra.mxu0 %v1201
      %1410 = vmatprep.mubr.bf16.mxu0 %v702
      %1411 = vmatmul.mubr.bf16.gmra.mrb[0].mxu0 %v699
      %v1412 = vpop.f32.mrb[0].mxu0
      %v1413 = vadd.f32 %v1373, %v1412
      %v1414 = vpop.f32.mrb[0].mxu0
      %v1415 = vpop.f32.mrb[0].mxu0
      %v1416 = vpop.f32.mrb[0].mxu0
      %1417 = vdwg.mxu0
      %1418 = vmatprep.subr.bf16.mxu0 0
      %1419 = vmatpush1.bf16.msra.mxu0 %v1202
      %1420 = vmatprep.subr.bf16.mxu0 0
      %1421 = vmatpush1.bf16.msra.mxu0 %v1203
      %1422 = vmatprep.subr.bf16.mxu0 0
      %1423 = vmatpush1.bf16.msra.mxu0 %v1204
      %1424 = vmatprep.subr.bf16.mxu0 0
      %1425 = vmatpush1.bf16.msra.mxu0 %v1205
      %1426 = vmatprep.subr.bf16.mxu0 0
      %1427 = vmatpush1.bf16.msra.mxu0 %v1206
      %1428 = vmatprep.subr.bf16.mxu0 0
      %1429 = vmatpush1.bf16.msra.mxu0 %v1207
      %1430 = vmatprep.subr.bf16.mxu0 0
      %1431 = vmatpush1.bf16.msra.mxu0 %v1208
      %1432 = vmatprep.subr.bf16.mxu0 0
      %1433 = vmatpush1.bf16.msra.mxu0 %v1209
      %1434 = vmatprep.subr.bf16.mxu0 0
      %1435 = vmatpush1.bf16.msra.mxu0 %v1210
      %1436 = vmatprep.subr.bf16.mxu0 0
      %1437 = vmatpush1.bf16.msra.mxu0 %v1211
      %1438 = vmatprep.subr.bf16.mxu0 0
      %1439 = vmatpush1.bf16.msra.mxu0 %v1212
      %1440 = vmatprep.subr.bf16.mxu0 0
      %1441 = vmatpush1.bf16.msra.mxu0 %v1213
      %1442 = vmatprep.subr.bf16.mxu0 0
      %1443 = vmatpush1.bf16.msra.mxu0 %v1214
      %1444 = vmatprep.subr.bf16.mxu0 0
      %1445 = vmatpush1.bf16.msra.mxu0 %v1215
      %1446 = vmatprep.subr.bf16.mxu0 0
      %1447 = vmatpush1.bf16.msra.mxu0 %v1216
      %1448 = vmatprep.subr.bf16.mxu0 0
      %1449 = vmatpush1.bf16.msra.mxu0 %v1217
      %1450 = vmatprep.mubr.bf16.mxu0 %v710
      %1451 = vmatmul.mubr.bf16.gmra.mrb[0].mxu0 %v681
      %v1452 = vpop.f32.mrb[0].mxu0
      %v1453 = vadd.f32 %v1413, %v1452
      %v1454 = vpop.f32.mrb[0].mxu0
      %v1455 = vpop.f32.mrb[0].mxu0
      %v1456 = vpop.f32.mrb[0].mxu0
      %1457 = vdwg.mxu0
      %1458 = vmatprep.subr.bf16.mxu0 0
      %1459 = vmatpush1.bf16.msra.mxu0 %v1218
      %1460 = vmatprep.subr.bf16.mxu0 0
      %1461 = vmatpush1.bf16.msra.mxu0 %v1219
      %1462 = vmatprep.subr.bf16.mxu0 0
      %1463 = vmatpush1.bf16.msra.mxu0 %v1220
      %1464 = vmatprep.subr.bf16.mxu0 0
      %1465 = vmatpush1.bf16.msra.mxu0 %v1221
      %1466 = vmatprep.subr.bf16.mxu0 0
      %1467 = vmatpush1.bf16.msra.mxu0 %v1222
      %1468 = vmatprep.subr.bf16.mxu0 0
      %1469 = vmatpush1.bf16.msra.mxu0 %v1223
      %1470 = vmatprep.subr.bf16.mxu0 0
      %1471 = vmatpush1.bf16.msra.mxu0 %v1224
      %1472 = vmatprep.subr.bf16.mxu0 0
      %1473 = vmatpush1.bf16.msra.mxu0 %v1225
      %1474 = vmatprep.subr.bf16.mxu0 0
      %1475 = vmatpush1.bf16.msra.mxu0 0
      %1476 = vmatprep.subr.bf16.mxu0 0
      %1477 = vmatpush1.bf16.msra.mxu0 0
      %1478 = vmatprep.subr.bf16.mxu0 0
      %1479 = vmatpush1.bf16.msra.mxu0 0
      %1480 = vmatprep.subr.bf16.mxu0 0
      %1481 = vmatpush1.bf16.msra.mxu0 0
      %1482 = vmatprep.subr.bf16.mxu0 0
      %1483 = vmatpush1.bf16.msra.mxu0 0
      %1484 = vmatprep.subr.bf16.mxu0 0
      %1485 = vmatpush1.bf16.msra.mxu0 0
      %1486 = vmatprep.subr.bf16.mxu0 0
      %1487 = vmatpush1.bf16.msra.mxu0 0
      %1488 = vmatprep.subr.bf16.mxu0 0
      %1489 = vmatpush1.bf16.msra.mxu0 0
      %1490 = vmatprep.mubr.bf16.mxu0 0
      %1491 = vmatmul.mubr.bf16.gmra.mrb[0].mxu0 %v713
      %v1492 = vpop.f32.mrb[0].mxu0
      %v1493 = vadd.f32 %v1453, %v1492
      %v1494 = vpop.f32.mrb[0].mxu0
      %v1495 = vpop.f32.mrb[0].mxu0
      %v1496 = vpop.f32.mrb[0].mxu0
      %1497 = vdwg.mxu0
      %v1498 = vpack.c.bf16 %v1493, %v1493
      %1499 = vst [vmem:[%s584] sm:$0xf] %v1498
      %p1500 = scmp.lt.s32.totalorder %s23, 1
      %s1501 = scalar_select %p1500, %s23, 1
      %p1502 = scmp.lt.s32.totalorder %s24, 3
      %s1503 = scalar_select %p1502, %s24, 3
      %p1504 = scmp.lt.s32.totalorder %s25, 7
      %s1505 = scalar_select %p1504, %s25, 7
      %s1506 = smul.addr %s1503, 8
      %s1507 = sadd.s32 %s1505, %s1506
      %s1508 = smul.addr %s1501, 32
      %s1509 = sadd.s32 %s1507, %s1508
      %s1510 = smul.addr %s1509, 4
      %s1511 = scalar_lea.vmem %s7, %s1510
      // Predicated region
      $region49: #{temporal_resnet_block.10} parent=47 // pred_check
        %p1512 = pneg %p275
      $region50: #{temporal_resnet_block.10} parent=47 // pred_check_branch
        %1514 = sbr.rel (%p1512) target = $region52
      $region51: #{temporal_resnet_block.10} parent=47 // pred_region
        _
      $region52: #{temporal_resnet_block.10} parent=47 // pred_fallthru
        _
    $region48: #{temporal_resnet_block.10} parent=5 // pred_fallthru
      _
    %p1515 = scmp.le.s32.totalorder 2, %s13
    // Predicated region
    $region53: #{temporal_resnet_block.10} parent=5 // pred_check
      %p1516 = pneg %p1515
    $region54: #{temporal_resnet_block.10} parent=5 // pred_check_branch
      %1518 = sbr.rel (%p1516) target = $region56
    $region55: #{temporal_resnet_block.10} parent=5 // pred_region
      %s1519 = ssub.s32 %s13, 2
      // Predicated region
      $region57: #{temporal_resnet_block.10} parent=55 // pred_check
        %p1520 = pneg %p281
      $region58: #{temporal_resnet_block.10} parent=55 // pred_check_branch
        %1522 = sbr.rel (%p1520) target = $region60
      $region59: #{temporal_resnet_block.10} parent=55 // pred_region
        %p1523 = scmp.lt.s32.totalorder %s26, 1
        %s1524 = scalar_select %p1523, %s26, 1
        %p1525 = scmp.lt.s32.totalorder %s27, 3
        %s1526 = scalar_select %p1525, %s27, 3
        %p1527 = scmp.lt.s32.totalorder %s28, 7
        %s1528 = scalar_select %p1527, %s28, 7
        %s1529 = smul.addr %s1526, 8
        %s1530 = sadd.s32 %s1528, %s1529
        %s1531 = smul.addr %s1524, 32
        %s1532 = sadd.s32 %s1530, %s1531
        %s1533 = smul.addr %s1532, 4
        %s1534 = scalar_lea.vmem %s7, %s1533
      $region60: #{temporal_resnet_block.10} parent=55 // pred_fallthru
        _
    $region56: #{temporal_resnet_block.10} parent=5 // pred_fallthru
      _
  $region6: #{temporal_resnet_block.10} parent=0 // loop_footer
    %s17 = sadd.s32 1, %s13
  $region7: #{temporal_resnet_block.10} parent=0 // loop_footer_branch
    %12 = sbr.rel target = $region3
  $region8: #{temporal_resnet_block.10} parent=0 // loop_exit
    _

</llo_original>
